<compile_context>
chip_gen: v5e
topology: v5e:2x2
jax: 0.10.0
libtpu: 0.0.40
codegen_flags: <defaults>
</compile_context>

<pallas_src>
import math

import jax
import jax.numpy as jnp
from jax.experimental import pallas as pl
from jax.experimental.pallas import tpu as pltpu

Z_RANGE = 1.0


# ----------------------------------------------------------------------------
# geom_utils stand-ins (original geom_utils / FLAGS cfg not available).
# ----------------------------------------------------------------------------
def calc_rho(f):
    # TODO(synk): geom_utils.calc_rho unavailable; deterministic stand-in
    # for the camera distance given focal length f.
    return math.sqrt(f * f + 1.0)


def homo_to_3x3(rot):
    return rot[..., :3, :3]


def rt_to_homo(rot, t):
    n = rot.shape[0]
    t = t.reshape(n, 3, 1)
    top = jnp.concatenate([rot, t], axis=-1)                       # (N,3,4)
    bot = jnp.broadcast_to(
        jnp.array([[[0.0, 0.0, 0.0, 1.0]]], jnp.float32), (n, 1, 4))
    return jnp.concatenate([top, bot], axis=1)                     # (N,4,4)


def diag_to_homo(scale):
    n = scale.shape[0]
    d = jnp.concatenate([scale, jnp.ones((n, 1), scale.dtype)], axis=-1)
    return jax.vmap(jnp.diag)(d)                                   # (N,4,4)


def get_camera2world(param, f):
    scale, trans, rot = param
    trans = trans.at[..., -1].set(calc_rho(f))
    rot_inv = homo_to_3x3(rot)
    t = -jnp.matmul(rot_inv, trans[..., None]).squeeze(-1)
    rt_inv = rt_to_homo(rot_inv, t)
    scale_inv = diag_to_homo(1.0 / scale)
    return jnp.matmul(scale_inv, rt_inv)


def get_world2camera(param, f):
    scale, trans, rot = param
    trans = trans.at[..., -1].set(calc_rho(f))
    rot3 = jnp.swapaxes(homo_to_3x3(rot), 1, 2)
    rt = rt_to_homo(rot3, trans)
    s = diag_to_homo(scale)
    return jnp.matmul(rt, s)


# ----------------------------------------------------------------------------
# Grid builders (pure JAX glue; cheap elementwise setup)
# ----------------------------------------------------------------------------
def world_grid(n, out_size, out_depth):
    x_t = jnp.linspace(-0.5, 0.5, out_size, dtype=jnp.float32)
    y_t = jnp.linspace(-0.5, 0.5, out_size, dtype=jnp.float32)
    z_t = jnp.linspace(-0.5, 0.5, out_depth, dtype=jnp.float32)
    z, y, x = jnp.meshgrid(z_t, y_t, x_t, indexing="ij")
    ones = jnp.ones_like(x)
    g = jnp.stack([x, y, z, ones], axis=-1)                        # (D,H,W,4)
    return jnp.broadcast_to(g, (n,) + g.shape)


def ray2camera_grid(out_size, out_depth, f, n):
    z0 = calc_rho(f)
    x_t = jnp.linspace(-0.5, 0.5, out_size, dtype=jnp.float32)
    y_t = jnp.linspace(-0.5, 0.5, out_size, dtype=jnp.float32)
    z_t = jnp.linspace(-Z_RANGE / 2, Z_RANGE / 2, out_depth, dtype=jnp.float32)
    z, y, x = jnp.meshgrid(z_t, y_t, x_t, indexing="ij")
    zc = z0 + z
    xc = x * zc / f
    yc = y * zc / f
    ones = jnp.ones_like(xc)
    g = jnp.stack([xc, yc, zc, ones], axis=-1)                     # (D,H,W,4)
    return jnp.broadcast_to(g, (n,) + g.shape)


# ----------------------------------------------------------------------------
# Small helpers
# ----------------------------------------------------------------------------
def _round_up(x, m):
    return ((x + m - 1) // m) * m


def _vmem_budget_bytes():
    """Usable VMEM budget for the kernel working set (chip-aware)."""
    cap = 128 << 20
    try:
        info = pltpu.get_tpu_info()
        cap = int(getattr(info, "vmem_capacity_bytes", cap))
    except Exception:
        pass
    # Leave headroom for Mosaic internal scratch / compiler temporaries.
    # v5e/v6e (128 MiB) -> ~90 MiB; v7x (64 MiB) -> ~45 MiB.
    return min(int(cap * 0.7), 100 << 20)


def _working_set_bytes(c, d_tile, hw, p_tile, d_in, h_in, w_in, resident):
    f32 = 4
    vox = 2 * c * d_tile * hw * f32            # double-buffered voxel block
    coords = 2 * 3 * p_tile * f32              # double-buffered coord block
    out = 2 * c * p_tile * f32                 # double-buffered output block
    weights = (w_in + h_in + d_tile) * p_tile * f32   # in-kernel wx/wy/wz
    twohot = hw * p_tile * f32                 # (H*W, Pt) two-hot value
    plane = c * d_tile * p_tile * f32          # MXU result value
    scratch = 0 if resident else (c + hw) * p_tile * f32  # acc + twohot scratch
    return vox + coords + out + weights + twohot + plane + scratch


def _select_tiles(c, d_in, h_in, w_in, p):
    """Pick (p_tile, d_tile).  Prefer fully-resident voxels; else slab D."""
    hw = h_in * w_in
    budget = _vmem_budget_bytes()
    p_min = _round_up(p, 128)
    p_cands = [t for t in (2048, 1024, 512, 256, 128) if t <= p_min]
    if p_min <= 2048 and p_min not in p_cands:
        p_cands.append(p_min)
    p_cands = sorted(set(p_cands), reverse=True)

    # 1) fully-resident voxels (no reduction axis, no voxel re-streaming)
    for pt in p_cands:
        if _working_set_bytes(c, d_in, hw, pt, d_in, h_in, w_in, True) <= budget:
            return pt, d_in, budget
    # 2) D-slab reduction (multiples of 8 dividing D, largest first -> best
    #    MXU row fill); keep the largest P tile that fits.
    if d_in % 8 == 0:
        d_cands = [dd for dd in range(d_in - 8, 0, -8) if d_in % dd == 0]
        for pt in p_cands:
            for dd in d_cands:
                if _working_set_bytes(c, dd, hw, pt, d_in, h_in, w_in,
                                      False) <= budget:
                    return pt, dd, budget
    # 3) fallback: smallest tiling (may exceed the budget for extreme shapes).
    dd = 8 if (d_in % 8 == 0) else d_in
    return p_cands[-1], dd, budget


def _sanitize_coord(u, size):
    """Clamp / zero non-finite unnormalized coordinates (zero-padding corners)."""
    big = jnp.float32(2.0 * size + 8.0)
    return jnp.where(jnp.isfinite(u), jnp.clip(u, -big, big), -big)


# ----------------------------------------------------------------------------
# In-kernel interpolation-weight builders
# ----------------------------------------------------------------------------
def _axis_weights(u, block_size, p_tile, full_size, offset=0):
    """Linear-interp one-hot weights over a (block_size, P_tile) index slab.

    u: (1, P_tile) unnormalized coordinate.  Row i of the result holds the
    interpolation weight of voxel index (offset + i); out-of-range corners
    (w.r.t. full_size) are masked to zero (zeros padding, align_corners=True).
    """
    u0 = jnp.floor(u)
    fu = u - u0
    u0i = u0.astype(jnp.int32)
    w0 = jnp.where((u0i >= 0) & (u0i < full_size), 1.0 - fu, 0.0)    # (1, Pt)
    w1 = jnp.where((u0i + 1 >= 0) & (u0i + 1 < full_size), fu, 0.0)  # (1, Pt)
    idx = jax.lax.broadcasted_iota(jnp.int32, (block_size, p_tile), 0) + offset
    return (jnp.where(idx == u0i, w0, 0.0) +
            jnp.where(idx == u0i + 1, w1, 0.0))                      # (bs, Pt)


def _build_twohot(wy, wx, h_in, w_in, p_tile):
    """(H*W, P_tile) two-hot from per-axis factors; one broadcast multiply."""
    if w_in % 8 == 0:
        # free sublane collapse (W is a multiple of the 8-row sublane tile)
        return (wy[:, None, :] * wx[None, :, :]).reshape(h_in * w_in, p_tile)
    # TODO(synk): unaligned-W fallback avoids a relayouting reshape.
    return jnp.concatenate([wx * wy[h:h + 1, :] for h in range(h_in)], axis=0)


# ----------------------------------------------------------------------------
# Pallas kernels: separable trilinear grid_sample as a tiled MXU matmul.
#   (C*D, H*W) @ (H*W, P_tile) on the MXU, then a vectorized z-contraction.
# Points P sit on the lane axis everywhere (lane-dense stores, full MXU cols).
# ----------------------------------------------------------------------------
def _make_resident_kernel(c, d_in, h_in, w_in, p_tile, precision):
    """Grid = (batch, P tiles); voxels fully VMEM-resident, no accumulator."""
    hw = h_in * w_in

    def kernel(coords_ref, vox_ref, out_ref):
        ux = coords_ref[0, 0:1, :]                              # (1, Pt)
        uy = coords_ref[0, 1:2, :]
        uz = coords_ref[0, 2:3, :]
        wx = _axis_weights(ux, w_in, p_tile, w_in)              # (W, Pt)
        wy = _axis_weights(uy, h_in, p_tile, h_in)              # (H, Pt)
        wz = _axis_weights(uz, d_in, p_tile, d_in)              # (D, Pt)
        twohot = _build_twohot(wy, wx, h_in, w_in, p_tile)      # (HW, Pt)

        if d_in % 8 == 0 or c == 1:
            vox2d = vox_ref[0].reshape(c * d_in, hw)            # free collapse
            plane = jnp.dot(vox2d, twohot,
                            preferred_element_type=jnp.float32,
                            precision=precision)                # (C*D, Pt)
            res = jnp.sum(plane.reshape(c, d_in, p_tile) * wz[None, :, :],
                          axis=1)                               # (C, Pt)
        else:
            # TODO(synk): per-channel fallback when D is not sublane-aligned.
            parts = []
            for ci in range(c):
                plane_c = jnp.dot(vox_ref[0, ci], twohot,
                                  preferred_element_type=jnp.float32,
                                  precision=precision)          # (D, Pt)
                parts.append(jnp.sum(plane_c * wz, axis=0, keepdims=True))
            res = jnp.concatenate(parts, axis=0)                # (C, Pt)

        out_ref[0] = res.astype(out_ref.dtype)

    return kernel


def _make_slab_kernel(c, d_in, d_tile, h_in, w_in, p_tile, precision):
    """Grid = (batch, P tiles, D slabs); D-slab axis is the reduction axis."""
    hw = h_in * w_in

    def kernel(coords_ref, vox_ref, out_ref, acc_ref, twohot_ref):
        dt = pl.program_id(2)

        # Once per (batch, P-tile): zero the accumulator, build the two-hot.
        @pl.when(dt == 0)
        def _():
            acc_ref[...] = jnp.zeros_like(acc_ref)
            ux = coords_ref[0, 0:1, :]
            uy = coords_ref[0, 1:2, :]
            wx = _axis_weights(ux, w_in, p_tile, w_in)
            wy = _axis_weights(uy, h_in, p_tile, h_in)
            twohot_ref[...] = _build_twohot(wy, wx, h_in, w_in, p_tile)

        uz = coords_ref[0, 2:3, :]
        zoff = dt * d_tile
        wz = _axis_weights(uz, d_tile, p_tile, d_in, offset=zoff)   # (Dt, Pt)
        twohot = twohot_ref[...]

        if d_tile % 8 == 0 or c == 1:
            vox2d = vox_ref[0].reshape(c * d_tile, hw)
            plane = jnp.dot(vox2d, twohot,
                            preferred_element_type=jnp.float32,
                            precision=precision)                    # (C*Dt,Pt)
            acc_ref[...] += jnp.sum(
                plane.reshape(c, d_tile, p_tile) * wz[None, :, :], axis=1)
        else:
            for ci in range(c):
                plane_c = jnp.dot(vox_ref[0, ci], twohot,
                                  preferred_element_type=jnp.float32,
                                  precision=precision)
                acc_ref[ci:ci + 1, :] += jnp.sum(plane_c * wz, axis=0,
                                                 keepdims=True)

        @pl.when(dt == pl.num_programs(2) - 1)
        def _():
            out_ref[0] = acc_ref[...].astype(out_ref.dtype)

    return kernel


# ----------------------------------------------------------------------------
# Wrapper: coordinate math in plain XLA, sampling in Pallas.
# ----------------------------------------------------------------------------
def _transform_and_sample(voxels, grid4, tmat, *, f, ray_mode, out_depth,
                          out_size, mxu_precision=jax.lax.Precision.HIGHEST,
                          force_d_tile=None, force_p_tile=None):
    n, c, d_in, h_in, w_in = voxels.shape
    hw = h_in * w_in
    p = out_depth * out_size * out_size

    # ---- lane-dense per-point coordinate math, in plain XLA (cheap, O(P)) ---
    grid_flat = grid4.reshape(n, p, 4)
    cg = jnp.einsum("npk,njk->npj", grid_flat, tmat,
                    precision=jax.lax.Precision.HIGHEST)            # (N, P, 4)
    inv_w = 1.0 / cg[..., 3]
    x = cg[..., 0] * inv_w
    y = cg[..., 1] * inv_w
    z = cg[..., 2] * inv_w
    if ray_mode:                      # backproj: camera -> ray grid
        rho = calc_rho(float(f))
        inv_z = 1.0 / z
        gx = (2.0 * float(f)) * x * inv_z
        gy = (2.0 * float(f)) * y * inv_z
        gz = (2.0 / Z_RANGE) * (z - rho)
    else:                             # project: 2 * xyz / w
        gx, gy, gz = 2.0 * x, 2.0 * y, 2.0 * z

    # unnormalize (grid_sample, align_corners=True) + sanitize non-finite
    ux = _sanitize_coord((gx + 1.0) * (0.5 * (w_in - 1)), w_in)
    uy = _sanitize_coord((gy + 1.0) * (0.5 * (h_in - 1)), h_in)
    uz = _sanitize_coord((gz + 1.0) * (0.5 * (d_in - 1)), d_in)

    # ---- tiling ----
    p_tile, d_tile, vmem_budget = _select_tiles(c, d_in, h_in, w_in, p)
    if force_p_tile is not None:
        p_tile = force_p_tile
    if force_d_tile is not None:
        d_tile = force_d_tile
    p_pad = _round_up(p, p_tile)
    n_pt = p_pad // p_tile
    # 2-TC chips (v7x): keep the "parallel" extent >= 2 so neither core idles.
    while n * n_pt < 2 and p_tile > 128 and (p_tile // 2) % 128 == 0:
        p_tile //= 2
        p_pad = _round_up(p, p_tile)
        n_pt = p_pad // p_tile
    n_dt = d_in // d_tile

    coords = jnp.stack([ux, uy, uz], axis=1)                        # (N, 3, P)
    if p_pad != p:
        coords = jnp.pad(coords, ((0, 0), (0, 0), (0, p_pad - p)))
    vox = voxels.reshape(n, c, d_in, hw)        # free reshape, native NCDHW

    if n_dt == 1:
        kernel = _make_resident_kernel(c, d_in, h_in, w_in, p_tile,
                                       mxu_precision)
        grid = (n, n_pt)
        in_specs = [
            pl.BlockSpec((1, 3, p_tile), lambda b, pt: (b, 0, pt)),
            # constant block index across the P-tile axis: voxels stay
            # resident, DMA'd once per batch.
            pl.BlockSpec((1, c, d_in, hw), lambda b, pt: (b, 0, 0, 0)),
        ]
        out_specs = pl.BlockSpec((1, c, p_tile), lambda b, pt: (b, 0, pt))
        scratch = []
        dims = ("parallel", "parallel")
    else:
        kernel = _make_slab_kernel(c, d_in, d_tile, h_in, w_in, p_tile,
                                   mxu_precision)
        grid = (n, n_pt, n_dt)
        in_specs = [
            pl.BlockSpec((1, 3, p_tile), lambda b, pt, dt: (b, 0, pt)),
            pl.BlockSpec((1, c, d_tile, hw), lambda b, pt, dt: (b, 0, dt, 0)),
        ]
        out_specs = pl.BlockSpec((1, c, p_tile), lambda b, pt, dt: (b, 0, pt))
        scratch = [pltpu.VMEM((c, p_tile), jnp.float32),     # accumulator
                   pltpu.VMEM((hw, p_tile), jnp.float32)]    # (y,x) two-hot
        dims = ("parallel", "parallel", "arbitrary")

    out = pl.pallas_call(
        kernel,
        out_shape=jax.ShapeDtypeStruct((n, c, p_pad), voxels.dtype),
        grid_spec=pltpu.PrefetchScalarGridSpec(
            num_scalar_prefetch=0,
            grid=grid,
            in_specs=in_specs,
            out_specs=out_specs,
            scratch_shapes=scratch,
        ),
        compiler_params=pltpu.CompilerParams(
            dimension_semantics=dims,
            vmem_limit_bytes=int(vmem_budget)),
    )(coords, vox)

    if p_pad != p:
        out = out[:, :, :p]
    return out.reshape(n, c, out_depth, out_size, out_size)   # no transposes


# ----------------------------------------------------------------------------
# Module
# ----------------------------------------------------------------------------
class Perspective3d:
    def __init__(self, f=1.875, mxu_precision=jax.lax.Precision.HIGHEST):
        # config file / FLAGS replaced by an explicit deterministic focal length.
        self.z_range = Z_RANGE
        self.f = f
        self.mxu_precision = mxu_precision

    def project(self, voxels, views, out_size=32, out_depth=32, f=None):
        f = self.f if f is None else f
        n = voxels.shape[0]
        wTc = get_camera2world(views, f)
        cgrid = ray2camera_grid(out_size, out_depth, f, n)
        return _transform_and_sample(voxels, cgrid, wTc, f=f, ray_mode=False,
                                     out_depth=out_depth, out_size=out_size,
                                     mxu_precision=self.mxu_precision)

    def backproj(self, voxels, views, out_size=32, out_depth=32, f=None):
        f = self.f if f is None else f
        n = voxels.shape[0]
        cTw = get_world2camera(views, f)
        wgrid = world_grid(n, out_size, out_depth)
        return _transform_and_sample(voxels, wgrid, cTw, f=f, ray_mode=True,
                                     out_depth=out_depth, out_size=out_size,
                                     mxu_precision=self.mxu_precision)

    def __call__(self, voxels, views, out_size=32, out_depth=32, inv=False, f=None):
        f = self.f if f is None else f
        if inv:
            return self.project(voxels, views, out_size, out_depth, f)
        return self.backproj(voxels, views, out_size, out_depth, f)


# ----------------------------------------------------------------------------
# Pure-JAX reference (for correctness check)
# ----------------------------------------------------------------------------
def _grid_sample_3d_ref(vol, grid):
    n, c, d, h, w = vol.shape
    do, ho, wo = grid.shape[1:4]
    pts = grid.reshape(n, -1, 3)
    ux = (pts[..., 0] + 1.0) * 0.5 * (w - 1)
    uy = (pts[..., 1] + 1.0) * 0.5 * (h - 1)
    uz = (pts[..., 2] + 1.0) * 0.5 * (d - 1)
    x0 = jnp.floor(ux); y0 = jnp.floor(uy); z0 = jnp.floor(uz)
    fx, fy, fz = ux - x0, uy - y0, uz - z0
    x0, y0, z0 = x0.astype(jnp.int32), y0.astype(jnp.int32), z0.astype(jnp.int32)
    vol_flat = vol.reshape(n, c, d * h * w)
    acc = jnp.zeros((n, c, pts.shape[1]), vol.dtype)
    for dz in (0, 1):
        for dy in (0, 1):
            for dx in (0, 1):
                xi, yi, zi = x0 + dx, y0 + dy, z0 + dz
                wgt = ((fx if dx else 1.0 - fx) *
                       (fy if dy else 1.0 - fy) *
                       (fz if dz else 1.0 - fz))
                valid = ((xi >= 0) & (xi < w) & (yi >= 0) & (yi < h) &
                         (zi >= 0) & (zi < d))
                wgt = jnp.where(valid, wgt, 0.0)
                xi = jnp.clip(xi, 0, w - 1)
                yi = jnp.clip(yi, 0, h - 1)
                zi = jnp.clip(zi, 0, d - 1)
                lin = zi * (h * w) + yi * w + xi                   # (N, P)
                vals = jax.vmap(lambda vf, li: vf[:, li])(vol_flat, lin)
                acc = acc + wgt[:, None, :] * vals
    return acc.reshape(n, c, do, ho, wo)


def _backproj_ref(voxels, views, out_size, out_depth, f):
    n = voxels.shape[0]
    cTw = get_world2camera(views, f)
    wgrid = world_grid(n, out_size, out_depth).reshape(n, -1, 4)
    cgrid = jnp.einsum("npk,njk->npj", wgrid, cTw,
                       precision=jax.lax.Precision.HIGHEST)
    cgrid = cgrid.reshape(n, out_depth, out_size, out_size, 4)
    xyz = cgrid[..., :3] / cgrid[..., 3:4]
    x, y, z = xyz[..., 0], xyz[..., 1], xyz[..., 2]
    rho = calc_rho(f)
    rgrid = jnp.stack([2.0 * f * x / z,
                       2.0 * f * y / z,
                       2.0 * (z - rho) / Z_RANGE], axis=-1)
    return _grid_sample_3d_ref(voxels, rgrid)


def _project_ref(voxels, views, out_size, out_depth, f):
    n = voxels.shape[0]
    wTc = get_camera2world(views, f)
    cgrid = ray2camera_grid(out_size, out_depth, f, n).reshape(n, -1, 4)
    wgrid = jnp.einsum("npk,njk->npj", cgrid, wTc,
                       precision=jax.lax.Precision.HIGHEST)
    wgrid = wgrid.reshape(n, out_depth, out_size, out_size, 4)
    g3 = 2.0 * wgrid[..., :3] / wgrid[..., 3:4]
    return _grid_sample_3d_ref(voxels, g3)


def _euler_to_homo(angles):
    def one(a):
        cz, sz = jnp.cos(a[0]), jnp.sin(a[0])
        cy, sy = jnp.cos(a[1]), jnp.sin(a[1])
        cx, sx = jnp.cos(a[2]), jnp.sin(a[2])
        rz = jnp.array([[cz, -sz, 0.0], [sz, cz, 0.0], [0.0, 0.0, 1.0]])
        ry = jnp.array([[cy, 0.0, sy], [0.0, 1.0, 0.0], [-sy, 0.0, cy]])
        rx = jnp.array([[1.0, 0.0, 0.0], [0.0, cx, -sx], [0.0, sx, cx]])
        return jnp.eye(4, dtype=jnp.float32).at[:3, :3].set(rz @ ry @ rx)
    return jax.vmap(one)(angles)


if __name__ == "__main__":
    key = jax.random.PRNGKey(0)
    n, c, din = 2, 4, 16
    out_size = out_depth = 8

    k1, k2, k3, k4 = jax.random.split(key, 4)
    voxels = jax.random.normal(k1, (n, c, din, din, din), dtype=jnp.float32)
    scale = 0.8 + 0.4 * jax.random.uniform(k2, (n, 3), dtype=jnp.float32)
    trans = 0.1 * jax.random.normal(k3, (n, 3), dtype=jnp.float32)
    angles = jax.random.uniform(k4, (n, 3), dtype=jnp.float32,
                                minval=-math.pi, maxval=math.pi)
    rot = _euler_to_homo(angles)
    views = (scale, trans, rot)

    model = Perspective3d(f=1.875)

    # backproj path (default forward) -- resident-voxel kernel variant
    out_bp = model(voxels, views, out_size=out_size, out_depth=out_depth, inv=False)
    out_bp = jax.block_until_ready(out_bp)
    assert out_bp.shape == (n, c, out_depth, out_size, out_size)
    ref_bp = _backproj_ref(voxels, views, out_size, out_depth, model.f)
    if not jnp.allclose(out_bp, ref_bp, atol=1e-3, rtol=1e-3):
        err = float(jnp.max(jnp.abs(out_bp - ref_bp)))
        raise AssertionError(f"backproj mismatch vs reference, max abs err {err}")

    # project path (inv=True)
    out_pr = model(voxels, views, out_size=out_size, out_depth=out_depth, inv=True)
    out_pr = jax.block_until_ready(out_pr)
    assert out_pr.shape == (n, c, out_depth, out_size, out_size)
    ref_pr = _project_ref(voxels, views, out_size, out_depth, model.f)
    if not jnp.allclose(out_pr, ref_pr, atol=1e-3, rtol=1e-3):
        err = float(jnp.max(jnp.abs(out_pr - ref_pr)))
        raise AssertionError(f"project mismatch vs reference, max abs err {err}")

    # explicitly exercise the D-slab (reduction-axis) kernel variant as well
    cTw = get_world2camera(views, model.f)
    wgrid = world_grid(n, out_size, out_depth)
    out_slab = _transform_and_sample(voxels, wgrid, cTw, f=model.f, ray_mode=True,
                                     out_depth=out_depth, out_size=out_size,
                                     force_d_tile=8)
    out_slab = jax.block_until_ready(out_slab)
    if not jnp.allclose(out_slab, ref_bp, atol=1e-3, rtol=1e-3):
        err = float(jnp.max(jnp.abs(out_slab - ref_bp)))
        raise AssertionError(f"slab-mode mismatch vs reference, max abs err {err}")

    print("KERNEL_OK")
</pallas_src>

<mosaic_0001>
module attributes {stable_mosaic.version = 11 : i64} {
  func.func @kernel(%arg0: i32, %arg1: i32, %arg2: memref<1x3x512xf32, #tpu.memory_space<vmem>>, %arg3: memref<1x4x16x256xf32, #tpu.memory_space<vmem>>, %arg4: memref<1x4x512xf32, #tpu.memory_space<vmem>>) attributes {dimension_semantics = [#tpu.dimension_semantics<parallel>, #tpu.dimension_semantics<parallel>], iteration_bounds = array<i64: 2, 1>, scalar_prefetch = 0 : i64, scratch_operands = 0 : i64, tpu.core_type = #tpu.core_type<tc>, window_params = [{transform_indices = @transform_0, window_bounds = array<i64: 1, 3, 512>}, {transform_indices = @transform_1, window_bounds = array<i64: 1, 4, 16, 256>}, {transform_indices = @transform_2, window_bounds = array<i64: 1, 4, 512>}]} {
    %c0 = arith.constant 0 : index
    %c0_0 = arith.constant 0 : index
    %c0_1 = arith.constant 0 : index
    %0 = vector.load %arg2[%c0, %c0_0, %c0_1] : memref<1x3x512xf32, #tpu.memory_space<vmem>>, vector<1x1x512xf32>
    %1 = vector.shape_cast %0 : vector<1x1x512xf32> to vector<1x512xf32>
    %c0_2 = arith.constant 0 : index
    %c1 = arith.constant 1 : index
    %c0_3 = arith.constant 0 : index
    %2 = vector.load %arg2[%c0_2, %c1, %c0_3] : memref<1x3x512xf32, #tpu.memory_space<vmem>>, vector<1x1x512xf32>
    %3 = vector.shape_cast %2 : vector<1x1x512xf32> to vector<1x512xf32>
    %c0_4 = arith.constant 0 : index
    %c2 = arith.constant 2 : index
    %c0_5 = arith.constant 0 : index
    %4 = vector.load %arg2[%c0_4, %c2, %c0_5] : memref<1x3x512xf32, #tpu.memory_space<vmem>>, vector<1x1x512xf32>
    %5 = vector.shape_cast %4 : vector<1x1x512xf32> to vector<1x512xf32>
    %6 = math.floor %1 : vector<1x512xf32>
    %7 = arith.subf %1, %6 : vector<1x512xf32>
    %8 = arith.fptosi %6 : vector<1x512xf32> to vector<1x512xi32>
    %c0_i32 = arith.constant 0 : i32
    %9 = vector.broadcast %c0_i32 : i32 to vector<1x512xi32>
    %10 = arith.cmpi sge, %8, %9 : vector<1x512xi32>
    %c16_i32 = arith.constant 16 : i32
    %11 = vector.broadcast %c16_i32 : i32 to vector<1x512xi32>
    %12 = arith.cmpi slt, %8, %11 : vector<1x512xi32>
    %13 = arith.andi %10, %12 : vector<1x512xi1>
    %cst = arith.constant 1.000000e+00 : f32
    %14 = vector.broadcast %cst : f32 to vector<1x512xf32>
    %15 = arith.subf %14, %7 : vector<1x512xf32>
    %cst_6 = arith.constant 0.000000e+00 : f32
    %16 = vector.broadcast %cst_6 : f32 to vector<1x512xf32>
    %17 = arith.select %13, %15, %16 : vector<1x512xi1>, vector<1x512xf32>
    %c1_i32 = arith.constant 1 : i32
    %18 = vector.broadcast %c1_i32 : i32 to vector<1x512xi32>
    %19 = arith.addi %8, %18 : vector<1x512xi32>
    %c0_i32_7 = arith.constant 0 : i32
    %20 = vector.broadcast %c0_i32_7 : i32 to vector<1x512xi32>
    %21 = arith.cmpi sge, %19, %20 : vector<1x512xi32>
    %c1_i32_8 = arith.constant 1 : i32
    %22 = vector.broadcast %c1_i32_8 : i32 to vector<1x512xi32>
    %23 = arith.addi %8, %22 : vector<1x512xi32>
    %c16_i32_9 = arith.constant 16 : i32
    %24 = vector.broadcast %c16_i32_9 : i32 to vector<1x512xi32>
    %25 = arith.cmpi slt, %23, %24 : vector<1x512xi32>
    %26 = arith.andi %21, %25 : vector<1x512xi1>
    %cst_10 = arith.constant 0.000000e+00 : f32
    %27 = vector.broadcast %cst_10 : f32 to vector<1x512xf32>
    %28 = arith.select %26, %7, %27 : vector<1x512xi1>, vector<1x512xf32>
    %29 = tpu.iota {dimensions = array<i32: 0>} : vector<16x512xi32>
    %c0_i32_11 = arith.constant 0 : i32
    %30 = vector.broadcast %c0_i32_11 : i32 to vector<16x512xi32>
    %31 = arith.addi %29, %30 : vector<16x512xi32>
    %32 = vector.broadcast %8 : vector<1x512xi32> to vector<16x512xi32>
    %33 = arith.cmpi eq, %31, %32 : vector<16x512xi32>
    %cst_12 = arith.constant 0.000000e+00 : f32
    %34 = vector.shape_cast %17 : vector<1x512xf32> to vector<1x512xf32>
    %35 = vector.broadcast %34 : vector<1x512xf32> to vector<16x512xf32>
    %36 = vector.broadcast %cst_12 : f32 to vector<16x512xf32>
    %37 = arith.select %33, %35, %36 : vector<16x512xi1>, vector<16x512xf32>
    %c1_i32_13 = arith.constant 1 : i32
    %38 = vector.broadcast %c1_i32_13 : i32 to vector<1x512xi32>
    %39 = arith.addi %8, %38 : vector<1x512xi32>
    %40 = vector.broadcast %39 : vector<1x512xi32> to vector<16x512xi32>
    %41 = arith.cmpi eq, %31, %40 : vector<16x512xi32>
    %cst_14 = arith.constant 0.000000e+00 : f32
    %42 = vector.shape_cast %28 : vector<1x512xf32> to vector<1x512xf32>
    %43 = vector.broadcast %42 : vector<1x512xf32> to vector<16x512xf32>
    %44 = vector.broadcast %cst_14 : f32 to vector<16x512xf32>
    %45 = arith.select %41, %43, %44 : vector<16x512xi1>, vector<16x512xf32>
    %46 = arith.addf %37, %45 : vector<16x512xf32>
    %47 = math.floor %3 : vector<1x512xf32>
    %48 = arith.subf %3, %47 : vector<1x512xf32>
    %49 = arith.fptosi %47 : vector<1x512xf32> to vector<1x512xi32>
    %c0_i32_15 = arith.constant 0 : i32
    %50 = vector.broadcast %c0_i32_15 : i32 to vector<1x512xi32>
    %51 = arith.cmpi sge, %49, %50 : vector<1x512xi32>
    %c16_i32_16 = arith.constant 16 : i32
    %52 = vector.broadcast %c16_i32_16 : i32 to vector<1x512xi32>
    %53 = arith.cmpi slt, %49, %52 : vector<1x512xi32>
    %54 = arith.andi %51, %53 : vector<1x512xi1>
    %cst_17 = arith.constant 1.000000e+00 : f32
    %55 = vector.broadcast %cst_17 : f32 to vector<1x512xf32>
    %56 = arith.subf %55, %48 : vector<1x512xf32>
    %cst_18 = arith.constant 0.000000e+00 : f32
    %57 = vector.broadcast %cst_18 : f32 to vector<1x512xf32>
    %58 = arith.select %54, %56, %57 : vector<1x512xi1>, vector<1x512xf32>
    %c1_i32_19 = arith.constant 1 : i32
    %59 = vector.broadcast %c1_i32_19 : i32 to vector<1x512xi32>
    %60 = arith.addi %49, %59 : vector<1x512xi32>
    %c0_i32_20 = arith.constant 0 : i32
    %61 = vector.broadcast %c0_i32_20 : i32 to vector<1x512xi32>
    %62 = arith.cmpi sge, %60, %61 : vector<1x512xi32>
    %c1_i32_21 = arith.constant 1 : i32
    %63 = vector.broadcast %c1_i32_21 : i32 to vector<1x512xi32>
    %64 = arith.addi %49, %63 : vector<1x512xi32>
    %c16_i32_22 = arith.constant 16 : i32
    %65 = vector.broadcast %c16_i32_22 : i32 to vector<1x512xi32>
    %66 = arith.cmpi slt, %64, %65 : vector<1x512xi32>
    %67 = arith.andi %62, %66 : vector<1x512xi1>
    %cst_23 = arith.constant 0.000000e+00 : f32
    %68 = vector.broadcast %cst_23 : f32 to vector<1x512xf32>
    %69 = arith.select %67, %48, %68 : vector<1x512xi1>, vector<1x512xf32>
    %70 = tpu.iota {dimensions = array<i32: 0>} : vector<16x512xi32>
    %c0_i32_24 = arith.constant 0 : i32
    %71 = vector.broadcast %c0_i32_24 : i32 to vector<16x512xi32>
    %72 = arith.addi %70, %71 : vector<16x512xi32>
    %73 = vector.broadcast %49 : vector<1x512xi32> to vector<16x512xi32>
    %74 = arith.cmpi eq, %72, %73 : vector<16x512xi32>
    %cst_25 = arith.constant 0.000000e+00 : f32
    %75 = vector.shape_cast %58 : vector<1x512xf32> to vector<1x512xf32>
    %76 = vector.broadcast %75 : vector<1x512xf32> to vector<16x512xf32>
    %77 = vector.broadcast %cst_25 : f32 to vector<16x512xf32>
    %78 = arith.select %74, %76, %77 : vector<16x512xi1>, vector<16x512xf32>
    %c1_i32_26 = arith.constant 1 : i32
    %79 = vector.broadcast %c1_i32_26 : i32 to vector<1x512xi32>
    %80 = arith.addi %49, %79 : vector<1x512xi32>
    %81 = vector.broadcast %80 : vector<1x512xi32> to vector<16x512xi32>
    %82 = arith.cmpi eq, %72, %81 : vector<16x512xi32>
    %cst_27 = arith.constant 0.000000e+00 : f32
    %83 = vector.shape_cast %69 : vector<1x512xf32> to vector<1x512xf32>
    %84 = vector.broadcast %83 : vector<1x512xf32> to vector<16x512xf32>
    %85 = vector.broadcast %cst_27 : f32 to vector<16x512xf32>
    %86 = arith.select %82, %84, %85 : vector<16x512xi1>, vector<16x512xf32>
    %87 = arith.addf %78, %86 : vector<16x512xf32>
    %88 = math.floor %5 : vector<1x512xf32>
    %89 = arith.subf %5, %88 : vector<1x512xf32>
    %90 = arith.fptosi %88 : vector<1x512xf32> to vector<1x512xi32>
    %c0_i32_28 = arith.constant 0 : i32
    %91 = vector.broadcast %c0_i32_28 : i32 to vector<1x512xi32>
    %92 = arith.cmpi sge, %90, %91 : vector<1x512xi32>
    %c16_i32_29 = arith.constant 16 : i32
    %93 = vector.broadcast %c16_i32_29 : i32 to vector<1x512xi32>
    %94 = arith.cmpi slt, %90, %93 : vector<1x512xi32>
    %95 = arith.andi %92, %94 : vector<1x512xi1>
    %cst_30 = arith.constant 1.000000e+00 : f32
    %96 = vector.broadcast %cst_30 : f32 to vector<1x512xf32>
    %97 = arith.subf %96, %89 : vector<1x512xf32>
    %cst_31 = arith.constant 0.000000e+00 : f32
    %98 = vector.broadcast %cst_31 : f32 to vector<1x512xf32>
    %99 = arith.select %95, %97, %98 : vector<1x512xi1>, vector<1x512xf32>
    %c1_i32_32 = arith.constant 1 : i32
    %100 = vector.broadcast %c1_i32_32 : i32 to vector<1x512xi32>
    %101 = arith.addi %90, %100 : vector<1x512xi32>
    %c0_i32_33 = arith.constant 0 : i32
    %102 = vector.broadcast %c0_i32_33 : i32 to vector<1x512xi32>
    %103 = arith.cmpi sge, %101, %102 : vector<1x512xi32>
    %c1_i32_34 = arith.constant 1 : i32
    %104 = vector.broadcast %c1_i32_34 : i32 to vector<1x512xi32>
    %105 = arith.addi %90, %104 : vector<1x512xi32>
    %c16_i32_35 = arith.constant 16 : i32
    %106 = vector.broadcast %c16_i32_35 : i32 to vector<1x512xi32>
    %107 = arith.cmpi slt, %105, %106 : vector<1x512xi32>
    %108 = arith.andi %103, %107 : vector<1x512xi1>
    %cst_36 = arith.constant 0.000000e+00 : f32
    %109 = vector.broadcast %cst_36 : f32 to vector<1x512xf32>
    %110 = arith.select %108, %89, %109 : vector<1x512xi1>, vector<1x512xf32>
    %111 = tpu.iota {dimensions = array<i32: 0>} : vector<16x512xi32>
    %c0_i32_37 = arith.constant 0 : i32
    %112 = vector.broadcast %c0_i32_37 : i32 to vector<16x512xi32>
    %113 = arith.addi %111, %112 : vector<16x512xi32>
    %114 = vector.broadcast %90 : vector<1x512xi32> to vector<16x512xi32>
    %115 = arith.cmpi eq, %113, %114 : vector<16x512xi32>
    %cst_38 = arith.constant 0.000000e+00 : f32
    %116 = vector.shape_cast %99 : vector<1x512xf32> to vector<1x512xf32>
    %117 = vector.broadcast %116 : vector<1x512xf32> to vector<16x512xf32>
    %118 = vector.broadcast %cst_38 : f32 to vector<16x512xf32>
    %119 = arith.select %115, %117, %118 : vector<16x512xi1>, vector<16x512xf32>
    %c1_i32_39 = arith.constant 1 : i32
    %120 = vector.broadcast %c1_i32_39 : i32 to vector<1x512xi32>
    %121 = arith.addi %90, %120 : vector<1x512xi32>
    %122 = vector.broadcast %121 : vector<1x512xi32> to vector<16x512xi32>
    %123 = arith.cmpi eq, %113, %122 : vector<16x512xi32>
    %cst_40 = arith.constant 0.000000e+00 : f32
    %124 = vector.shape_cast %110 : vector<1x512xf32> to vector<1x512xf32>
    %125 = vector.broadcast %124 : vector<1x512xf32> to vector<16x512xf32>
    %126 = vector.broadcast %cst_40 : f32 to vector<16x512xf32>
    %127 = arith.select %123, %125, %126 : vector<16x512xi1>, vector<16x512xf32>
    %128 = arith.addf %119, %127 : vector<16x512xf32>
    %129 = vector.shape_cast %87 : vector<16x512xf32> to vector<16x1x512xf32>
    %130 = vector.shape_cast %46 : vector<16x512xf32> to vector<1x16x512xf32>
    %131 = vector.broadcast %129 : vector<16x1x512xf32> to vector<16x16x512xf32>
    %132 = vector.broadcast %130 : vector<1x16x512xf32> to vector<16x16x512xf32>
    %133 = arith.mulf %131, %132 : vector<16x16x512xf32>
    %134 = vector.shape_cast %133 : vector<16x16x512xf32> to vector<256x512xf32>
    %c0_41 = arith.constant 0 : index
    %c0_42 = arith.constant 0 : index
    %c0_43 = arith.constant 0 : index
    %c0_44 = arith.constant 0 : index
    %135 = vector.load %arg3[%c0_41, %c0_42, %c0_43, %c0_44] : memref<1x4x16x256xf32, #tpu.memory_space<vmem>>, vector<1x4x16x256xf32>
    %136 = vector.shape_cast %135 : vector<1x4x16x256xf32> to vector<4x16x256xf32>
    %137 = vector.shape_cast %136 : vector<4x16x256xf32> to vector<64x256xf32>
    %cst_45 = arith.constant dense<0.000000e+00> : vector<64x512xf32>
    %138 = tpu.matmul %137, %134, %cst_45 {dimension_numbers = #tpu.dot_dimension_numbers<[1], [0], [0], [1], [0, 0, 1, 1], [], []>, precision = #tpu.contract_precision<fp32>} : vector<64x256xf32>, vector<256x512xf32>, vector<64x512xf32> -> vector<64x512xf32>
    %139 = vector.shape_cast %138 : vector<64x512xf32> to vector<4x16x512xf32>
    %140 = vector.shape_cast %128 : vector<16x512xf32> to vector<1x16x512xf32>
    %141 = vector.broadcast %140 : vector<1x16x512xf32> to vector<4x16x512xf32>
    %142 = arith.mulf %139, %141 : vector<4x16x512xf32>
    %cst_46 = arith.constant dense<0.000000e+00> : vector<4x512xf32>
    %143 = vector.multi_reduction <add>, %142, %cst_46 [1] : vector<4x16x512xf32> to vector<4x512xf32>
    %c0_47 = arith.constant 0 : index
    %c0_48 = arith.constant 0 : index
    %c0_49 = arith.constant 0 : index
    %144 = vector.load %arg4[%c0_47, %c0_48, %c0_49] : memref<1x4x512xf32, #tpu.memory_space<vmem>>, vector<1x4x512xf32>
    %145 = vector.shape_cast %144 : vector<1x4x512xf32> to vector<4x512xf32>
    %146 = vector.shape_cast %143 : vector<4x512xf32> to vector<1x4x512xf32>
    tpu.vector_store %arg4[%c0_47, %c0_48, %c0_49], %146 {strides = array<i32>} : memref<1x4x512xf32, #tpu.memory_space<vmem>>, vector<1x4x512xf32>,
    return
  }
  func.func @transform_0(%arg0: i32, %arg1: i32) -> (i32, i32, i32) {
    %c0_i32 = arith.constant 0 : i32
    %c0_i32_0 = arith.constant 0 : i32
    return %arg0, %c0_i32, %arg1 : i32, i32, i32
  }
  func.func @transform_1(%arg0: i32, %arg1: i32) -> (i32, i32, i32, i32) {
    %c0_i32 = arith.constant 0 : i32
    %c0_i32_0 = arith.constant 0 : i32
    %c0_i32_1 = arith.constant 0 : i32
    %c0_i32_2 = arith.constant 0 : i32
    return %arg0, %c0_i32, %c0_i32_0, %c0_i32_1 : i32, i32, i32, i32
  }
  func.func @transform_2(%arg0: i32, %arg1: i32) -> (i32, i32, i32) {
    %c0_i32 = arith.constant 0 : i32
    %c0_i32_0 = arith.constant 0 : i32
    return %arg0, %c0_i32, %arg1 : i32, i32, i32
  }
}

</mosaic_0001>

<llo_original>
// kernel: tpu_custom_call.1
$region0: #{tpu_custom_call.1}
  #allocation0 [shape = 'u32[]', space=smem, size = 0x4, offset = 0x4, fixed_abs, tag = 'smem constant byte address 0x4 - core index']
  #allocation1 [shape = 'u32[72,128]{1,0:T(1,128)}', space=vmem, size = 0x9000, scoped, tag = 'internal scratch']
  %s0 = inlined_call_operand.vmem [shape: f32[2,3,512], index: 0, kind: input, shape index: {}]
  %s1 = inlined_call_operand.hbm [shape: f32[2,4,16,256], index: 1, kind: input, shape index: {}]
  %s2 = inlined_call_operand.hbm [shape: f32[2,4,512], index: 2, kind: output, shape index: {}]
  %s3 = sld [smem:[#allocation0]]
  $region45: #{tpu_custom_call.1} parent=0
    _
  %s5 = ssub.s32 1, %s3
  %s6 = scalar_select 0, %s5, %s3
  $region1: #{tpu_custom_call.1} parent=0
    #allocation2 [shape = 'u8[131072]{0}', space=vmem, size = 0x20000, scoped, tag = 'input window, operand 1']
    #allocation3 [shape = 's32[2]{0}', space=sflag, size = 0x8, scoped, tag = 'scoped memory for tpu_custom_call.1']
    #allocation4 [shape = 's32[2]{0}', space=sflag, size = 0x8, scoped, tag = 'scoped memory for tpu_custom_call.1']
    #allocation5 [shape = 'u8[16384]{0}', space=vmem, size = 0x4000, scoped, tag = 'output window, operand 0']
    %7 = vsyncpa [#allocation3], 0
    %s8 = scalar_lea.sflag [#allocation3], 1
    %9 = vsyncpa %s8, 0
    %10 = vsyncpa [#allocation4], 0
    %s11 = scalar_lea.sflag [#allocation4], 1
    %12 = vsyncpa %s11, 0
    loop: start=0, step=1, limit=4
    $region2: #{tpu_custom_call.1} parent=1 // loop_pre_header
      _
    $region3: #{tpu_custom_call.1} parent=1 // loop_header
      %s14 = sphi 0, %s18
      %p15 = scmp.ge.s32.totalorder %s14, 4
      %s21 = sphi 0, %s33
      %s22 = sphi 0, %s29
      %s23 = sphi 0, %s21
      %s24 = sphi 0, %s22
      %s25 = sphi 0, %s23
      %s26 = sphi 0, %s24
      %s38 = sphi 0, %s40
      %s41 = sphi 0, %s38
      %s42 = sphi 0, %s41
      %s58 = sphi 0, %s42
      %s64 = sphi 0, %s66
      %s67 = sphi 0, %s64
      %s68 = sphi 0, %s67
      %s84 = sphi 0, %s68
      %s92 = sphi 0, %s94
      %s95 = sphi 0, %s92
      %s96 = sphi 0, %s95
      %s112 = sphi 0, %s96
    $region4: #{tpu_custom_call.1} parent=1 // loop_header_branch
      %17 = sbr.rel (%p15) target = $region8
    $region5: #{tpu_custom_call.1} parent=1 // loop_body
      %s19 = ssub.s32 %s14, 1
      %s20 = ssub.s32 %s14, 2
      %s27 = sadd.s32 1, %s22
      %p28 = scmp.ge.s32.totalorder %s27, 1
      %s29 = scalar_select %p28, 0, %s27
      %s30 = sadd.s32 1, %s21
      %s31 = scalar_select %p28, %s30, %s21
      %p32 = scmp.ge.s32.totalorder %s31, 2
      %s33 = scalar_select %p32, 0, %s31
      %s34 = ssub.s32 %s21, %s33
      %s35 = ssub.s32 %s22, %s29
      %s36 = sor.u32 %s34, %s35
      %p37 = scmp.eq.s32.totalorder %s36, 0
      %s39 = sadd.s32 %s38, 1
      %s40 = scalar_select %p37, %s38, %s39
      %p43 = pneg %p37
      %p44 = scmp.eq.s32.totalorder %s14, 1
      %p45 = por %p43, %p44
      %p46 = scmp.ne.s32.totalorder %s38, %s41
      %p47 = scmp.eq.s32.totalorder %s14, 0
      %p48 = por %p46, %p47
      %p49 = scmp.ne.s32.totalorder %s38, %s41
      %p50 = scmp.eq.s32.totalorder %s19, 1
      %p51 = por %p49, %p50
      %p52 = scmp.ne.s32.totalorder %s41, %s42
      %p53 = scmp.eq.s32.totalorder %s19, 0
      %p54 = por %p52, %p53
      %p55 = scmp.ne.s32.totalorder %s41, %s42
      %p56 = scmp.eq.s32.totalorder %s20, 1
      %p57 = por %p55, %p56
      %p59 = scmp.ne.s32.totalorder %s42, %s58
      %p60 = scmp.eq.s32.totalorder %s20, 0
      %p61 = por %p59, %p60
      %s62 = ssub.s32 %s21, %s33
      %p63 = scmp.eq.s32.totalorder %s62, 0
      %s65 = sadd.s32 %s64, 1
      %s66 = scalar_select %p63, %s64, %s65
      %p69 = pneg %p63
      %p70 = scmp.eq.s32.totalorder %s14, 1
      %p71 = por %p69, %p70
      %p72 = scmp.ne.s32.totalorder %s64, %s67
      %p73 = scmp.eq.s32.totalorder %s14, 0
      %p74 = por %p72, %p73
      %p75 = scmp.ne.s32.totalorder %s64, %s67
      %p76 = scmp.eq.s32.totalorder %s19, 1
      %p77 = por %p75, %p76
      %p78 = scmp.ne.s32.totalorder %s67, %s68
      %p79 = scmp.eq.s32.totalorder %s19, 0
      %p80 = por %p78, %p79
      %p81 = scmp.ne.s32.totalorder %s67, %s68
      %p82 = scmp.eq.s32.totalorder %s20, 1
      %p83 = por %p81, %p82
      %p85 = scmp.ne.s32.totalorder %s68, %s84
      %p86 = scmp.eq.s32.totalorder %s20, 0
      %p87 = por %p85, %p86
      %s88 = ssub.s32 %s21, %s33
      %s89 = ssub.s32 %s22, %s29
      %s90 = sor.u32 %s88, %s89
      %p91 = scmp.eq.s32.totalorder %s90, 0
      %s93 = sadd.s32 %s92, 1
      %s94 = scalar_select %p91, %s92, %s93
      %p97 = pneg %p91
      %p98 = scmp.eq.s32.totalorder %s14, 1
      %p99 = por %p97, %p98
      %p100 = scmp.ne.s32.totalorder %s92, %s95
      %p101 = scmp.eq.s32.totalorder %s14, 0
      %p102 = por %p100, %p101
      %p103 = scmp.ne.s32.totalorder %s92, %s95
      %p104 = scmp.eq.s32.totalorder %s19, 1
      %p105 = por %p103, %p104
      %p106 = scmp.ne.s32.totalorder %s95, %s96
      %p107 = scmp.eq.s32.totalorder %s19, 0
      %p108 = por %p106, %p107
      %p109 = scmp.ne.s32.totalorder %s95, %s96
      %p110 = scmp.eq.s32.totalorder %s20, 1
      %p111 = por %p109, %p110
      %p113 = scmp.ne.s32.totalorder %s96, %s112
      %p114 = scmp.eq.s32.totalorder %s20, 0
      %p115 = por %p113, %p114
      %p116 = scmp.le.s32.totalorder 1, %s14
      %p117 = scmp.lt.s32.totalorder %s14, 3
      %p118 = pnand %p116, %p117
      %p119 = pneg %p118
      // Predicated region
      $region9: #{tpu_custom_call.1} parent=5 // pred_check
        _
      $region10: #{tpu_custom_call.1} parent=5 // pred_check_branch
        %121 = sbr.rel (%p118) target = $region12
      $region11: #{tpu_custom_call.1} parent=5 // pred_region
        %s122 = ssub.s32 %s14, 1
      $region12: #{tpu_custom_call.1} parent=5 // pred_fallthru
        _
      %p123 = scmp.lt.s32.totalorder %s14, 2
      // Predicated region
      $region13: #{tpu_custom_call.1} parent=5 // pred_check
        %p124 = pneg %p123
      $region14: #{tpu_custom_call.1} parent=5 // pred_check_branch
        %126 = sbr.rel (%p124) target = $region16
      $region15: #{tpu_custom_call.1} parent=5 // pred_region
        // Predicated region
        $region17: #{tpu_custom_call.1} parent=15 // pred_check
          %p127 = pneg %p48
        $region18: #{tpu_custom_call.1} parent=15 // pred_check_branch
          %129 = sbr.rel (%p127) target = $region20
        $region19: #{tpu_custom_call.1} parent=15 // pred_region
          %s130 = smul.u32 4, %s22
          %p131 = scmp.lt.s32.totalorder %s21, 1
          %s132 = scalar_select %p131, %s21, 1
          %p133 = scmp.lt.s32.totalorder %s130, 3
          %s134 = scalar_select %p133, %s130, 3
          %s135 = smul.addr %s132, 4
          %s136 = sadd.s32 %s134, %s135
          %s137 = smul.addr %s136, 4
          %s138 = scalar_lea.vmem %s0, %s137
          %s139 = smul.u32 4, %s22
        $region20: #{tpu_custom_call.1} parent=15 // pred_fallthru
          _
        // Predicated region
        $region21: #{tpu_custom_call.1} parent=15 // pred_check
          %p140 = pneg %p74
        $region22: #{tpu_custom_call.1} parent=15 // pred_check_branch
          %142 = sbr.rel (%p140) target = $region24
        $region23: #{tpu_custom_call.1} parent=15 // pred_region
          %s143 = sand.u32 %s64, 1
          %s144 = scalar_lea.sflag [#allocation3], %s143
          %s145 = sand.u32 %s64, 1
          %s146 = smul.addr %s145, 128
          %s147 = scalar_lea.vmem [#allocation2], %s146
          %149 = vsyncadd %s144, 0
          %s150 = smul.addr %s21, 16
          %s151 = smul.addr %s150, 8
          %s152 = scalar_lea.hbm %s1, %s151
          %s153 = sshll.u32 %s152, 4
          %s154 = int_to_ptr.hbm [resolvable:$true] %s153
          %s155 = sshll.u32 %s147, 4
          %s156 = int_to_ptr.vmem [resolvable:$true] %s155
          %161 = dma.hbm_to_vmem [thread:$0]  %s154, 2048, %s156, %s144, 256, 256, 16
        $region24: #{tpu_custom_call.1} parent=15 // pred_fallthru
          _
      $region16: #{tpu_custom_call.1} parent=5 // pred_fallthru
        _
      %p162 = scmp.le.s32.totalorder 1, %s14
      %p163 = scmp.lt.s32.totalorder %s14, 3
      %p164 = pnand %p162, %p163
      %p165 = pneg %p164
      // Predicated region
      $region25: #{tpu_custom_call.1} parent=5 // pred_check
        _
      $region26: #{tpu_custom_call.1} parent=5 // pred_check_branch
        %167 = sbr.rel (%p164) target = $region28
      $region27: #{tpu_custom_call.1} parent=5 // pred_region
        %s168 = ssub.s32 %s14, 1
        %s169 = sand.u32 %s67, 1
        %s170 = scalar_lea.sflag [#allocation3], %s169
        %s171 = sand.u32 %s67, 1
        %s172 = smul.addr %s171, 128
        %s173 = scalar_lea.vmem [#allocation2], %s172
        // Predicated region
        $region29: #{tpu_custom_call.1} parent=27 // pred_check
          %p174 = pneg %p80
        $region30: #{tpu_custom_call.1} parent=27 // pred_check_branch
          %176 = sbr.rel (%p174) target = $region32
        $region31: #{tpu_custom_call.1} parent=27 // pred_region
          %178 = dma.done %s170, 2048
        $region32: #{tpu_custom_call.1} parent=27 // pred_fallthru
          _
        %s179 = smul.u32 4, %s24
        %p180 = scmp.lt.s32.totalorder %s23, 1
        %s181 = scalar_select %p180, %s23, 1
        %p182 = scmp.lt.s32.totalorder %s179, 3
        %s183 = scalar_select %p182, %s179, 3
        %s184 = smul.addr %s181, 4
        %s185 = sadd.s32 %s183, %s184
        %s186 = smul.addr %s185, 4
        %s187 = scalar_lea.vmem %s0, %s186
        %p188 = pneg %p54
        %p189 = pneg %p51
        %s190 = sand.u32 %s67, 1
        %s191 = scalar_lea.sflag [#allocation3], %s190
        %s192 = sand.u32 %s67, 1
        %s193 = smul.addr %s192, 128
        %s194 = scalar_lea.vmem [#allocation2], %s193
        %p195 = pneg %p80
        %p196 = pneg %p77
        %p197 = pneg %p108
        %p198 = pneg %p105
        %s199 = sand.u32 %s95, 1
        %s200 = scalar_lea.sflag [#allocation4], %s199
        %s201 = sand.u32 %s95, 1
        %s202 = smul.addr %s201, 16
        %s203 = scalar_lea.vmem [#allocation5], %s202
        %s204 = smul.u32 4, %s24
        %p205 = scmp.lt.s32.totalorder %s23, 1
        %s206 = scalar_select %p205, %s23, 1
        %p207 = scmp.lt.s32.totalorder %s204, 3
        %s208 = scalar_select %p207, %s204, 3
        %s209 = smul.addr %s206, 4
        %s210 = sadd.s32 %s208, %s209
        %s211 = smul.addr %s210, 4
        %s212 = scalar_lea.vmem %s0, %s211
        %s213 = smul.u32 4, %s24
        %s214 = smul.u32 4, %s24
        %v215 = vld [vmem:[%s212] ss:$4 sm:$0xf]
        %s216 = scalar_lea.vmem %s212, 1
        %v217 = vld [vmem:[%s216] ss:$4 sm:$0xf]
        %s218 = scalar_lea.vmem %s212, 2
        %v219 = vld [vmem:[%s218] ss:$4 sm:$0xf]
        %v220 = vfloor.f32 %v215
        %v221 = vsub.f32 %v215, %v220
        %v222 = vcvt.f32.s32.to.zero.pseudo %v220
        %vm223 = vcmp.ge.s32.totalorder %v222, 0
        %vm224 = vcmp.lt.s32.totalorder %v222, 16
        %vm225 = vmand %vm223, %vm224
        %v226 = vsub.f32 1.0, %v221
        %v227 = vsel %vm225, %v226, 0.0
        %v228 = vadd.s32 %v222, 1
        %vm229 = vcmp.ge.s32.totalorder %v228, 0
        %vm230 = vcmp.lt.s32.totalorder %v228, 16
        %vm231 = vmand %vm229, %vm230
        %v232 = vsel %vm231, %v221, 0.0
        %v233 = vlaneseq
        %v234 = vshrl.u32 %v233, 7
        %v235 = vadd.s32 %v234, 8
        %v236 = vperm.slane %v222, 0
        %v237 = vperm.slane %v222, 1
        %v238 = vperm.slane %v222, 2
        %v239 = vperm.slane %v222, 3
        %vm240 = vcmp.eq.s32.totalorder %v234, %v236
        %vm241 = vcmp.eq.s32.totalorder %v234, %v237
        %vm242 = vcmp.eq.s32.totalorder %v234, %v238
        %vm243 = vcmp.eq.s32.totalorder %v234, %v239
        %vm244 = vcmp.eq.s32.totalorder %v235, %v236
        %vm245 = vcmp.eq.s32.totalorder %v235, %v237
        %vm246 = vcmp.eq.s32.totalorder %v235, %v238
        %vm247 = vcmp.eq.s32.totalorder %v235, %v239
        %v249 = vperm.slane %v227, 0
        %v250 = vperm.slane %v227, 1
        %v251 = vperm.slane %v227, 2
        %v252 = vperm.slane %v227, 3
        %v257 = vsel %vm240, %v249, 0.0
        %v258 = vsel %vm241, %v250, 0.0
        %v259 = vsel %vm242, %v251, 0.0
        %v260 = vsel %vm243, %v252, 0.0
        %v261 = vsel %vm244, %v249, 0.0
        %v262 = vsel %vm245, %v250, 0.0
        %v263 = vsel %vm246, %v251, 0.0
        %v264 = vsel %vm247, %v252, 0.0
        %v265 = vperm.slane %v228, 0
        %v266 = vperm.slane %v228, 1
        %v267 = vperm.slane %v228, 2
        %v268 = vperm.slane %v228, 3
        %vm269 = vcmp.eq.s32.totalorder %v234, %v265
        %vm270 = vcmp.eq.s32.totalorder %v234, %v266
        %vm271 = vcmp.eq.s32.totalorder %v234, %v267
        %vm272 = vcmp.eq.s32.totalorder %v234, %v268
        %vm273 = vcmp.eq.s32.totalorder %v235, %v265
        %vm274 = vcmp.eq.s32.totalorder %v235, %v266
        %vm275 = vcmp.eq.s32.totalorder %v235, %v267
        %vm276 = vcmp.eq.s32.totalorder %v235, %v268
        %v278 = vperm.slane %v232, 0
        %v279 = vperm.slane %v232, 1
        %v280 = vperm.slane %v232, 2
        %v281 = vperm.slane %v232, 3
        %v286 = vsel %vm269, %v278, 0.0
        %v287 = vsel %vm270, %v279, 0.0
        %v288 = vsel %vm271, %v280, 0.0
        %v289 = vsel %vm272, %v281, 0.0
        %v290 = vsel %vm273, %v278, 0.0
        %v291 = vsel %vm274, %v279, 0.0
        %v292 = vsel %vm275, %v280, 0.0
        %v293 = vsel %vm276, %v281, 0.0
        %v294 = vadd.f32 %v257, %v286
        %v295 = vadd.f32 %v258, %v287
        %v296 = vadd.f32 %v259, %v288
        %v297 = vadd.f32 %v260, %v289
        %v298 = vadd.f32 %v261, %v290
        %v299 = vadd.f32 %v262, %v291
        %v300 = vadd.f32 %v263, %v292
        %v301 = vadd.f32 %v264, %v293
        %v302 = vfloor.f32 %v217
        %v303 = vsub.f32 %v217, %v302
        %v304 = vcvt.f32.s32.to.zero.pseudo %v302
        %vm305 = vcmp.ge.s32.totalorder %v304, 0
        %vm306 = vcmp.lt.s32.totalorder %v304, 16
        %vm307 = vmand %vm305, %vm306
        %v308 = vsub.f32 1.0, %v303
        %v309 = vsel %vm307, %v308, 0.0
        %v310 = vadd.s32 %v304, 1
        %vm311 = vcmp.ge.s32.totalorder %v310, 0
        %vm312 = vcmp.lt.s32.totalorder %v310, 16
        %vm313 = vmand %vm311, %vm312
        %v314 = vsel %vm313, %v303, 0.0
        %v315 = vperm.slane %v304, 0
        %v316 = vperm.slane %v304, 1
        %v317 = vperm.slane %v304, 2
        %v318 = vperm.slane %v304, 3
        %vm319 = vcmp.eq.s32.totalorder %v234, %v315
        %vm320 = vcmp.eq.s32.totalorder %v234, %v316
        %vm321 = vcmp.eq.s32.totalorder %v234, %v317
        %vm322 = vcmp.eq.s32.totalorder %v234, %v318
        %vm323 = vcmp.eq.s32.totalorder %v235, %v315
        %vm324 = vcmp.eq.s32.totalorder %v235, %v316
        %vm325 = vcmp.eq.s32.totalorder %v235, %v317
        %vm326 = vcmp.eq.s32.totalorder %v235, %v318
        %v328 = vperm.slane %v309, 0
        %v329 = vperm.slane %v309, 1
        %v330 = vperm.slane %v309, 2
        %v331 = vperm.slane %v309, 3
        %v336 = vsel %vm319, %v328, 0.0
        %v337 = vsel %vm320, %v329, 0.0
        %v338 = vsel %vm321, %v330, 0.0
        %v339 = vsel %vm322, %v331, 0.0
        %v340 = vsel %vm323, %v328, 0.0
        %v341 = vsel %vm324, %v329, 0.0
        %v342 = vsel %vm325, %v330, 0.0
        %v343 = vsel %vm326, %v331, 0.0
        %v344 = vperm.slane %v310, 0
        %v345 = vperm.slane %v310, 1
        %v346 = vperm.slane %v310, 2
        %v347 = vperm.slane %v310, 3
        %vm348 = vcmp.eq.s32.totalorder %v234, %v344
        %vm349 = vcmp.eq.s32.totalorder %v234, %v345
        %vm350 = vcmp.eq.s32.totalorder %v234, %v346
        %vm351 = vcmp.eq.s32.totalorder %v234, %v347
        %vm352 = vcmp.eq.s32.totalorder %v235, %v344
        %vm353 = vcmp.eq.s32.totalorder %v235, %v345
        %vm354 = vcmp.eq.s32.totalorder %v235, %v346
        %vm355 = vcmp.eq.s32.totalorder %v235, %v347
        %v357 = vperm.slane %v314, 0
        %v358 = vperm.slane %v314, 1
        %v359 = vperm.slane %v314, 2
        %v360 = vperm.slane %v314, 3
        %v365 = vsel %vm348, %v357, 0.0
        %v366 = vsel %vm349, %v358, 0.0
        %v367 = vsel %vm350, %v359, 0.0
        %v368 = vsel %vm351, %v360, 0.0
        %v369 = vsel %vm352, %v357, 0.0
        %v370 = vsel %vm353, %v358, 0.0
        %v371 = vsel %vm354, %v359, 0.0
        %v372 = vsel %vm355, %v360, 0.0
        %v373 = vadd.f32 %v336, %v365
        %v374 = vadd.f32 %v337, %v366
        %v375 = vadd.f32 %v338, %v367
        %v376 = vadd.f32 %v339, %v368
        %v377 = vadd.f32 %v340, %v369
        %v378 = vadd.f32 %v341, %v370
        %v379 = vadd.f32 %v342, %v371
        %v380 = vadd.f32 %v343, %v372
        %v381 = vfloor.f32 %v219
        %v382 = vsub.f32 %v219, %v381
        %v383 = vcvt.f32.s32.to.zero.pseudo %v381
        %vm384 = vcmp.ge.s32.totalorder %v383, 0
        %vm385 = vcmp.lt.s32.totalorder %v383, 16
        %vm386 = vmand %vm384, %vm385
        %v387 = vsub.f32 1.0, %v382
        %v388 = vsel %vm386, %v387, 0.0
        %v389 = vadd.s32 %v383, 1
        %vm390 = vcmp.ge.s32.totalorder %v389, 0
        %vm391 = vcmp.lt.s32.totalorder %v389, 16
        %vm392 = vmand %vm390, %vm391
        %v393 = vsel %vm392, %v382, 0.0
        %v394 = vperm.slane %v383, 0
        %v395 = vperm.slane %v383, 1
        %v396 = vperm.slane %v383, 2
        %v397 = vperm.slane %v383, 3
        %vm398 = vcmp.eq.s32.totalorder %v234, %v394
        %vm399 = vcmp.eq.s32.totalorder %v234, %v395
        %vm400 = vcmp.eq.s32.totalorder %v234, %v396
        %vm401 = vcmp.eq.s32.totalorder %v234, %v397
        %vm402 = vcmp.eq.s32.totalorder %v235, %v394
        %vm403 = vcmp.eq.s32.totalorder %v235, %v395
        %vm404 = vcmp.eq.s32.totalorder %v235, %v396
        %vm405 = vcmp.eq.s32.totalorder %v235, %v397
        %v407 = vperm.slane %v388, 0
        %v408 = vperm.slane %v388, 1
        %v409 = vperm.slane %v388, 2
        %v410 = vperm.slane %v388, 3
        %v415 = vsel %vm398, %v407, 0.0
        %v416 = vsel %vm399, %v408, 0.0
        %v417 = vsel %vm400, %v409, 0.0
        %v418 = vsel %vm401, %v410, 0.0
        %v419 = vsel %vm402, %v407, 0.0
        %v420 = vsel %vm403, %v408, 0.0
        %v421 = vsel %vm404, %v409, 0.0
        %v422 = vsel %vm405, %v410, 0.0
        %v423 = vperm.slane %v389, 0
        %v424 = vperm.slane %v389, 1
        %v425 = vperm.slane %v389, 2
        %v426 = vperm.slane %v389, 3
        %vm427 = vcmp.eq.s32.totalorder %v234, %v423
        %vm428 = vcmp.eq.s32.totalorder %v234, %v424
        %vm429 = vcmp.eq.s32.totalorder %v234, %v425
        %vm430 = vcmp.eq.s32.totalorder %v234, %v426
        %vm431 = vcmp.eq.s32.totalorder %v235, %v423
        %vm432 = vcmp.eq.s32.totalorder %v235, %v424
        %vm433 = vcmp.eq.s32.totalorder %v235, %v425
        %vm434 = vcmp.eq.s32.totalorder %v235, %v426
        %v436 = vperm.slane %v393, 0
        %v437 = vperm.slane %v393, 1
        %v438 = vperm.slane %v393, 2
        %v439 = vperm.slane %v393, 3
        %v444 = vsel %vm427, %v436, 0.0
        %v445 = vsel %vm428, %v437, 0.0
        %v446 = vsel %vm429, %v438, 0.0
        %v447 = vsel %vm430, %v439, 0.0
        %v448 = vsel %vm431, %v436, 0.0
        %v449 = vsel %vm432, %v437, 0.0
        %v450 = vsel %vm433, %v438, 0.0
        %v451 = vsel %vm434, %v439, 0.0
        %v452 = vadd.f32 %v415, %v444
        %v453 = vadd.f32 %v416, %v445
        %v454 = vadd.f32 %v417, %v446
        %v455 = vadd.f32 %v418, %v447
        %v456 = vadd.f32 %v419, %v448
        %v457 = vadd.f32 %v420, %v449
        %v458 = vadd.f32 %v421, %v450
        %v459 = vadd.f32 %v422, %v451
        %v468 = vrot.slane %v374, 7
        %v469 = vrot.slane %v375, 6
        %v470 = vrot.slane %v376, 5
        %v471 = vrot.slane %v378, 7
        %v472 = vrot.slane %v379, 6
        %v473 = vrot.slane %v380, 5
        %vm474 = vcmask 1040384
        %v475 = vsel %vm474, %v373, %v468
        %vm476 = vcmask 1042434
        %v477 = vsel %vm476, %v469, %v470
        %vm478 = vcmask 1041408
        %v479 = vsel %vm478, %v475, %v477
        %vm480 = vcmask 1041409
        %v481 = vsel %vm480, %v373, %v468
        %vm482 = vcmask 1043459
        %v483 = vsel %vm482, %v469, %v470
        %vm484 = vcmask 1042433
        %v485 = vsel %vm484, %v481, %v483
        %v486 = vrot.slane %v485, 1
        %v487 = vsel %vm476, %v373, %v468
        %vm488 = vcmask 1044484
        %v489 = vsel %vm488, %v469, %v470
        %vm490 = vcmask 1043458
        %v491 = vsel %vm490, %v487, %v489
        %v492 = vrot.slane %v491, 2
        %v493 = vsel %vm482, %v373, %v468
        %vm494 = vcmask 1045509
        %v495 = vsel %vm494, %v469, %v470
        %vm496 = vcmask 1044483
        %v497 = vsel %vm496, %v493, %v495
        %v498 = vrot.slane %v497, 3
        %v499 = vsel %vm488, %v373, %v468
        %vm500 = vcmask 1046534
        %v501 = vsel %vm500, %v469, %v470
        %vm502 = vcmask 1045508
        %v503 = vsel %vm502, %v499, %v501
        %v504 = vrot.slane %v503, 4
        %v505 = vsel %vm494, %v373, %v468
        %vm506 = vcmask 1046528
        %v507 = vsel %vm506, %v470, %v469
        %vm508 = vcmask 1046533
        %v509 = vsel %vm508, %v505, %v507
        %v510 = vrot.slane %v509, 5
        %v511 = vsel %vm500, %v373, %v468
        %v512 = vsel %vm474, %v469, %v470
        %vm513 = vcmask 1045504
        %v514 = vsel %vm513, %v512, %v511
        %v515 = vrot.slane %v514, 6
        %v516 = vsel %vm506, %v468, %v373
        %v517 = vsel %vm480, %v469, %v470
        %vm518 = vcmask 1046529
        %v519 = vsel %vm518, %v517, %v516
        %v520 = vrot.slane %v519, 7
        %v521 = vsel %vm474, %v377, %v471
        %v522 = vsel %vm476, %v472, %v473
        %v523 = vsel %vm478, %v521, %v522
        %v524 = vsel %vm480, %v377, %v471
        %v525 = vsel %vm482, %v472, %v473
        %v526 = vsel %vm484, %v524, %v525
        %v527 = vrot.slane %v526, 1
        %v528 = vsel %vm476, %v377, %v471
        %v529 = vsel %vm488, %v472, %v473
        %v530 = vsel %vm490, %v528, %v529
        %v531 = vrot.slane %v530, 2
        %v532 = vsel %vm482, %v377, %v471
        %v533 = vsel %vm494, %v472, %v473
        %v534 = vsel %vm496, %v532, %v533
        %v535 = vrot.slane %v534, 3
        %v536 = vsel %vm488, %v377, %v471
        %v537 = vsel %vm500, %v472, %v473
        %v538 = vsel %vm502, %v536, %v537
        %v539 = vrot.slane %v538, 4
        %v540 = vsel %vm494, %v377, %v471
        %v541 = vsel %vm506, %v473, %v472
        %v542 = vsel %vm508, %v540, %v541
        %v543 = vrot.slane %v542, 5
        %v544 = vsel %vm500, %v377, %v471
        %v545 = vsel %vm474, %v472, %v473
        %v546 = vsel %vm513, %v545, %v544
        %v547 = vrot.slane %v546, 6
        %v548 = vsel %vm506, %v471, %v377
        %v549 = vsel %vm480, %v472, %v473
        %v550 = vsel %vm518, %v549, %v548
        %v551 = vrot.slane %v550, 7
        %v552 = vperm.slane %v479, 0
        %v553 = vperm.slane %v479, 1
        %v554 = vperm.slane %v479, 2
        %v555 = vperm.slane %v479, 3
        %v556 = vperm.slane %v486, 0
        %v557 = vperm.slane %v486, 1
        %v558 = vperm.slane %v486, 2
        %v559 = vperm.slane %v486, 3
        %v560 = vperm.slane %v492, 0
        %v561 = vperm.slane %v492, 1
        %v562 = vperm.slane %v492, 2
        %v563 = vperm.slane %v492, 3
        %v564 = vperm.slane %v498, 0
        %v565 = vperm.slane %v498, 1
        %v566 = vperm.slane %v498, 2
        %v567 = vperm.slane %v498, 3
        %v568 = vperm.slane %v504, 0
        %v569 = vperm.slane %v504, 1
        %v570 = vperm.slane %v504, 2
        %v571 = vperm.slane %v504, 3
        %v572 = vperm.slane %v510, 0
        %v573 = vperm.slane %v510, 1
        %v574 = vperm.slane %v510, 2
        %v575 = vperm.slane %v510, 3
        %v576 = vperm.slane %v515, 0
        %v577 = vperm.slane %v515, 1
        %v578 = vperm.slane %v515, 2
        %v579 = vperm.slane %v515, 3
        %v580 = vperm.slane %v520, 0
        %v581 = vperm.slane %v520, 1
        %v582 = vperm.slane %v520, 2
        %v583 = vperm.slane %v520, 3
        %v584 = vperm.slane %v523, 0
        %v585 = vperm.slane %v523, 1
        %v586 = vperm.slane %v523, 2
        %v587 = vperm.slane %v523, 3
        %v588 = vperm.slane %v527, 0
        %v589 = vperm.slane %v527, 1
        %v590 = vperm.slane %v527, 2
        %v591 = vperm.slane %v527, 3
        %v592 = vperm.slane %v531, 0
        %v593 = vperm.slane %v531, 1
        %v594 = vperm.slane %v531, 2
        %v595 = vperm.slane %v531, 3
        %v596 = vperm.slane %v535, 0
        %v597 = vperm.slane %v535, 1
        %v598 = vperm.slane %v535, 2
        %v599 = vperm.slane %v535, 3
        %v600 = vperm.slane %v539, 0
        %v601 = vperm.slane %v539, 1
        %v602 = vperm.slane %v539, 2
        %v603 = vperm.slane %v539, 3
        %v604 = vperm.slane %v543, 0
        %v605 = vperm.slane %v543, 1
        %v606 = vperm.slane %v543, 2
        %v607 = vperm.slane %v543, 3
        %v608 = vperm.slane %v547, 0
        %v609 = vperm.slane %v547, 1
        %v610 = vperm.slane %v547, 2
        %v611 = vperm.slane %v547, 3
        %v612 = vperm.slane %v551, 0
        %v613 = vperm.slane %v551, 1
        %v614 = vperm.slane %v551, 2
        %v615 = vperm.slane %v551, 3
        %v680 = vmul.f32 %v552, %v294
        %v681 = vmul.f32 %v553, %v295
        %v682 = vmul.f32 %v554, %v296
        %v683 = vmul.f32 %v555, %v297
        %v684 = vmul.f32 %v552, %v298
        %v685 = vmul.f32 %v553, %v299
        %v686 = vmul.f32 %v554, %v300
        %v687 = vmul.f32 %v555, %v301
        %v688 = vmul.f32 %v556, %v294
        %v689 = vmul.f32 %v557, %v295
        %v690 = vmul.f32 %v558, %v296
        %v691 = vmul.f32 %v559, %v297
        %v692 = vmul.f32 %v556, %v298
        %v693 = vmul.f32 %v557, %v299
        %v694 = vmul.f32 %v558, %v300
        %v695 = vmul.f32 %v559, %v301
        %v696 = vmul.f32 %v560, %v294
        %v697 = vmul.f32 %v561, %v295
        %v698 = vmul.f32 %v562, %v296
        %v699 = vmul.f32 %v563, %v297
        %v700 = vmul.f32 %v560, %v298
        %v701 = vmul.f32 %v561, %v299
        %v702 = vmul.f32 %v562, %v300
        %v703 = vmul.f32 %v563, %v301
        %v704 = vmul.f32 %v564, %v294
        %v705 = vmul.f32 %v565, %v295
        %v706 = vmul.f32 %v566, %v296
        %v707 = vmul.f32 %v567, %v297
        %v708 = vmul.f32 %v564, %v298
        %v709 = vmul.f32 %v565, %v299
        %v710 = vmul.f32 %v566, %v300
        %v711 = vmul.f32 %v567, %v301
        %v712 = vmul.f32 %v568, %v294
        %v713 = vmul.f32 %v569, %v295
        %v714 = vmul.f32 %v570, %v296
        %v715 = vmul.f32 %v571, %v297
        %v716 = vmul.f32 %v568, %v298
        %v717 = vmul.f32 %v569, %v299
        %v718 = vmul.f32 %v570, %v300
        %v719 = vmul.f32 %v571, %v301
        %v720 = vmul.f32 %v572, %v294
        %v721 = vmul.f32 %v573, %v295
        %v722 = vmul.f32 %v574, %v296
        %v723 = vmul.f32 %v575, %v297
        %v724 = vmul.f32 %v572, %v298
        %v725 = vmul.f32 %v573, %v299
        %v726 = vmul.f32 %v574, %v300
        %v727 = vmul.f32 %v575, %v301
        %v728 = vmul.f32 %v576, %v294
        %v729 = vmul.f32 %v577, %v295
        %v730 = vmul.f32 %v578, %v296
        %v731 = vmul.f32 %v579, %v297
        %v732 = vmul.f32 %v576, %v298
        %v733 = vmul.f32 %v577, %v299
        %v734 = vmul.f32 %v578, %v300
        %v735 = vmul.f32 %v579, %v301
        %v736 = vmul.f32 %v580, %v294
        %v737 = vmul.f32 %v581, %v295
        %v738 = vmul.f32 %v582, %v296
        %v739 = vmul.f32 %v583, %v297
        %v740 = vmul.f32 %v580, %v298
        %v741 = vmul.f32 %v581, %v299
        %v742 = vmul.f32 %v582, %v300
        %v743 = vmul.f32 %v583, %v301
        %v744 = vmul.f32 %v584, %v294
        %v745 = vmul.f32 %v585, %v295
        %v746 = vmul.f32 %v586, %v296
        %v747 = vmul.f32 %v587, %v297
        %v748 = vmul.f32 %v584, %v298
        %v749 = vmul.f32 %v585, %v299
        %v750 = vmul.f32 %v586, %v300
        %v751 = vmul.f32 %v587, %v301
        %v752 = vmul.f32 %v588, %v294
        %v753 = vmul.f32 %v589, %v295
        %v754 = vmul.f32 %v590, %v296
        %v755 = vmul.f32 %v591, %v297
        %v756 = vmul.f32 %v588, %v298
        %v757 = vmul.f32 %v589, %v299
        %v758 = vmul.f32 %v590, %v300
        %v759 = vmul.f32 %v591, %v301
        %v760 = vmul.f32 %v592, %v294
        %v761 = vmul.f32 %v593, %v295
        %v762 = vmul.f32 %v594, %v296
        %v763 = vmul.f32 %v595, %v297
        %v764 = vmul.f32 %v592, %v298
        %v765 = vmul.f32 %v593, %v299
        %v766 = vmul.f32 %v594, %v300
        %v767 = vmul.f32 %v595, %v301
        %v768 = vmul.f32 %v596, %v294
        %v769 = vmul.f32 %v597, %v295
        %v770 = vmul.f32 %v598, %v296
        %v771 = vmul.f32 %v599, %v297
        %v772 = vmul.f32 %v596, %v298
        %v773 = vmul.f32 %v597, %v299
        %v774 = vmul.f32 %v598, %v300
        %v775 = vmul.f32 %v599, %v301
        %v776 = vmul.f32 %v600, %v294
        %v777 = vmul.f32 %v601, %v295
        %v778 = vmul.f32 %v602, %v296
        %v779 = vmul.f32 %v603, %v297
        %v780 = vmul.f32 %v600, %v298
        %v781 = vmul.f32 %v601, %v299
        %v782 = vmul.f32 %v602, %v300
        %v783 = vmul.f32 %v603, %v301
        %v784 = vmul.f32 %v604, %v294
        %v785 = vmul.f32 %v605, %v295
        %v786 = vmul.f32 %v606, %v296
        %v787 = vmul.f32 %v607, %v297
        %v788 = vmul.f32 %v604, %v298
        %v789 = vmul.f32 %v605, %v299
        %v790 = vmul.f32 %v606, %v300
        %v791 = vmul.f32 %v607, %v301
        %v792 = vmul.f32 %v608, %v294
        %v793 = vmul.f32 %v609, %v295
        %v794 = vmul.f32 %v610, %v296
        %v795 = vmul.f32 %v611, %v297
        %v796 = vmul.f32 %v608, %v298
        %v797 = vmul.f32 %v609, %v299
        %v798 = vmul.f32 %v610, %v300
        %v799 = vmul.f32 %v611, %v301
        %v800 = vmul.f32 %v612, %v294
        %v801 = vmul.f32 %v613, %v295
        %v802 = vmul.f32 %v614, %v296
        %v803 = vmul.f32 %v615, %v297
        %v804 = vmul.f32 %v612, %v298
        %v805 = vmul.f32 %v613, %v299
        %v806 = vmul.f32 %v614, %v300
        %v807 = vmul.f32 %v615, %v301
        %v808 = vld [vmem:[%s173] sm:$0xff]
        %v809 = vld [vmem:[%s173 + $0x8] sm:$0xff]
        %v810 = vld [vmem:[%s173 + $0x10] sm:$0xff]
        %v811 = vld [vmem:[%s173 + $0x18] sm:$0xff]
        %v812 = vld [vmem:[%s173 + $0x20] sm:$0xff]
        %v813 = vld [vmem:[%s173 + $0x28] sm:$0xff]
        %v814 = vld [vmem:[%s173 + $0x30] sm:$0xff]
        %v815 = vld [vmem:[%s173 + $0x38] sm:$0xff]
        %v816 = vld [vmem:[%s173 + $0x40] sm:$0xff]
        %v817 = vld [vmem:[%s173 + $0x48] sm:$0xff]
        %v818 = vld [vmem:[%s173 + $0x50] sm:$0xff]
        %v819 = vld [vmem:[%s173 + $0x58] sm:$0xff]
        %v820 = vld [vmem:[%s173 + $0x60] sm:$0xff]
        %v821 = vld [vmem:[%s173 + $0x68] sm:$0xff]
        %v822 = vld [vmem:[%s173 + $0x70] sm:$0xff]
        %v823 = vld [vmem:[%s173 + $0x78] sm:$0xff]
        %v824 = vand.u32 %v740, 4294901760
        %825 = vmatpush.msra.mxu0 %v824
        %v826 = vand.u32 %v736, 4294901760
        %827 = vmatpush.msra.mxu0 %v826
        %v828 = vand.u32 %v732, 4294901760
        %829 = vmatpush.msra.mxu0 %v828
        %v830 = vand.u32 %v728, 4294901760
        %831 = vmatpush.msra.mxu0 %v830
        %v832 = vand.u32 %v724, 4294901760
        %833 = vmatpush.msra.mxu0 %v832
        %v834 = vand.u32 %v720, 4294901760
        %835 = vmatpush.msra.mxu0 %v834
        %v836 = vand.u32 %v716, 4294901760
        %837 = vmatpush.msra.mxu0 %v836
        %v838 = vand.u32 %v712, 4294901760
        %839 = vmatpush.msra.mxu0 %v838
        %v840 = vand.u32 %v708, 4294901760
        %841 = vmatpush.msra.mxu0 %v840
        %v842 = vand.u32 %v704, 4294901760
        %843 = vmatpush.msra.mxu0 %v842
        %v844 = vand.u32 %v700, 4294901760
        %845 = vmatpush.msra.mxu0 %v844
        %v846 = vand.u32 %v696, 4294901760
        %847 = vmatpush.msra.mxu0 %v846
        %v848 = vand.u32 %v692, 4294901760
        %849 = vmatpush.msra.mxu0 %v848
        %v850 = vand.u32 %v688, 4294901760
        %851 = vmatpush.msra.mxu0 %v850
        %v852 = vand.u32 %v684, 4294901760
        %853 = vmatpush.msra.mxu0 %v852
        %v854 = vand.u32 %v680, 4294901760
        %855 = vmatpush.msra.mxu0 %v854
        %v856 = vand.u32 %v808, 4294901760
        %v857 = vsub.f32 %v808, %v856
        %v858 = vand.u32 %v857, 4294901760
        %v859 = vsub.f32 %v857, %v858
        %v860 = vand.u32 %v859, 4294901760
        %861 = vmatmul.f32.gmra.mxu0 %v860
        %v862 = vpop.f32.mrf.mxu0
        %v863 = vadd.f32 0.0, %v862
        %v864 = vand.u32 %v810, 4294901760
        %v865 = vsub.f32 %v810, %v864
        %v866 = vand.u32 %v865, 4294901760
        %v867 = vsub.f32 %v865, %v866
        %v868 = vand.u32 %v867, 4294901760
        %869 = vmatmul.f32.gmra.mxu0 %v868
        %v870 = vpop.f32.mrf.mxu0
        %v871 = vadd.f32 0.0, %v870
        %v872 = vand.u32 %v812, 4294901760
        %v873 = vsub.f32 %v812, %v872
        %v874 = vand.u32 %v873, 4294901760
        %v875 = vsub.f32 %v873, %v874
        %v876 = vand.u32 %v875, 4294901760
        %877 = vmatmul.f32.gmra.mxu0 %v876
        %v878 = vpop.f32.mrf.mxu0
        %v879 = vadd.f32 0.0, %v878
        %v880 = vand.u32 %v814, 4294901760
        %v881 = vsub.f32 %v814, %v880
        %v882 = vand.u32 %v881, 4294901760
        %v883 = vsub.f32 %v881, %v882
        %v884 = vand.u32 %v883, 4294901760
        %885 = vmatmul.f32.gmra.mxu0 %v884
        %v886 = vpop.f32.mrf.mxu0
        %v887 = vadd.f32 0.0, %v886
        %v888 = vand.u32 %v816, 4294901760
        %v889 = vsub.f32 %v816, %v888
        %v890 = vand.u32 %v889, 4294901760
        %v891 = vsub.f32 %v889, %v890
        %v892 = vand.u32 %v891, 4294901760
        %893 = vmatmul.f32.gmra.mxu0 %v892
        %v894 = vpop.f32.mrf.mxu0
        %v895 = vadd.f32 0.0, %v894
        %v896 = vand.u32 %v818, 4294901760
        %v897 = vsub.f32 %v818, %v896
        %v898 = vand.u32 %v897, 4294901760
        %v899 = vsub.f32 %v897, %v898
        %v900 = vand.u32 %v899, 4294901760
        %901 = vmatmul.f32.gmra.mxu0 %v900
        %v902 = vpop.f32.mrf.mxu0
        %v903 = vadd.f32 0.0, %v902
        %v904 = vand.u32 %v820, 4294901760
        %v905 = vsub.f32 %v820, %v904
        %v906 = vand.u32 %v905, 4294901760
        %v907 = vsub.f32 %v905, %v906
        %v908 = vand.u32 %v907, 4294901760
        %909 = vmatmul.f32.gmra.mxu0 %v908
        %v910 = vpop.f32.mrf.mxu0
        %v911 = vadd.f32 0.0, %v910
        %v912 = vand.u32 %v822, 4294901760
        %v913 = vsub.f32 %v822, %v912
        %v914 = vand.u32 %v913, 4294901760
        %v915 = vsub.f32 %v913, %v914
        %v916 = vand.u32 %v915, 4294901760
        %917 = vmatmul.f32.gmra.mxu0 %v916
        %v918 = vpop.f32.mrf.mxu0
        %v919 = vadd.f32 0.0, %v918
        %920 = vdwg.mxu0
        %v921 = vand.u32 %v740, 4294901760
        %v922 = vsub.f32 %v740, %v921
        %v923 = vand.u32 %v922, 4294901760
        %v924 = vsub.f32 %v922, %v923
        %v925 = vand.u32 %v924, 4294901760
        %926 = vmatpush.msra.mxu0 %v925
        %v927 = vand.u32 %v736, 4294901760
        %v928 = vsub.f32 %v736, %v927
        %v929 = vand.u32 %v928, 4294901760
        %v930 = vsub.f32 %v928, %v929
        %v931 = vand.u32 %v930, 4294901760
        %932 = vmatpush.msra.mxu0 %v931
        %v933 = vand.u32 %v732, 4294901760
        %v934 = vsub.f32 %v732, %v933
        %v935 = vand.u32 %v934, 4294901760
        %v936 = vsub.f32 %v934, %v935
        %v937 = vand.u32 %v936, 4294901760
        %938 = vmatpush.msra.mxu0 %v937
        %v939 = vand.u32 %v728, 4294901760
        %v940 = vsub.f32 %v728, %v939
        %v941 = vand.u32 %v940, 4294901760
        %v942 = vsub.f32 %v940, %v941
        %v943 = vand.u32 %v942, 4294901760
        %944 = vmatpush.msra.mxu0 %v943
        %v945 = vand.u32 %v724, 4294901760
        %v946 = vsub.f32 %v724, %v945
        %v947 = vand.u32 %v946, 4294901760
        %v948 = vsub.f32 %v946, %v947
        %v949 = vand.u32 %v948, 4294901760
        %950 = vmatpush.msra.mxu0 %v949
        %v951 = vand.u32 %v720, 4294901760
        %v952 = vsub.f32 %v720, %v951
        %v953 = vand.u32 %v952, 4294901760
        %v954 = vsub.f32 %v952, %v953
        %v955 = vand.u32 %v954, 4294901760
        %956 = vmatpush.msra.mxu0 %v955
        %v957 = vand.u32 %v716, 4294901760
        %v958 = vsub.f32 %v716, %v957
        %v959 = vand.u32 %v958, 4294901760
        %v960 = vsub.f32 %v958, %v959
        %v961 = vand.u32 %v960, 4294901760
        %962 = vmatpush.msra.mxu0 %v961
        %v963 = vand.u32 %v712, 4294901760
        %v964 = vsub.f32 %v712, %v963
        %v965 = vand.u32 %v964, 4294901760
        %v966 = vsub.f32 %v964, %v965
        %v967 = vand.u32 %v966, 4294901760
        %968 = vmatpush.msra.mxu0 %v967
        %v969 = vand.u32 %v708, 4294901760
        %v970 = vsub.f32 %v708, %v969
        %v971 = vand.u32 %v970, 4294901760
        %v972 = vsub.f32 %v970, %v971
        %v973 = vand.u32 %v972, 4294901760
        %974 = vmatpush.msra.mxu0 %v973
        %v975 = vand.u32 %v704, 4294901760
        %v976 = vsub.f32 %v704, %v975
        %v977 = vand.u32 %v976, 4294901760
        %v978 = vsub.f32 %v976, %v977
        %v979 = vand.u32 %v978, 4294901760
        %980 = vmatpush.msra.mxu0 %v979
        %v981 = vand.u32 %v700, 4294901760
        %v982 = vsub.f32 %v700, %v981
        %v983 = vand.u32 %v982, 4294901760
        %v984 = vsub.f32 %v982, %v983
        %v985 = vand.u32 %v984, 4294901760
        %986 = vmatpush.msra.mxu0 %v985
        %v987 = vand.u32 %v696, 4294901760
        %v988 = vsub.f32 %v696, %v987
        %v989 = vand.u32 %v988, 4294901760
        %v990 = vsub.f32 %v988, %v989
        %v991 = vand.u32 %v990, 4294901760
        %992 = vmatpush.msra.mxu0 %v991
        %v993 = vand.u32 %v692, 4294901760
        %v994 = vsub.f32 %v692, %v993
        %v995 = vand.u32 %v994, 4294901760
        %v996 = vsub.f32 %v994, %v995
        %v997 = vand.u32 %v996, 4294901760
        %998 = vmatpush.msra.mxu0 %v997
        %v999 = vand.u32 %v688, 4294901760
        %v1000 = vsub.f32 %v688, %v999
        %v1001 = vand.u32 %v1000, 4294901760
        %v1002 = vsub.f32 %v1000, %v1001
        %v1003 = vand.u32 %v1002, 4294901760
        %1004 = vmatpush.msra.mxu0 %v1003
        %v1005 = vand.u32 %v684, 4294901760
        %v1006 = vsub.f32 %v684, %v1005
        %v1007 = vand.u32 %v1006, 4294901760
        %v1008 = vsub.f32 %v1006, %v1007
        %v1009 = vand.u32 %v1008, 4294901760
        %1010 = vmatpush.msra.mxu0 %v1009
        %v1011 = vand.u32 %v680, 4294901760
        %v1012 = vsub.f32 %v680, %v1011
        %v1013 = vand.u32 %v1012, 4294901760
        %v1014 = vsub.f32 %v1012, %v1013
        %v1015 = vand.u32 %v1014, 4294901760
        %1016 = vmatpush.msra.mxu0 %v1015
        %v1017 = vand.u32 %v808, 4294901760
        %1018 = vmatmul.f32.gmra.mxu0 %v1017
        %v1019 = vpop.f32.mrf.mxu0
        %v1020 = vadd.f32 %v863, %v1019
        %v1021 = vand.u32 %v810, 4294901760
        %1022 = vmatmul.f32.gmra.mxu0 %v1021
        %v1023 = vpop.f32.mrf.mxu0
        %v1024 = vadd.f32 %v871, %v1023
        %v1025 = vand.u32 %v812, 4294901760
        %1026 = vmatmul.f32.gmra.mxu0 %v1025
        %v1027 = vpop.f32.mrf.mxu0
        %v1028 = vadd.f32 %v879, %v1027
        %v1029 = vand.u32 %v814, 4294901760
        %1030 = vmatmul.f32.gmra.mxu0 %v1029
        %v1031 = vpop.f32.mrf.mxu0
        %v1032 = vadd.f32 %v887, %v1031
        %v1033 = vand.u32 %v816, 4294901760
        %1034 = vmatmul.f32.gmra.mxu0 %v1033
        %v1035 = vpop.f32.mrf.mxu0
        %v1036 = vadd.f32 %v895, %v1035
        %v1037 = vand.u32 %v818, 4294901760
        %1038 = vmatmul.f32.gmra.mxu0 %v1037
        %v1039 = vpop.f32.mrf.mxu0
        %v1040 = vadd.f32 %v903, %v1039
        %v1041 = vand.u32 %v820, 4294901760
        %1042 = vmatmul.f32.gmra.mxu0 %v1041
        %v1043 = vpop.f32.mrf.mxu0
        %v1044 = vadd.f32 %v911, %v1043
        %v1045 = vand.u32 %v822, 4294901760
        %1046 = vmatmul.f32.gmra.mxu0 %v1045
        %v1047 = vpop.f32.mrf.mxu0
        %v1048 = vadd.f32 %v919, %v1047
        %1049 = vdwg.mxu0
        %v1050 = vand.u32 %v740, 4294901760
        %v1051 = vsub.f32 %v740, %v1050
        %1052 = vmatpush.msra.mxu0 %v1051
        %v1053 = vand.u32 %v736, 4294901760
        %v1054 = vsub.f32 %v736, %v1053
        %1055 = vmatpush.msra.mxu0 %v1054
        %v1056 = vand.u32 %v732, 4294901760
        %v1057 = vsub.f32 %v732, %v1056
        %1058 = vmatpush.msra.mxu0 %v1057
        %v1059 = vand.u32 %v728, 4294901760
        %v1060 = vsub.f32 %v728, %v1059
        %1061 = vmatpush.msra.mxu0 %v1060
        %v1062 = vand.u32 %v724, 4294901760
        %v1063 = vsub.f32 %v724, %v1062
        %1064 = vmatpush.msra.mxu0 %v1063
        %v1065 = vand.u32 %v720, 4294901760
        %v1066 = vsub.f32 %v720, %v1065
        %1067 = vmatpush.msra.mxu0 %v1066
        %v1068 = vand.u32 %v716, 4294901760
        %v1069 = vsub.f32 %v716, %v1068
        %1070 = vmatpush.msra.mxu0 %v1069
        %v1071 = vand.u32 %v712, 4294901760
        %v1072 = vsub.f32 %v712, %v1071
        %1073 = vmatpush.msra.mxu0 %v1072
        %v1074 = vand.u32 %v708, 4294901760
        %v1075 = vsub.f32 %v708, %v1074
        %1076 = vmatpush.msra.mxu0 %v1075
        %v1077 = vand.u32 %v704, 4294901760
        %v1078 = vsub.f32 %v704, %v1077
        %1079 = vmatpush.msra.mxu0 %v1078
        %v1080 = vand.u32 %v700, 4294901760
        %v1081 = vsub.f32 %v700, %v1080
        %1082 = vmatpush.msra.mxu0 %v1081
        %v1083 = vand.u32 %v696, 4294901760
        %v1084 = vsub.f32 %v696, %v1083
        %1085 = vmatpush.msra.mxu0 %v1084
        %v1086 = vand.u32 %v692, 4294901760
        %v1087 = vsub.f32 %v692, %v1086
        %1088 = vmatpush.msra.mxu0 %v1087
        %v1089 = vand.u32 %v688, 4294901760
        %v1090 = vsub.f32 %v688, %v1089
        %1091 = vmatpush.msra.mxu0 %v1090
        %v1092 = vand.u32 %v684, 4294901760
        %v1093 = vsub.f32 %v684, %v1092
        %1094 = vmatpush.msra.mxu0 %v1093
        %v1095 = vand.u32 %v680, 4294901760
        %v1096 = vsub.f32 %v680, %v1095
        %1097 = vmatpush.msra.mxu0 %v1096
        %v1098 = vand.u32 %v808, 4294901760
        %v1099 = vsub.f32 %v808, %v1098
        %1100 = vmatmul.f32.gmra.mxu0 %v1099
        %v1101 = vpop.f32.mrf.mxu0
        %v1102 = vadd.f32 %v1020, %v1101
        %v1103 = vand.u32 %v810, 4294901760
        %v1104 = vsub.f32 %v810, %v1103
        %1105 = vmatmul.f32.gmra.mxu0 %v1104
        %v1106 = vpop.f32.mrf.mxu0
        %v1107 = vadd.f32 %v1024, %v1106
        %v1108 = vand.u32 %v812, 4294901760
        %v1109 = vsub.f32 %v812, %v1108
        %1110 = vmatmul.f32.gmra.mxu0 %v1109
        %v1111 = vpop.f32.mrf.mxu0
        %v1112 = vadd.f32 %v1028, %v1111
        %v1113 = vand.u32 %v814, 4294901760
        %v1114 = vsub.f32 %v814, %v1113
        %1115 = vmatmul.f32.gmra.mxu0 %v1114
        %v1116 = vpop.f32.mrf.mxu0
        %v1117 = vadd.f32 %v1032, %v1116
        %v1118 = vand.u32 %v816, 4294901760
        %v1119 = vsub.f32 %v816, %v1118
        %1120 = vmatmul.f32.gmra.mxu0 %v1119
        %v1121 = vpop.f32.mrf.mxu0
        %v1122 = vadd.f32 %v1036, %v1121
        %v1123 = vand.u32 %v818, 4294901760
        %v1124 = vsub.f32 %v818, %v1123
        %1125 = vmatmul.f32.gmra.mxu0 %v1124
        %v1126 = vpop.f32.mrf.mxu0
        %v1127 = vadd.f32 %v1040, %v1126
        %v1128 = vand.u32 %v820, 4294901760
        %v1129 = vsub.f32 %v820, %v1128
        %1130 = vmatmul.f32.gmra.mxu0 %v1129
        %v1131 = vpop.f32.mrf.mxu0
        %v1132 = vadd.f32 %v1044, %v1131
        %v1133 = vand.u32 %v822, 4294901760
        %v1134 = vsub.f32 %v822, %v1133
        %1135 = vmatmul.f32.gmra.mxu0 %v1134
        %v1136 = vpop.f32.mrf.mxu0
        %v1137 = vadd.f32 %v1048, %v1136
        %1138 = vdwg.mxu0
        %v1139 = vand.u32 %v740, 4294901760
        %1140 = vmatpush.msra.mxu0 %v1139
        %v1141 = vand.u32 %v736, 4294901760
        %1142 = vmatpush.msra.mxu0 %v1141
        %v1143 = vand.u32 %v732, 4294901760
        %1144 = vmatpush.msra.mxu0 %v1143
        %v1145 = vand.u32 %v728, 4294901760
        %1146 = vmatpush.msra.mxu0 %v1145
        %v1147 = vand.u32 %v724, 4294901760
        %1148 = vmatpush.msra.mxu0 %v1147
        %v1149 = vand.u32 %v720, 4294901760
        %1150 = vmatpush.msra.mxu0 %v1149
        %v1151 = vand.u32 %v716, 4294901760
        %1152 = vmatpush.msra.mxu0 %v1151
        %v1153 = vand.u32 %v712, 4294901760
        %1154 = vmatpush.msra.mxu0 %v1153
        %v1155 = vand.u32 %v708, 4294901760
        %1156 = vmatpush.msra.mxu0 %v1155
        %v1157 = vand.u32 %v704, 4294901760
        %1158 = vmatpush.msra.mxu0 %v1157
        %v1159 = vand.u32 %v700, 4294901760
        %1160 = vmatpush.msra.mxu0 %v1159
        %v1161 = vand.u32 %v696, 4294901760
        %1162 = vmatpush.msra.mxu0 %v1161
        %v1163 = vand.u32 %v692, 4294901760
        %1164 = vmatpush.msra.mxu0 %v1163
        %v1165 = vand.u32 %v688, 4294901760
        %1166 = vmatpush.msra.mxu0 %v1165
        %v1167 = vand.u32 %v684, 4294901760
        %1168 = vmatpush.msra.mxu0 %v1167
        %v1169 = vand.u32 %v680, 4294901760
        %1170 = vmatpush.msra.mxu0 %v1169
        %v1171 = vand.u32 %v808, 4294901760
        %v1172 = vsub.f32 %v808, %v1171
        %v1173 = vand.u32 %v1172, 4294901760
        %1174 = vmatmul.f32.gmra.mxu0 %v1173
        %v1175 = vpop.f32.mrf.mxu0
        %v1176 = vadd.f32 %v1102, %v1175
        %v1177 = vand.u32 %v810, 4294901760
        %v1178 = vsub.f32 %v810, %v1177
        %v1179 = vand.u32 %v1178, 4294901760
        %1180 = vmatmul.f32.gmra.mxu0 %v1179
        %v1181 = vpop.f32.mrf.mxu0
        %v1182 = vadd.f32 %v1107, %v1181
        %v1183 = vand.u32 %v812, 4294901760
        %v1184 = vsub.f32 %v812, %v1183
        %v1185 = vand.u32 %v1184, 4294901760
        %1186 = vmatmul.f32.gmra.mxu0 %v1185
        %v1187 = vpop.f32.mrf.mxu0
        %v1188 = vadd.f32 %v1112, %v1187
        %v1189 = vand.u32 %v814, 4294901760
        %v1190 = vsub.f32 %v814, %v1189
        %v1191 = vand.u32 %v1190, 4294901760
        %1192 = vmatmul.f32.gmra.mxu0 %v1191
        %v1193 = vpop.f32.mrf.mxu0
        %v1194 = vadd.f32 %v1117, %v1193
        %v1195 = vand.u32 %v816, 4294901760
        %v1196 = vsub.f32 %v816, %v1195
        %v1197 = vand.u32 %v1196, 4294901760
        %1198 = vmatmul.f32.gmra.mxu0 %v1197
        %v1199 = vpop.f32.mrf.mxu0
        %v1200 = vadd.f32 %v1122, %v1199
        %v1201 = vand.u32 %v818, 4294901760
        %v1202 = vsub.f32 %v818, %v1201
        %v1203 = vand.u32 %v1202, 4294901760
        %1204 = vmatmul.f32.gmra.mxu0 %v1203
        %v1205 = vpop.f32.mrf.mxu0
        %v1206 = vadd.f32 %v1127, %v1205
        %v1207 = vand.u32 %v820, 4294901760
        %v1208 = vsub.f32 %v820, %v1207
        %v1209 = vand.u32 %v1208, 4294901760
        %1210 = vmatmul.f32.gmra.mxu0 %v1209
        %v1211 = vpop.f32.mrf.mxu0
        %v1212 = vadd.f32 %v1132, %v1211
        %v1213 = vand.u32 %v822, 4294901760
        %v1214 = vsub.f32 %v822, %v1213
        %v1215 = vand.u32 %v1214, 4294901760
        %1216 = vmatmul.f32.gmra.mxu0 %v1215
        %v1217 = vpop.f32.mrf.mxu0
        %v1218 = vadd.f32 %v1137, %v1217
        %1219 = vdwg.mxu0
        %v1220 = vand.u32 %v740, 4294901760
        %v1221 = vsub.f32 %v740, %v1220
        %v1222 = vand.u32 %v1221, 4294901760
        %1223 = vmatpush.msra.mxu0 %v1222
        %v1224 = vand.u32 %v736, 4294901760
        %v1225 = vsub.f32 %v736, %v1224
        %v1226 = vand.u32 %v1225, 4294901760
        %1227 = vmatpush.msra.mxu0 %v1226
        %v1228 = vand.u32 %v732, 4294901760
        %v1229 = vsub.f32 %v732, %v1228
        %v1230 = vand.u32 %v1229, 4294901760
        %1231 = vmatpush.msra.mxu0 %v1230
        %v1232 = vand.u32 %v728, 4294901760
        %v1233 = vsub.f32 %v728, %v1232
        %v1234 = vand.u32 %v1233, 4294901760
        %1235 = vmatpush.msra.mxu0 %v1234
        %v1236 = vand.u32 %v724, 4294901760
        %v1237 = vsub.f32 %v724, %v1236
        %v1238 = vand.u32 %v1237, 4294901760
        %1239 = vmatpush.msra.mxu0 %v1238
        %v1240 = vand.u32 %v720, 4294901760
        %v1241 = vsub.f32 %v720, %v1240
        %v1242 = vand.u32 %v1241, 4294901760
        %1243 = vmatpush.msra.mxu0 %v1242
        %v1244 = vand.u32 %v716, 4294901760
        %v1245 = vsub.f32 %v716, %v1244
        %v1246 = vand.u32 %v1245, 4294901760
        %1247 = vmatpush.msra.mxu0 %v1246
        %v1248 = vand.u32 %v712, 4294901760
        %v1249 = vsub.f32 %v712, %v1248
        %v1250 = vand.u32 %v1249, 4294901760
        %1251 = vmatpush.msra.mxu0 %v1250
        %v1252 = vand.u32 %v708, 4294901760
        %v1253 = vsub.f32 %v708, %v1252
        %v1254 = vand.u32 %v1253, 4294901760
        %1255 = vmatpush.msra.mxu0 %v1254
        %v1256 = vand.u32 %v704, 4294901760
        %v1257 = vsub.f32 %v704, %v1256
        %v1258 = vand.u32 %v1257, 4294901760
        %1259 = vmatpush.msra.mxu0 %v1258
        %v1260 = vand.u32 %v700, 4294901760
        %v1261 = vsub.f32 %v700, %v1260
        %v1262 = vand.u32 %v1261, 4294901760
        %1263 = vmatpush.msra.mxu0 %v1262
        %v1264 = vand.u32 %v696, 4294901760
        %v1265 = vsub.f32 %v696, %v1264
        %v1266 = vand.u32 %v1265, 4294901760
        %1267 = vmatpush.msra.mxu0 %v1266
        %v1268 = vand.u32 %v692, 4294901760
        %v1269 = vsub.f32 %v692, %v1268
        %v1270 = vand.u32 %v1269, 4294901760
        %1271 = vmatpush.msra.mxu0 %v1270
        %v1272 = vand.u32 %v688, 4294901760
        %v1273 = vsub.f32 %v688, %v1272
        %v1274 = vand.u32 %v1273, 4294901760
        %1275 = vmatpush.msra.mxu0 %v1274
        %v1276 = vand.u32 %v684, 4294901760
        %v1277 = vsub.f32 %v684, %v1276
        %v1278 = vand.u32 %v1277, 4294901760
        %1279 = vmatpush.msra.mxu0 %v1278
        %v1280 = vand.u32 %v680, 4294901760
        %v1281 = vsub.f32 %v680, %v1280
        %v1282 = vand.u32 %v1281, 4294901760
        %1283 = vmatpush.msra.mxu0 %v1282
        %v1284 = vand.u32 %v808, 4294901760
        %1285 = vmatmul.f32.gmra.mxu0 %v1284
        %v1286 = vpop.f32.mrf.mxu0
        %v1287 = vadd.f32 %v1176, %v1286
        %v1288 = vand.u32 %v810, 4294901760
        %1289 = vmatmul.f32.gmra.mxu0 %v1288
        %v1290 = vpop.f32.mrf.mxu0
        %v1291 = vadd.f32 %v1182, %v1290
        %v1292 = vand.u32 %v812, 4294901760
        %1293 = vmatmul.f32.gmra.mxu0 %v1292
        %v1294 = vpop.f32.mrf.mxu0
        %v1295 = vadd.f32 %v1188, %v1294
        %v1296 = vand.u32 %v814, 4294901760
        %1297 = vmatmul.f32.gmra.mxu0 %v1296
        %v1298 = vpop.f32.mrf.mxu0
        %v1299 = vadd.f32 %v1194, %v1298
        %v1300 = vand.u32 %v816, 4294901760
        %1301 = vmatmul.f32.gmra.mxu0 %v1300
        %v1302 = vpop.f32.mrf.mxu0
        %v1303 = vadd.f32 %v1200, %v1302
        %v1304 = vand.u32 %v818, 4294901760
        %1305 = vmatmul.f32.gmra.mxu0 %v1304
        %v1306 = vpop.f32.mrf.mxu0
        %v1307 = vadd.f32 %v1206, %v1306
        %v1308 = vand.u32 %v820, 4294901760
        %1309 = vmatmul.f32.gmra.mxu0 %v1308
        %v1310 = vpop.f32.mrf.mxu0
        %v1311 = vadd.f32 %v1212, %v1310
        %v1312 = vand.u32 %v822, 4294901760
        %1313 = vmatmul.f32.gmra.mxu0 %v1312
        %v1314 = vpop.f32.mrf.mxu0
        %v1315 = vadd.f32 %v1218, %v1314
        %1316 = vdwg.mxu0
        %v1317 = vand.u32 %v740, 4294901760
        %1318 = vmatpush.msra.mxu0 %v1317
        %v1319 = vand.u32 %v736, 4294901760
        %1320 = vmatpush.msra.mxu0 %v1319
        %v1321 = vand.u32 %v732, 4294901760
        %1322 = vmatpush.msra.mxu0 %v1321
        %v1323 = vand.u32 %v728, 4294901760
        %1324 = vmatpush.msra.mxu0 %v1323
        %v1325 = vand.u32 %v724, 4294901760
        %1326 = vmatpush.msra.mxu0 %v1325
        %v1327 = vand.u32 %v720, 4294901760
        %1328 = vmatpush.msra.mxu0 %v1327
        %v1329 = vand.u32 %v716, 4294901760
        %1330 = vmatpush.msra.mxu0 %v1329
        %v1331 = vand.u32 %v712, 4294901760
        %1332 = vmatpush.msra.mxu0 %v1331
        %v1333 = vand.u32 %v708, 4294901760
        %1334 = vmatpush.msra.mxu0 %v1333
        %v1335 = vand.u32 %v704, 4294901760
        %1336 = vmatpush.msra.mxu0 %v1335
        %v1337 = vand.u32 %v700, 4294901760
        %1338 = vmatpush.msra.mxu0 %v1337
        %v1339 = vand.u32 %v696, 4294901760
        %1340 = vmatpush.msra.mxu0 %v1339
        %v1341 = vand.u32 %v692, 4294901760
        %1342 = vmatpush.msra.mxu0 %v1341
        %v1343 = vand.u32 %v688, 4294901760
        %1344 = vmatpush.msra.mxu0 %v1343
        %v1345 = vand.u32 %v684, 4294901760
        %1346 = vmatpush.msra.mxu0 %v1345
        %v1347 = vand.u32 %v680, 4294901760
        %1348 = vmatpush.msra.mxu0 %v1347
        %v1349 = vand.u32 %v808, 4294901760
        %1350 = vmatmul.f32.gmra.mxu0 %v1349
        %v1351 = vpop.f32.mrf.mxu0
        %v1352 = vadd.f32 %v1287, %v1351
        %v1353 = vand.u32 %v810, 4294901760
        %1354 = vmatmul.f32.gmra.mxu0 %v1353
        %v1355 = vpop.f32.mrf.mxu0
        %v1356 = vadd.f32 %v1291, %v1355
        %v1357 = vand.u32 %v812, 4294901760
        %1358 = vmatmul.f32.gmra.mxu0 %v1357
        %v1359 = vpop.f32.mrf.mxu0
        %v1360 = vadd.f32 %v1295, %v1359
        %v1361 = vand.u32 %v814, 4294901760
        %1362 = vmatmul.f32.gmra.mxu0 %v1361
        %v1363 = vpop.f32.mrf.mxu0
        %v1364 = vadd.f32 %v1299, %v1363
        %v1365 = vand.u32 %v816, 4294901760
        %1366 = vmatmul.f32.gmra.mxu0 %v1365
        %v1367 = vpop.f32.mrf.mxu0
        %v1368 = vadd.f32 %v1303, %v1367
        %v1369 = vand.u32 %v818, 4294901760
        %1370 = vmatmul.f32.gmra.mxu0 %v1369
        %v1371 = vpop.f32.mrf.mxu0
        %v1372 = vadd.f32 %v1307, %v1371
        %v1373 = vand.u32 %v820, 4294901760
        %1374 = vmatmul.f32.gmra.mxu0 %v1373
        %v1375 = vpop.f32.mrf.mxu0
        %v1376 = vadd.f32 %v1311, %v1375
        %v1377 = vand.u32 %v822, 4294901760
        %1378 = vmatmul.f32.gmra.mxu0 %v1377
        %v1379 = vpop.f32.mrf.mxu0
        %v1380 = vadd.f32 %v1315, %v1379
        %1381 = vdwg.mxu0
        %v1382 = vand.u32 %v804, 4294901760
        %1383 = vmatpush.msra.mxu0 %v1382
        %v1384 = vand.u32 %v800, 4294901760
        %1385 = vmatpush.msra.mxu0 %v1384
        %v1386 = vand.u32 %v796, 4294901760
        %1387 = vmatpush.msra.mxu0 %v1386
        %v1388 = vand.u32 %v792, 4294901760
        %1389 = vmatpush.msra.mxu0 %v1388
        %v1390 = vand.u32 %v788, 4294901760
        %1391 = vmatpush.msra.mxu0 %v1390
        %v1392 = vand.u32 %v784, 4294901760
        %1393 = vmatpush.msra.mxu0 %v1392
        %v1394 = vand.u32 %v780, 4294901760
        %1395 = vmatpush.msra.mxu0 %v1394
        %v1396 = vand.u32 %v776, 4294901760
        %1397 = vmatpush.msra.mxu0 %v1396
        %v1398 = vand.u32 %v772, 4294901760
        %1399 = vmatpush.msra.mxu0 %v1398
        %v1400 = vand.u32 %v768, 4294901760
        %1401 = vmatpush.msra.mxu0 %v1400
        %v1402 = vand.u32 %v764, 4294901760
        %1403 = vmatpush.msra.mxu0 %v1402
        %v1404 = vand.u32 %v760, 4294901760
        %1405 = vmatpush.msra.mxu0 %v1404
        %v1406 = vand.u32 %v756, 4294901760
        %1407 = vmatpush.msra.mxu0 %v1406
        %v1408 = vand.u32 %v752, 4294901760
        %1409 = vmatpush.msra.mxu0 %v1408
        %v1410 = vand.u32 %v748, 4294901760
        %1411 = vmatpush.msra.mxu0 %v1410
        %v1412 = vand.u32 %v744, 4294901760
        %1413 = vmatpush.msra.mxu0 %v1412
        %v1414 = vand.u32 %v809, 4294901760
        %v1415 = vsub.f32 %v809, %v1414
        %v1416 = vand.u32 %v1415, 4294901760
        %v1417 = vsub.f32 %v1415, %v1416
        %v1418 = vand.u32 %v1417, 4294901760
        %1419 = vmatmul.f32.gmra.mxu0 %v1418
        %v1420 = vpop.f32.mrf.mxu0
        %v1421 = vadd.f32 %v1352, %v1420
        %v1422 = vand.u32 %v811, 4294901760
        %v1423 = vsub.f32 %v811, %v1422
        %v1424 = vand.u32 %v1423, 4294901760
        %v1425 = vsub.f32 %v1423, %v1424
        %v1426 = vand.u32 %v1425, 4294901760
        %1427 = vmatmul.f32.gmra.mxu0 %v1426
        %v1428 = vpop.f32.mrf.mxu0
        %v1429 = vadd.f32 %v1356, %v1428
        %v1430 = vand.u32 %v813, 4294901760
        %v1431 = vsub.f32 %v813, %v1430
        %v1432 = vand.u32 %v1431, 4294901760
        %v1433 = vsub.f32 %v1431, %v1432
        %v1434 = vand.u32 %v1433, 4294901760
        %1435 = vmatmul.f32.gmra.mxu0 %v1434
        %v1436 = vpop.f32.mrf.mxu0
        %v1437 = vadd.f32 %v1360, %v1436
        %v1438 = vand.u32 %v815, 4294901760
        %v1439 = vsub.f32 %v815, %v1438
        %v1440 = vand.u32 %v1439, 4294901760
        %v1441 = vsub.f32 %v1439, %v1440
        %v1442 = vand.u32 %v1441, 4294901760
        %1443 = vmatmul.f32.gmra.mxu0 %v1442
        %v1444 = vpop.f32.mrf.mxu0
        %v1445 = vadd.f32 %v1364, %v1444
        %v1446 = vand.u32 %v817, 4294901760
        %v1447 = vsub.f32 %v817, %v1446
        %v1448 = vand.u32 %v1447, 4294901760
        %v1449 = vsub.f32 %v1447, %v1448
        %v1450 = vand.u32 %v1449, 4294901760
        %1451 = vmatmul.f32.gmra.mxu0 %v1450
        %v1452 = vpop.f32.mrf.mxu0
        %v1453 = vadd.f32 %v1368, %v1452
        %v1454 = vand.u32 %v819, 4294901760
        %v1455 = vsub.f32 %v819, %v1454
        %v1456 = vand.u32 %v1455, 4294901760
        %v1457 = vsub.f32 %v1455, %v1456
        %v1458 = vand.u32 %v1457, 4294901760
        %1459 = vmatmul.f32.gmra.mxu0 %v1458
        %v1460 = vpop.f32.mrf.mxu0
        %v1461 = vadd.f32 %v1372, %v1460
        %v1462 = vand.u32 %v821, 4294901760
        %v1463 = vsub.f32 %v821, %v1462
        %v1464 = vand.u32 %v1463, 4294901760
        %v1465 = vsub.f32 %v1463, %v1464
        %v1466 = vand.u32 %v1465, 4294901760
        %1467 = vmatmul.f32.gmra.mxu0 %v1466
        %v1468 = vpop.f32.mrf.mxu0
        %v1469 = vadd.f32 %v1376, %v1468
        %v1470 = vand.u32 %v823, 4294901760
        %v1471 = vsub.f32 %v823, %v1470
        %v1472 = vand.u32 %v1471, 4294901760
        %v1473 = vsub.f32 %v1471, %v1472
        %v1474 = vand.u32 %v1473, 4294901760
        %1475 = vmatmul.f32.gmra.mxu0 %v1474
        %v1476 = vpop.f32.mrf.mxu0
        %v1477 = vadd.f32 %v1380, %v1476
        %1478 = vdwg.mxu0
        %v1479 = vand.u32 %v804, 4294901760
        %v1480 = vsub.f32 %v804, %v1479
        %v1481 = vand.u32 %v1480, 4294901760
        %v1482 = vsub.f32 %v1480, %v1481
        %v1483 = vand.u32 %v1482, 4294901760
        %1484 = vmatpush.msra.mxu0 %v1483
        %v1485 = vand.u32 %v800, 4294901760
        %v1486 = vsub.f32 %v800, %v1485
        %v1487 = vand.u32 %v1486, 4294901760
        %v1488 = vsub.f32 %v1486, %v1487
        %v1489 = vand.u32 %v1488, 4294901760
        %1490 = vmatpush.msra.mxu0 %v1489
        %v1491 = vand.u32 %v796, 4294901760
        %v1492 = vsub.f32 %v796, %v1491
        %v1493 = vand.u32 %v1492, 4294901760
        %v1494 = vsub.f32 %v1492, %v1493
        %v1495 = vand.u32 %v1494, 4294901760
        %1496 = vmatpush.msra.mxu0 %v1495
        %v1497 = vand.u32 %v792, 4294901760
        %v1498 = vsub.f32 %v792, %v1497
        %v1499 = vand.u32 %v1498, 4294901760
        %v1500 = vsub.f32 %v1498, %v1499
        %v1501 = vand.u32 %v1500, 4294901760
        %1502 = vmatpush.msra.mxu0 %v1501
        %v1503 = vand.u32 %v788, 4294901760
        %v1504 = vsub.f32 %v788, %v1503
        %v1505 = vand.u32 %v1504, 4294901760
        %v1506 = vsub.f32 %v1504, %v1505
        %v1507 = vand.u32 %v1506, 4294901760
        %1508 = vmatpush.msra.mxu0 %v1507
        %v1509 = vand.u32 %v784, 4294901760
        %v1510 = vsub.f32 %v784, %v1509
        %v1511 = vand.u32 %v1510, 4294901760
        %v1512 = vsub.f32 %v1510, %v1511
        %v1513 = vand.u32 %v1512, 4294901760
        %1514 = vmatpush.msra.mxu0 %v1513
        %v1515 = vand.u32 %v780, 4294901760
        %v1516 = vsub.f32 %v780, %v1515
        %v1517 = vand.u32 %v1516, 4294901760
        %v1518 = vsub.f32 %v1516, %v1517
        %v1519 = vand.u32 %v1518, 4294901760
        %1520 = vmatpush.msra.mxu0 %v1519
        %v1521 = vand.u32 %v776, 4294901760
        %v1522 = vsub.f32 %v776, %v1521
        %v1523 = vand.u32 %v1522, 4294901760
        %v1524 = vsub.f32 %v1522, %v1523
        %v1525 = vand.u32 %v1524, 4294901760
        %1526 = vmatpush.msra.mxu0 %v1525
        %v1527 = vand.u32 %v772, 4294901760
        %v1528 = vsub.f32 %v772, %v1527
        %v1529 = vand.u32 %v1528, 4294901760
        %v1530 = vsub.f32 %v1528, %v1529
        %v1531 = vand.u32 %v1530, 4294901760
        %1532 = vmatpush.msra.mxu0 %v1531
        %v1533 = vand.u32 %v768, 4294901760
        %v1534 = vsub.f32 %v768, %v1533
        %v1535 = vand.u32 %v1534, 4294901760
        %v1536 = vsub.f32 %v1534, %v1535
        %v1537 = vand.u32 %v1536, 4294901760
        %1538 = vmatpush.msra.mxu0 %v1537
        %v1539 = vand.u32 %v764, 4294901760
        %v1540 = vsub.f32 %v764, %v1539
        %v1541 = vand.u32 %v1540, 4294901760
        %v1542 = vsub.f32 %v1540, %v1541
        %v1543 = vand.u32 %v1542, 4294901760
        %1544 = vmatpush.msra.mxu0 %v1543
        %v1545 = vand.u32 %v760, 4294901760
        %v1546 = vsub.f32 %v760, %v1545
        %v1547 = vand.u32 %v1546, 4294901760
        %v1548 = vsub.f32 %v1546, %v1547
        %v1549 = vand.u32 %v1548, 4294901760
        %1550 = vmatpush.msra.mxu0 %v1549
        %v1551 = vand.u32 %v756, 4294901760
        %v1552 = vsub.f32 %v756, %v1551
        %v1553 = vand.u32 %v1552, 4294901760
        %v1554 = vsub.f32 %v1552, %v1553
        %v1555 = vand.u32 %v1554, 4294901760
        %1556 = vmatpush.msra.mxu0 %v1555
        %v1557 = vand.u32 %v752, 4294901760
        %v1558 = vsub.f32 %v752, %v1557
        %v1559 = vand.u32 %v1558, 4294901760
        %v1560 = vsub.f32 %v1558, %v1559
        %v1561 = vand.u32 %v1560, 4294901760
        %1562 = vmatpush.msra.mxu0 %v1561
        %v1563 = vand.u32 %v748, 4294901760
        %v1564 = vsub.f32 %v748, %v1563
        %v1565 = vand.u32 %v1564, 4294901760
        %v1566 = vsub.f32 %v1564, %v1565
        %v1567 = vand.u32 %v1566, 4294901760
        %1568 = vmatpush.msra.mxu0 %v1567
        %v1569 = vand.u32 %v744, 4294901760
        %v1570 = vsub.f32 %v744, %v1569
        %v1571 = vand.u32 %v1570, 4294901760
        %v1572 = vsub.f32 %v1570, %v1571
        %v1573 = vand.u32 %v1572, 4294901760
        %1574 = vmatpush.msra.mxu0 %v1573
        %v1575 = vand.u32 %v809, 4294901760
        %1576 = vmatmul.f32.gmra.mxu0 %v1575
        %v1577 = vpop.f32.mrf.mxu0
        %v1578 = vadd.f32 %v1421, %v1577
        %v1579 = vand.u32 %v811, 4294901760
        %1580 = vmatmul.f32.gmra.mxu0 %v1579
        %v1581 = vpop.f32.mrf.mxu0
        %v1582 = vadd.f32 %v1429, %v1581
        %v1583 = vand.u32 %v813, 4294901760
        %1584 = vmatmul.f32.gmra.mxu0 %v1583
        %v1585 = vpop.f32.mrf.mxu0
        %v1586 = vadd.f32 %v1437, %v1585
        %v1587 = vand.u32 %v815, 4294901760
        %1588 = vmatmul.f32.gmra.mxu0 %v1587
        %v1589 = vpop.f32.mrf.mxu0
        %v1590 = vadd.f32 %v1445, %v1589
        %v1591 = vand.u32 %v817, 4294901760
        %1592 = vmatmul.f32.gmra.mxu0 %v1591
        %v1593 = vpop.f32.mrf.mxu0
        %v1594 = vadd.f32 %v1453, %v1593
        %v1595 = vand.u32 %v819, 4294901760
        %1596 = vmatmul.f32.gmra.mxu0 %v1595
        %v1597 = vpop.f32.mrf.mxu0
        %v1598 = vadd.f32 %v1461, %v1597
        %v1599 = vand.u32 %v821, 4294901760
        %1600 = vmatmul.f32.gmra.mxu0 %v1599
        %v1601 = vpop.f32.mrf.mxu0
        %v1602 = vadd.f32 %v1469, %v1601
        %v1603 = vand.u32 %v823, 4294901760
        %1604 = vmatmul.f32.gmra.mxu0 %v1603
        %v1605 = vpop.f32.mrf.mxu0
        %v1606 = vadd.f32 %v1477, %v1605
        %1607 = vdwg.mxu0
        %v1608 = vand.u32 %v804, 4294901760
        %v1609 = vsub.f32 %v804, %v1608
        %1610 = vmatpush.msra.mxu0 %v1609
        %v1611 = vand.u32 %v800, 4294901760
        %v1612 = vsub.f32 %v800, %v1611
        %1613 = vmatpush.msra.mxu0 %v1612
        %v1614 = vand.u32 %v796, 4294901760
        %v1615 = vsub.f32 %v796, %v1614
        %1616 = vmatpush.msra.mxu0 %v1615
        %v1617 = vand.u32 %v792, 4294901760
        %v1618 = vsub.f32 %v792, %v1617
        %1619 = vmatpush.msra.mxu0 %v1618
        %v1620 = vand.u32 %v788, 4294901760
        %v1621 = vsub.f32 %v788, %v1620
        %1622 = vmatpush.msra.mxu0 %v1621
        %v1623 = vand.u32 %v784, 4294901760
        %v1624 = vsub.f32 %v784, %v1623
        %1625 = vmatpush.msra.mxu0 %v1624
        %v1626 = vand.u32 %v780, 4294901760
        %v1627 = vsub.f32 %v780, %v1626
        %1628 = vmatpush.msra.mxu0 %v1627
        %v1629 = vand.u32 %v776, 4294901760
        %v1630 = vsub.f32 %v776, %v1629
        %1631 = vmatpush.msra.mxu0 %v1630
        %v1632 = vand.u32 %v772, 4294901760
        %v1633 = vsub.f32 %v772, %v1632
        %1634 = vmatpush.msra.mxu0 %v1633
        %v1635 = vand.u32 %v768, 4294901760
        %v1636 = vsub.f32 %v768, %v1635
        %1637 = vmatpush.msra.mxu0 %v1636
        %v1638 = vand.u32 %v764, 4294901760
        %v1639 = vsub.f32 %v764, %v1638
        %1640 = vmatpush.msra.mxu0 %v1639
        %v1641 = vand.u32 %v760, 4294901760
        %v1642 = vsub.f32 %v760, %v1641
        %1643 = vmatpush.msra.mxu0 %v1642
        %v1644 = vand.u32 %v756, 4294901760
        %v1645 = vsub.f32 %v756, %v1644
        %1646 = vmatpush.msra.mxu0 %v1645
        %v1647 = vand.u32 %v752, 4294901760
        %v1648 = vsub.f32 %v752, %v1647
        %1649 = vmatpush.msra.mxu0 %v1648
        %v1650 = vand.u32 %v748, 4294901760
        %v1651 = vsub.f32 %v748, %v1650
        %1652 = vmatpush.msra.mxu0 %v1651
        %v1653 = vand.u32 %v744, 4294901760
        %v1654 = vsub.f32 %v744, %v1653
        %1655 = vmatpush.msra.mxu0 %v1654
        %v1656 = vand.u32 %v809, 4294901760
        %v1657 = vsub.f32 %v809, %v1656
        %1658 = vmatmul.f32.gmra.mxu0 %v1657
        %v1659 = vpop.f32.mrf.mxu0
        %v1660 = vadd.f32 %v1578, %v1659
        %v1661 = vand.u32 %v811, 4294901760
        %v1662 = vsub.f32 %v811, %v1661
        %1663 = vmatmul.f32.gmra.mxu0 %v1662
        %v1664 = vpop.f32.mrf.mxu0
        %v1665 = vadd.f32 %v1582, %v1664
        %v1666 = vand.u32 %v813, 4294901760
        %v1667 = vsub.f32 %v813, %v1666
        %1668 = vmatmul.f32.gmra.mxu0 %v1667
        %v1669 = vpop.f32.mrf.mxu0
        %v1670 = vadd.f32 %v1586, %v1669
        %v1671 = vand.u32 %v815, 4294901760
        %v1672 = vsub.f32 %v815, %v1671
        %1673 = vmatmul.f32.gmra.mxu0 %v1672
        %v1674 = vpop.f32.mrf.mxu0
        %v1675 = vadd.f32 %v1590, %v1674
        %v1676 = vand.u32 %v817, 4294901760
        %v1677 = vsub.f32 %v817, %v1676
        %1678 = vmatmul.f32.gmra.mxu0 %v1677
        %v1679 = vpop.f32.mrf.mxu0
        %v1680 = vadd.f32 %v1594, %v1679
        %v1681 = vand.u32 %v819, 4294901760
        %v1682 = vsub.f32 %v819, %v1681
        %1683 = vmatmul.f32.gmra.mxu0 %v1682
        %v1684 = vpop.f32.mrf.mxu0
        %v1685 = vadd.f32 %v1598, %v1684
        %v1686 = vand.u32 %v821, 4294901760
        %v1687 = vsub.f32 %v821, %v1686
        %1688 = vmatmul.f32.gmra.mxu0 %v1687
        %v1689 = vpop.f32.mrf.mxu0
        %v1690 = vadd.f32 %v1602, %v1689
        %v1691 = vand.u32 %v823, 4294901760
        %v1692 = vsub.f32 %v823, %v1691
        %1693 = vmatmul.f32.gmra.mxu0 %v1692
        %v1694 = vpop.f32.mrf.mxu0
        %v1695 = vadd.f32 %v1606, %v1694
        %1696 = vdwg.mxu0
        %v1697 = vand.u32 %v804, 4294901760
        %1698 = vmatpush.msra.mxu0 %v1697
        %v1699 = vand.u32 %v800, 4294901760
        %1700 = vmatpush.msra.mxu0 %v1699
        %v1701 = vand.u32 %v796, 4294901760
        %1702 = vmatpush.msra.mxu0 %v1701
        %v1703 = vand.u32 %v792, 4294901760
        %1704 = vmatpush.msra.mxu0 %v1703
        %v1705 = vand.u32 %v788, 4294901760
        %1706 = vmatpush.msra.mxu0 %v1705
        %v1707 = vand.u32 %v784, 4294901760
        %1708 = vmatpush.msra.mxu0 %v1707
        %v1709 = vand.u32 %v780, 4294901760
        %1710 = vmatpush.msra.mxu0 %v1709
        %v1711 = vand.u32 %v776, 4294901760
        %1712 = vmatpush.msra.mxu0 %v1711
        %v1713 = vand.u32 %v772, 4294901760
        %1714 = vmatpush.msra.mxu0 %v1713
        %v1715 = vand.u32 %v768, 4294901760
        %1716 = vmatpush.msra.mxu0 %v1715
        %v1717 = vand.u32 %v764, 4294901760
        %1718 = vmatpush.msra.mxu0 %v1717
        %v1719 = vand.u32 %v760, 4294901760
        %1720 = vmatpush.msra.mxu0 %v1719
        %v1721 = vand.u32 %v756, 4294901760
        %1722 = vmatpush.msra.mxu0 %v1721
        %v1723 = vand.u32 %v752, 4294901760
        %1724 = vmatpush.msra.mxu0 %v1723
        %v1725 = vand.u32 %v748, 4294901760
        %1726 = vmatpush.msra.mxu0 %v1725
        %v1727 = vand.u32 %v744, 4294901760
        %1728 = vmatpush.msra.mxu0 %v1727
        %v1729 = vand.u32 %v809, 4294901760
        %v1730 = vsub.f32 %v809, %v1729
        %v1731 = vand.u32 %v1730, 4294901760
        %1732 = vmatmul.f32.gmra.mxu0 %v1731
        %v1733 = vpop.f32.mrf.mxu0
        %v1734 = vadd.f32 %v1660, %v1733
        %v1735 = vand.u32 %v811, 4294901760
        %v1736 = vsub.f32 %v811, %v1735
        %v1737 = vand.u32 %v1736, 4294901760
        %1738 = vmatmul.f32.gmra.mxu0 %v1737
        %v1739 = vpop.f32.mrf.mxu0
        %v1740 = vadd.f32 %v1665, %v1739
        %v1741 = vand.u32 %v813, 4294901760
        %v1742 = vsub.f32 %v813, %v1741
        %v1743 = vand.u32 %v1742, 4294901760
        %1744 = vmatmul.f32.gmra.mxu0 %v1743
        %v1745 = vpop.f32.mrf.mxu0
        %v1746 = vadd.f32 %v1670, %v1745
        %v1747 = vand.u32 %v815, 4294901760
        %v1748 = vsub.f32 %v815, %v1747
        %v1749 = vand.u32 %v1748, 4294901760
        %1750 = vmatmul.f32.gmra.mxu0 %v1749
        %v1751 = vpop.f32.mrf.mxu0
        %v1752 = vadd.f32 %v1675, %v1751
        %v1753 = vand.u32 %v817, 4294901760
        %v1754 = vsub.f32 %v817, %v1753
        %v1755 = vand.u32 %v1754, 4294901760
        %1756 = vmatmul.f32.gmra.mxu0 %v1755
        %v1757 = vpop.f32.mrf.mxu0
        %v1758 = vadd.f32 %v1680, %v1757
        %v1759 = vand.u32 %v819, 4294901760
        %v1760 = vsub.f32 %v819, %v1759
        %v1761 = vand.u32 %v1760, 4294901760
        %1762 = vmatmul.f32.gmra.mxu0 %v1761
        %v1763 = vpop.f32.mrf.mxu0
        %v1764 = vadd.f32 %v1685, %v1763
        %v1765 = vand.u32 %v821, 4294901760
        %v1766 = vsub.f32 %v821, %v1765
        %v1767 = vand.u32 %v1766, 4294901760
        %1768 = vmatmul.f32.gmra.mxu0 %v1767
        %v1769 = vpop.f32.mrf.mxu0
        %v1770 = vadd.f32 %v1690, %v1769
        %v1771 = vand.u32 %v823, 4294901760
        %v1772 = vsub.f32 %v823, %v1771
        %v1773 = vand.u32 %v1772, 4294901760
        %1774 = vmatmul.f32.gmra.mxu0 %v1773
        %v1775 = vpop.f32.mrf.mxu0
        %v1776 = vadd.f32 %v1695, %v1775
        %1777 = vdwg.mxu0
        %v1778 = vand.u32 %v804, 4294901760
        %v1779 = vsub.f32 %v804, %v1778
        %v1780 = vand.u32 %v1779, 4294901760
        %1781 = vmatpush.msra.mxu0 %v1780
        %v1782 = vand.u32 %v800, 4294901760
        %v1783 = vsub.f32 %v800, %v1782
        %v1784 = vand.u32 %v1783, 4294901760
        %1785 = vmatpush.msra.mxu0 %v1784
        %v1786 = vand.u32 %v796, 4294901760
        %v1787 = vsub.f32 %v796, %v1786
        %v1788 = vand.u32 %v1787, 4294901760
        %1789 = vmatpush.msra.mxu0 %v1788
        %v1790 = vand.u32 %v792, 4294901760
        %v1791 = vsub.f32 %v792, %v1790
        %v1792 = vand.u32 %v1791, 4294901760
        %1793 = vmatpush.msra.mxu0 %v1792
        %v1794 = vand.u32 %v788, 4294901760
        %v1795 = vsub.f32 %v788, %v1794
        %v1796 = vand.u32 %v1795, 4294901760
        %1797 = vmatpush.msra.mxu0 %v1796
        %v1798 = vand.u32 %v784, 4294901760
        %v1799 = vsub.f32 %v784, %v1798
        %v1800 = vand.u32 %v1799, 4294901760
        %1801 = vmatpush.msra.mxu0 %v1800
        %v1802 = vand.u32 %v780, 4294901760
        %v1803 = vsub.f32 %v780, %v1802
        %v1804 = vand.u32 %v1803, 4294901760
        %1805 = vmatpush.msra.mxu0 %v1804
        %v1806 = vand.u32 %v776, 4294901760
        %v1807 = vsub.f32 %v776, %v1806
        %v1808 = vand.u32 %v1807, 4294901760
        %1809 = vmatpush.msra.mxu0 %v1808
        %v1810 = vand.u32 %v772, 4294901760
        %v1811 = vsub.f32 %v772, %v1810
        %v1812 = vand.u32 %v1811, 4294901760
        %1813 = vmatpush.msra.mxu0 %v1812
        %v1814 = vand.u32 %v768, 4294901760
        %v1815 = vsub.f32 %v768, %v1814
        %v1816 = vand.u32 %v1815, 4294901760
        %1817 = vmatpush.msra.mxu0 %v1816
        %v1818 = vand.u32 %v764, 4294901760
        %v1819 = vsub.f32 %v764, %v1818
        %v1820 = vand.u32 %v1819, 4294901760
        %1821 = vmatpush.msra.mxu0 %v1820
        %v1822 = vand.u32 %v760, 4294901760
        %v1823 = vsub.f32 %v760, %v1822
        %v1824 = vand.u32 %v1823, 4294901760
        %1825 = vmatpush.msra.mxu0 %v1824
        %v1826 = vand.u32 %v756, 4294901760
        %v1827 = vsub.f32 %v756, %v1826
        %v1828 = vand.u32 %v1827, 4294901760
        %1829 = vmatpush.msra.mxu0 %v1828
        %v1830 = vand.u32 %v752, 4294901760
        %v1831 = vsub.f32 %v752, %v1830
        %v1832 = vand.u32 %v1831, 4294901760
        %1833 = vmatpush.msra.mxu0 %v1832
        %v1834 = vand.u32 %v748, 4294901760
        %v1835 = vsub.f32 %v748, %v1834
        %v1836 = vand.u32 %v1835, 4294901760
        %1837 = vmatpush.msra.mxu0 %v1836
        %v1838 = vand.u32 %v744, 4294901760
        %v1839 = vsub.f32 %v744, %v1838
        %v1840 = vand.u32 %v1839, 4294901760
        %1841 = vmatpush.msra.mxu0 %v1840
        %v1842 = vand.u32 %v809, 4294901760
        %1843 = vmatmul.f32.gmra.mxu0 %v1842
        %v1844 = vpop.f32.mrf.mxu0
        %v1845 = vadd.f32 %v1734, %v1844
        %v1846 = vand.u32 %v811, 4294901760
        %1847 = vmatmul.f32.gmra.mxu0 %v1846
        %v1848 = vpop.f32.mrf.mxu0
        %v1849 = vadd.f32 %v1740, %v1848
        %v1850 = vand.u32 %v813, 4294901760
        %1851 = vmatmul.f32.gmra.mxu0 %v1850
        %v1852 = vpop.f32.mrf.mxu0
        %v1853 = vadd.f32 %v1746, %v1852
        %v1854 = vand.u32 %v815, 4294901760
        %1855 = vmatmul.f32.gmra.mxu0 %v1854
        %v1856 = vpop.f32.mrf.mxu0
        %v1857 = vadd.f32 %v1752, %v1856
        %v1858 = vand.u32 %v817, 4294901760
        %1859 = vmatmul.f32.gmra.mxu0 %v1858
        %v1860 = vpop.f32.mrf.mxu0
        %v1861 = vadd.f32 %v1758, %v1860
        %v1862 = vand.u32 %v819, 4294901760
        %1863 = vmatmul.f32.gmra.mxu0 %v1862
        %v1864 = vpop.f32.mrf.mxu0
        %v1865 = vadd.f32 %v1764, %v1864
        %v1866 = vand.u32 %v821, 4294901760
        %1867 = vmatmul.f32.gmra.mxu0 %v1866
        %v1868 = vpop.f32.mrf.mxu0
        %v1869 = vadd.f32 %v1770, %v1868
        %v1870 = vand.u32 %v823, 4294901760
        %1871 = vmatmul.f32.gmra.mxu0 %v1870
        %v1872 = vpop.f32.mrf.mxu0
        %v1873 = vadd.f32 %v1776, %v1872
        %1874 = vdwg.mxu0
        %v1875 = vand.u32 %v804, 4294901760
        %1876 = vmatpush.msra.mxu0 %v1875
        %v1877 = vand.u32 %v800, 4294901760
        %1878 = vmatpush.msra.mxu0 %v1877
        %v1879 = vand.u32 %v796, 4294901760
        %1880 = vmatpush.msra.mxu0 %v1879
        %v1881 = vand.u32 %v792, 4294901760
        %1882 = vmatpush.msra.mxu0 %v1881
        %v1883 = vand.u32 %v788, 4294901760
        %1884 = vmatpush.msra.mxu0 %v1883
        %v1885 = vand.u32 %v784, 4294901760
        %1886 = vmatpush.msra.mxu0 %v1885
        %v1887 = vand.u32 %v780, 4294901760
        %1888 = vmatpush.msra.mxu0 %v1887
        %v1889 = vand.u32 %v776, 4294901760
        %1890 = vmatpush.msra.mxu0 %v1889
        %v1891 = vand.u32 %v772, 4294901760
        %1892 = vmatpush.msra.mxu0 %v1891
        %v1893 = vand.u32 %v768, 4294901760
        %1894 = vmatpush.msra.mxu0 %v1893
        %v1895 = vand.u32 %v764, 4294901760
        %1896 = vmatpush.msra.mxu0 %v1895
        %v1897 = vand.u32 %v760, 4294901760
        %1898 = vmatpush.msra.mxu0 %v1897
        %v1899 = vand.u32 %v756, 4294901760
        %1900 = vmatpush.msra.mxu0 %v1899
        %v1901 = vand.u32 %v752, 4294901760
        %1902 = vmatpush.msra.mxu0 %v1901
        %v1903 = vand.u32 %v748, 4294901760
        %1904 = vmatpush.msra.mxu0 %v1903
        %v1905 = vand.u32 %v744, 4294901760
        %1906 = vmatpush.msra.mxu0 %v1905
        %v1907 = vand.u32 %v809, 4294901760
        %1908 = vmatmul.f32.gmra.mxu0 %v1907
        %v1909 = vpop.f32.mrf.mxu0
        %v1910 = vadd.f32 %v1845, %v1909
        %v1911 = vand.u32 %v811, 4294901760
        %1912 = vmatmul.f32.gmra.mxu0 %v1911
        %v1913 = vpop.f32.mrf.mxu0
        %v1914 = vadd.f32 %v1849, %v1913
        %v1915 = vand.u32 %v813, 4294901760
        %1916 = vmatmul.f32.gmra.mxu0 %v1915
        %v1917 = vpop.f32.mrf.mxu0
        %v1918 = vadd.f32 %v1853, %v1917
        %v1919 = vand.u32 %v815, 4294901760
        %1920 = vmatmul.f32.gmra.mxu0 %v1919
        %v1921 = vpop.f32.mrf.mxu0
        %v1922 = vadd.f32 %v1857, %v1921
        %v1923 = vand.u32 %v817, 4294901760
        %1924 = vmatmul.f32.gmra.mxu0 %v1923
        %v1925 = vpop.f32.mrf.mxu0
        %v1926 = vadd.f32 %v1861, %v1925
        %v1927 = vand.u32 %v819, 4294901760
        %1928 = vmatmul.f32.gmra.mxu0 %v1927
        %v1929 = vpop.f32.mrf.mxu0
        %v1930 = vadd.f32 %v1865, %v1929
        %v1931 = vand.u32 %v821, 4294901760
        %1932 = vmatmul.f32.gmra.mxu0 %v1931
        %v1933 = vpop.f32.mrf.mxu0
        %v1934 = vadd.f32 %v1869, %v1933
        %v1935 = vand.u32 %v823, 4294901760
        %1936 = vmatmul.f32.gmra.mxu0 %v1935
        %v1937 = vpop.f32.mrf.mxu0
        %v1938 = vadd.f32 %v1873, %v1937
        %1939 = vdwg.mxu0
        %v1940 = vand.u32 %v741, 4294901760
        %1941 = vmatpush.msra.mxu0 %v1940
        %v1942 = vand.u32 %v737, 4294901760
        %1943 = vmatpush.msra.mxu0 %v1942
        %v1944 = vand.u32 %v733, 4294901760
        %1945 = vmatpush.msra.mxu0 %v1944
        %v1946 = vand.u32 %v729, 4294901760
        %1947 = vmatpush.msra.mxu0 %v1946
        %v1948 = vand.u32 %v725, 4294901760
        %1949 = vmatpush.msra.mxu0 %v1948
        %v1950 = vand.u32 %v721, 4294901760
        %1951 = vmatpush.msra.mxu0 %v1950
        %v1952 = vand.u32 %v717, 4294901760
        %1953 = vmatpush.msra.mxu0 %v1952
        %v1954 = vand.u32 %v713, 4294901760
        %1955 = vmatpush.msra.mxu0 %v1954
        %v1956 = vand.u32 %v709, 4294901760
        %1957 = vmatpush.msra.mxu0 %v1956
        %v1958 = vand.u32 %v705, 4294901760
        %1959 = vmatpush.msra.mxu0 %v1958
        %v1960 = vand.u32 %v701, 4294901760
        %1961 = vmatpush.msra.mxu0 %v1960
        %v1962 = vand.u32 %v697, 4294901760
        %1963 = vmatpush.msra.mxu0 %v1962
        %v1964 = vand.u32 %v693, 4294901760
        %1965 = vmatpush.msra.mxu0 %v1964
        %v1966 = vand.u32 %v689, 4294901760
        %1967 = vmatpush.msra.mxu0 %v1966
        %v1968 = vand.u32 %v685, 4294901760
        %1969 = vmatpush.msra.mxu0 %v1968
        %v1970 = vand.u32 %v681, 4294901760
        %1971 = vmatpush.msra.mxu0 %v1970
        %v1972 = vand.u32 %v808, 4294901760
        %v1973 = vsub.f32 %v808, %v1972
        %v1974 = vand.u32 %v1973, 4294901760
        %v1975 = vsub.f32 %v1973, %v1974
        %v1976 = vand.u32 %v1975, 4294901760
        %1977 = vmatmul.f32.gmra.mxu0 %v1976
        %v1978 = vpop.f32.mrf.mxu0
        %v1979 = vadd.f32 0.0, %v1978
        %v1980 = vand.u32 %v810, 4294901760
        %v1981 = vsub.f32 %v810, %v1980
        %v1982 = vand.u32 %v1981, 4294901760
        %v1983 = vsub.f32 %v1981, %v1982
        %v1984 = vand.u32 %v1983, 4294901760
        %1985 = vmatmul.f32.gmra.mxu0 %v1984
        %v1986 = vpop.f32.mrf.mxu0
        %v1987 = vadd.f32 0.0, %v1986
        %v1988 = vand.u32 %v812, 4294901760
        %v1989 = vsub.f32 %v812, %v1988
        %v1990 = vand.u32 %v1989, 4294901760
        %v1991 = vsub.f32 %v1989, %v1990
        %v1992 = vand.u32 %v1991, 4294901760
        %1993 = vmatmul.f32.gmra.mxu0 %v1992
        %v1994 = vpop.f32.mrf.mxu0
        %v1995 = vadd.f32 0.0, %v1994
        %v1996 = vand.u32 %v814, 4294901760
        %v1997 = vsub.f32 %v814, %v1996
        %v1998 = vand.u32 %v1997, 4294901760
        %v1999 = vsub.f32 %v1997, %v1998
        %v2000 = vand.u32 %v1999, 4294901760
        %2001 = vmatmul.f32.gmra.mxu0 %v2000
        %v2002 = vpop.f32.mrf.mxu0
        %v2003 = vadd.f32 0.0, %v2002
        %v2004 = vand.u32 %v816, 4294901760
        %v2005 = vsub.f32 %v816, %v2004
        %v2006 = vand.u32 %v2005, 4294901760
        %v2007 = vsub.f32 %v2005, %v2006
        %v2008 = vand.u32 %v2007, 4294901760
        %2009 = vmatmul.f32.gmra.mxu0 %v2008
        %v2010 = vpop.f32.mrf.mxu0
        %v2011 = vadd.f32 0.0, %v2010
        %v2012 = vand.u32 %v818, 4294901760
        %v2013 = vsub.f32 %v818, %v2012
        %v2014 = vand.u32 %v2013, 4294901760
        %v2015 = vsub.f32 %v2013, %v2014
        %v2016 = vand.u32 %v2015, 4294901760
        %2017 = vmatmul.f32.gmra.mxu0 %v2016
        %v2018 = vpop.f32.mrf.mxu0
        %v2019 = vadd.f32 0.0, %v2018
        %v2020 = vand.u32 %v820, 4294901760
        %v2021 = vsub.f32 %v820, %v2020
        %v2022 = vand.u32 %v2021, 4294901760
        %v2023 = vsub.f32 %v2021, %v2022
        %v2024 = vand.u32 %v2023, 4294901760
        %2025 = vmatmul.f32.gmra.mxu0 %v2024
        %v2026 = vpop.f32.mrf.mxu0
        %v2027 = vadd.f32 0.0, %v2026
        %v2028 = vand.u32 %v822, 4294901760
        %v2029 = vsub.f32 %v822, %v2028
        %v2030 = vand.u32 %v2029, 4294901760
        %v2031 = vsub.f32 %v2029, %v2030
        %v2032 = vand.u32 %v2031, 4294901760
        %2033 = vmatmul.f32.gmra.mxu0 %v2032
        %v2034 = vpop.f32.mrf.mxu0
        %v2035 = vadd.f32 0.0, %v2034
        %2036 = vdwg.mxu0
        %v2037 = vand.u32 %v741, 4294901760
        %v2038 = vsub.f32 %v741, %v2037
        %v2039 = vand.u32 %v2038, 4294901760
        %v2040 = vsub.f32 %v2038, %v2039
        %v2041 = vand.u32 %v2040, 4294901760
        %2042 = vmatpush.msra.mxu0 %v2041
        %v2043 = vand.u32 %v737, 4294901760
        %v2044 = vsub.f32 %v737, %v2043
        %v2045 = vand.u32 %v2044, 4294901760
        %v2046 = vsub.f32 %v2044, %v2045
        %v2047 = vand.u32 %v2046, 4294901760
        %2048 = vmatpush.msra.mxu0 %v2047
        %v2049 = vand.u32 %v733, 4294901760
        %v2050 = vsub.f32 %v733, %v2049
        %v2051 = vand.u32 %v2050, 4294901760
        %v2052 = vsub.f32 %v2050, %v2051
        %v2053 = vand.u32 %v2052, 4294901760
        %2054 = vmatpush.msra.mxu0 %v2053
        %v2055 = vand.u32 %v729, 4294901760
        %v2056 = vsub.f32 %v729, %v2055
        %v2057 = vand.u32 %v2056, 4294901760
        %v2058 = vsub.f32 %v2056, %v2057
        %v2059 = vand.u32 %v2058, 4294901760
        %2060 = vmatpush.msra.mxu0 %v2059
        %v2061 = vand.u32 %v725, 4294901760
        %v2062 = vsub.f32 %v725, %v2061
        %v2063 = vand.u32 %v2062, 4294901760
        %v2064 = vsub.f32 %v2062, %v2063
        %v2065 = vand.u32 %v2064, 4294901760
        %2066 = vmatpush.msra.mxu0 %v2065
        %v2067 = vand.u32 %v721, 4294901760
        %v2068 = vsub.f32 %v721, %v2067
        %v2069 = vand.u32 %v2068, 4294901760
        %v2070 = vsub.f32 %v2068, %v2069
        %v2071 = vand.u32 %v2070, 4294901760
        %2072 = vmatpush.msra.mxu0 %v2071
        %v2073 = vand.u32 %v717, 4294901760
        %v2074 = vsub.f32 %v717, %v2073
        %v2075 = vand.u32 %v2074, 4294901760
        %v2076 = vsub.f32 %v2074, %v2075
        %v2077 = vand.u32 %v2076, 4294901760
        %2078 = vmatpush.msra.mxu0 %v2077
        %v2079 = vand.u32 %v713, 4294901760
        %v2080 = vsub.f32 %v713, %v2079
        %v2081 = vand.u32 %v2080, 4294901760
        %v2082 = vsub.f32 %v2080, %v2081
        %v2083 = vand.u32 %v2082, 4294901760
        %2084 = vmatpush.msra.mxu0 %v2083
        %v2085 = vand.u32 %v709, 4294901760
        %v2086 = vsub.f32 %v709, %v2085
        %v2087 = vand.u32 %v2086, 4294901760
        %v2088 = vsub.f32 %v2086, %v2087
        %v2089 = vand.u32 %v2088, 4294901760
        %2090 = vmatpush.msra.mxu0 %v2089
        %v2091 = vand.u32 %v705, 4294901760
        %v2092 = vsub.f32 %v705, %v2091
        %v2093 = vand.u32 %v2092, 4294901760
        %v2094 = vsub.f32 %v2092, %v2093
        %v2095 = vand.u32 %v2094, 4294901760
        %2096 = vmatpush.msra.mxu0 %v2095
        %v2097 = vand.u32 %v701, 4294901760
        %v2098 = vsub.f32 %v701, %v2097
        %v2099 = vand.u32 %v2098, 4294901760
        %v2100 = vsub.f32 %v2098, %v2099
        %v2101 = vand.u32 %v2100, 4294901760
        %2102 = vmatpush.msra.mxu0 %v2101
        %v2103 = vand.u32 %v697, 4294901760
        %v2104 = vsub.f32 %v697, %v2103
        %v2105 = vand.u32 %v2104, 4294901760
        %v2106 = vsub.f32 %v2104, %v2105
        %v2107 = vand.u32 %v2106, 4294901760
        %2108 = vmatpush.msra.mxu0 %v2107
        %v2109 = vand.u32 %v693, 4294901760
        %v2110 = vsub.f32 %v693, %v2109
        %v2111 = vand.u32 %v2110, 4294901760
        %v2112 = vsub.f32 %v2110, %v2111
        %v2113 = vand.u32 %v2112, 4294901760
        %2114 = vmatpush.msra.mxu0 %v2113
        %v2115 = vand.u32 %v689, 4294901760
        %v2116 = vsub.f32 %v689, %v2115
        %v2117 = vand.u32 %v2116, 4294901760
        %v2118 = vsub.f32 %v2116, %v2117
        %v2119 = vand.u32 %v2118, 4294901760
        %2120 = vmatpush.msra.mxu0 %v2119
        %v2121 = vand.u32 %v685, 4294901760
        %v2122 = vsub.f32 %v685, %v2121
        %v2123 = vand.u32 %v2122, 4294901760
        %v2124 = vsub.f32 %v2122, %v2123
        %v2125 = vand.u32 %v2124, 4294901760
        %2126 = vmatpush.msra.mxu0 %v2125
        %v2127 = vand.u32 %v681, 4294901760
        %v2128 = vsub.f32 %v681, %v2127
        %v2129 = vand.u32 %v2128, 4294901760
        %v2130 = vsub.f32 %v2128, %v2129
        %v2131 = vand.u32 %v2130, 4294901760
        %2132 = vmatpush.msra.mxu0 %v2131
        %v2133 = vand.u32 %v808, 4294901760
        %2134 = vmatmul.f32.gmra.mxu0 %v2133
        %v2135 = vpop.f32.mrf.mxu0
        %v2136 = vadd.f32 %v1979, %v2135
        %v2137 = vand.u32 %v810, 4294901760
        %2138 = vmatmul.f32.gmra.mxu0 %v2137
        %v2139 = vpop.f32.mrf.mxu0
        %v2140 = vadd.f32 %v1987, %v2139
        %v2141 = vand.u32 %v812, 4294901760
        %2142 = vmatmul.f32.gmra.mxu0 %v2141
        %v2143 = vpop.f32.mrf.mxu0
        %v2144 = vadd.f32 %v1995, %v2143
        %v2145 = vand.u32 %v814, 4294901760
        %2146 = vmatmul.f32.gmra.mxu0 %v2145
        %v2147 = vpop.f32.mrf.mxu0
        %v2148 = vadd.f32 %v2003, %v2147
        %v2149 = vand.u32 %v816, 4294901760
        %2150 = vmatmul.f32.gmra.mxu0 %v2149
        %v2151 = vpop.f32.mrf.mxu0
        %v2152 = vadd.f32 %v2011, %v2151
        %v2153 = vand.u32 %v818, 4294901760
        %2154 = vmatmul.f32.gmra.mxu0 %v2153
        %v2155 = vpop.f32.mrf.mxu0
        %v2156 = vadd.f32 %v2019, %v2155
        %v2157 = vand.u32 %v820, 4294901760
        %2158 = vmatmul.f32.gmra.mxu0 %v2157
        %v2159 = vpop.f32.mrf.mxu0
        %v2160 = vadd.f32 %v2027, %v2159
        %v2161 = vand.u32 %v822, 4294901760
        %2162 = vmatmul.f32.gmra.mxu0 %v2161
        %v2163 = vpop.f32.mrf.mxu0
        %v2164 = vadd.f32 %v2035, %v2163
        %2165 = vdwg.mxu0
        %v2166 = vand.u32 %v741, 4294901760
        %v2167 = vsub.f32 %v741, %v2166
        %2168 = vmatpush.msra.mxu0 %v2167
        %v2169 = vand.u32 %v737, 4294901760
        %v2170 = vsub.f32 %v737, %v2169
        %2171 = vmatpush.msra.mxu0 %v2170
        %v2172 = vand.u32 %v733, 4294901760
        %v2173 = vsub.f32 %v733, %v2172
        %2174 = vmatpush.msra.mxu0 %v2173
        %v2175 = vand.u32 %v729, 4294901760
        %v2176 = vsub.f32 %v729, %v2175
        %2177 = vmatpush.msra.mxu0 %v2176
        %v2178 = vand.u32 %v725, 4294901760
        %v2179 = vsub.f32 %v725, %v2178
        %2180 = vmatpush.msra.mxu0 %v2179
        %v2181 = vand.u32 %v721, 4294901760
        %v2182 = vsub.f32 %v721, %v2181
        %2183 = vmatpush.msra.mxu0 %v2182
        %v2184 = vand.u32 %v717, 4294901760
        %v2185 = vsub.f32 %v717, %v2184
        %2186 = vmatpush.msra.mxu0 %v2185
        %v2187 = vand.u32 %v713, 4294901760
        %v2188 = vsub.f32 %v713, %v2187
        %2189 = vmatpush.msra.mxu0 %v2188
        %v2190 = vand.u32 %v709, 4294901760
        %v2191 = vsub.f32 %v709, %v2190
        %2192 = vmatpush.msra.mxu0 %v2191
        %v2193 = vand.u32 %v705, 4294901760
        %v2194 = vsub.f32 %v705, %v2193
        %2195 = vmatpush.msra.mxu0 %v2194
        %v2196 = vand.u32 %v701, 4294901760
        %v2197 = vsub.f32 %v701, %v2196
        %2198 = vmatpush.msra.mxu0 %v2197
        %v2199 = vand.u32 %v697, 4294901760
        %v2200 = vsub.f32 %v697, %v2199
        %2201 = vmatpush.msra.mxu0 %v2200
        %v2202 = vand.u32 %v693, 4294901760
        %v2203 = vsub.f32 %v693, %v2202
        %2204 = vmatpush.msra.mxu0 %v2203
        %v2205 = vand.u32 %v689, 4294901760
        %v2206 = vsub.f32 %v689, %v2205
        %2207 = vmatpush.msra.mxu0 %v2206
        %v2208 = vand.u32 %v685, 4294901760
        %v2209 = vsub.f32 %v685, %v2208
        %2210 = vmatpush.msra.mxu0 %v2209
        %v2211 = vand.u32 %v681, 4294901760
        %v2212 = vsub.f32 %v681, %v2211
        %2213 = vmatpush.msra.mxu0 %v2212
        %v2214 = vand.u32 %v808, 4294901760
        %v2215 = vsub.f32 %v808, %v2214
        %2216 = vmatmul.f32.gmra.mxu0 %v2215
        %v2217 = vpop.f32.mrf.mxu0
        %v2218 = vadd.f32 %v2136, %v2217
        %v2219 = vand.u32 %v810, 4294901760
        %v2220 = vsub.f32 %v810, %v2219
        %2221 = vmatmul.f32.gmra.mxu0 %v2220
        %v2222 = vpop.f32.mrf.mxu0
        %v2223 = vadd.f32 %v2140, %v2222
        %v2224 = vand.u32 %v812, 4294901760
        %v2225 = vsub.f32 %v812, %v2224
        %2226 = vmatmul.f32.gmra.mxu0 %v2225
        %v2227 = vpop.f32.mrf.mxu0
        %v2228 = vadd.f32 %v2144, %v2227
        %v2229 = vand.u32 %v814, 4294901760
        %v2230 = vsub.f32 %v814, %v2229
        %2231 = vmatmul.f32.gmra.mxu0 %v2230
        %v2232 = vpop.f32.mrf.mxu0
        %v2233 = vadd.f32 %v2148, %v2232
        %v2234 = vand.u32 %v816, 4294901760
        %v2235 = vsub.f32 %v816, %v2234
        %2236 = vmatmul.f32.gmra.mxu0 %v2235
        %v2237 = vpop.f32.mrf.mxu0
        %v2238 = vadd.f32 %v2152, %v2237
        %v2239 = vand.u32 %v818, 4294901760
        %v2240 = vsub.f32 %v818, %v2239
        %2241 = vmatmul.f32.gmra.mxu0 %v2240
        %v2242 = vpop.f32.mrf.mxu0
        %v2243 = vadd.f32 %v2156, %v2242
        %v2244 = vand.u32 %v820, 4294901760
        %v2245 = vsub.f32 %v820, %v2244
        %2246 = vmatmul.f32.gmra.mxu0 %v2245
        %v2247 = vpop.f32.mrf.mxu0
        %v2248 = vadd.f32 %v2160, %v2247
        %v2249 = vand.u32 %v822, 4294901760
        %v2250 = vsub.f32 %v822, %v2249
        %2251 = vmatmul.f32.gmra.mxu0 %v2250
        %v2252 = vpop.f32.mrf.mxu0
        %v2253 = vadd.f32 %v2164, %v2252
        %2254 = vdwg.mxu0
        %v2255 = vand.u32 %v741, 4294901760
        %2256 = vmatpush.msra.mxu0 %v2255
        %v2257 = vand.u32 %v737, 4294901760
        %2258 = vmatpush.msra.mxu0 %v2257
        %v2259 = vand.u32 %v733, 4294901760
        %2260 = vmatpush.msra.mxu0 %v2259
        %v2261 = vand.u32 %v729, 4294901760
        %2262 = vmatpush.msra.mxu0 %v2261
        %v2263 = vand.u32 %v725, 4294901760
        %2264 = vmatpush.msra.mxu0 %v2263
        %v2265 = vand.u32 %v721, 4294901760
        %2266 = vmatpush.msra.mxu0 %v2265
        %v2267 = vand.u32 %v717, 4294901760
        %2268 = vmatpush.msra.mxu0 %v2267
        %v2269 = vand.u32 %v713, 4294901760
        %2270 = vmatpush.msra.mxu0 %v2269
        %v2271 = vand.u32 %v709, 4294901760
        %2272 = vmatpush.msra.mxu0 %v2271
        %v2273 = vand.u32 %v705, 4294901760
        %2274 = vmatpush.msra.mxu0 %v2273
        %v2275 = vand.u32 %v701, 4294901760
        %2276 = vmatpush.msra.mxu0 %v2275
        %v2277 = vand.u32 %v697, 4294901760
        %2278 = vmatpush.msra.mxu0 %v2277
        %v2279 = vand.u32 %v693, 4294901760
        %2280 = vmatpush.msra.mxu0 %v2279
        %v2281 = vand.u32 %v689, 4294901760
        %2282 = vmatpush.msra.mxu0 %v2281
        %v2283 = vand.u32 %v685, 4294901760
        %2284 = vmatpush.msra.mxu0 %v2283
        %v2285 = vand.u32 %v681, 4294901760
        %2286 = vmatpush.msra.mxu0 %v2285
        %v2287 = vand.u32 %v808, 4294901760
        %v2288 = vsub.f32 %v808, %v2287
        %v2289 = vand.u32 %v2288, 4294901760
        %2290 = vmatmul.f32.gmra.mxu0 %v2289
        %v2291 = vpop.f32.mrf.mxu0
        %v2292 = vadd.f32 %v2218, %v2291
        %v2293 = vand.u32 %v810, 4294901760
        %v2294 = vsub.f32 %v810, %v2293
        %v2295 = vand.u32 %v2294, 4294901760
        %2296 = vmatmul.f32.gmra.mxu0 %v2295
        %v2297 = vpop.f32.mrf.mxu0
        %v2298 = vadd.f32 %v2223, %v2297
        %v2299 = vand.u32 %v812, 4294901760
        %v2300 = vsub.f32 %v812, %v2299
        %v2301 = vand.u32 %v2300, 4294901760
        %2302 = vmatmul.f32.gmra.mxu0 %v2301
        %v2303 = vpop.f32.mrf.mxu0
        %v2304 = vadd.f32 %v2228, %v2303
        %v2305 = vand.u32 %v814, 4294901760
        %v2306 = vsub.f32 %v814, %v2305
        %v2307 = vand.u32 %v2306, 4294901760
        %2308 = vmatmul.f32.gmra.mxu0 %v2307
        %v2309 = vpop.f32.mrf.mxu0
        %v2310 = vadd.f32 %v2233, %v2309
        %v2311 = vand.u32 %v816, 4294901760
        %v2312 = vsub.f32 %v816, %v2311
        %v2313 = vand.u32 %v2312, 4294901760
        %2314 = vmatmul.f32.gmra.mxu0 %v2313
        %v2315 = vpop.f32.mrf.mxu0
        %v2316 = vadd.f32 %v2238, %v2315
        %v2317 = vand.u32 %v818, 4294901760
        %v2318 = vsub.f32 %v818, %v2317
        %v2319 = vand.u32 %v2318, 4294901760
        %2320 = vmatmul.f32.gmra.mxu0 %v2319
        %v2321 = vpop.f32.mrf.mxu0
        %v2322 = vadd.f32 %v2243, %v2321
        %v2323 = vand.u32 %v820, 4294901760
        %v2324 = vsub.f32 %v820, %v2323
        %v2325 = vand.u32 %v2324, 4294901760
        %2326 = vmatmul.f32.gmra.mxu0 %v2325
        %v2327 = vpop.f32.mrf.mxu0
        %v2328 = vadd.f32 %v2248, %v2327
        %v2329 = vand.u32 %v822, 4294901760
        %v2330 = vsub.f32 %v822, %v2329
        %v2331 = vand.u32 %v2330, 4294901760
        %2332 = vmatmul.f32.gmra.mxu0 %v2331
        %v2333 = vpop.f32.mrf.mxu0
        %v2334 = vadd.f32 %v2253, %v2333
        %2335 = vdwg.mxu0
        %v2336 = vand.u32 %v741, 4294901760
        %v2337 = vsub.f32 %v741, %v2336
        %v2338 = vand.u32 %v2337, 4294901760
        %2339 = vmatpush.msra.mxu0 %v2338
        %v2340 = vand.u32 %v737, 4294901760
        %v2341 = vsub.f32 %v737, %v2340
        %v2342 = vand.u32 %v2341, 4294901760
        %2343 = vmatpush.msra.mxu0 %v2342
        %v2344 = vand.u32 %v733, 4294901760
        %v2345 = vsub.f32 %v733, %v2344
        %v2346 = vand.u32 %v2345, 4294901760
        %2347 = vmatpush.msra.mxu0 %v2346
        %v2348 = vand.u32 %v729, 4294901760
        %v2349 = vsub.f32 %v729, %v2348
        %v2350 = vand.u32 %v2349, 4294901760
        %2351 = vmatpush.msra.mxu0 %v2350
        %v2352 = vand.u32 %v725, 4294901760
        %v2353 = vsub.f32 %v725, %v2352
        %v2354 = vand.u32 %v2353, 4294901760
        %2355 = vmatpush.msra.mxu0 %v2354
        %v2356 = vand.u32 %v721, 4294901760
        %v2357 = vsub.f32 %v721, %v2356
        %v2358 = vand.u32 %v2357, 4294901760
        %2359 = vmatpush.msra.mxu0 %v2358
        %v2360 = vand.u32 %v717, 4294901760
        %v2361 = vsub.f32 %v717, %v2360
        %v2362 = vand.u32 %v2361, 4294901760
        %2363 = vmatpush.msra.mxu0 %v2362
        %v2364 = vand.u32 %v713, 4294901760
        %v2365 = vsub.f32 %v713, %v2364
        %v2366 = vand.u32 %v2365, 4294901760
        %2367 = vmatpush.msra.mxu0 %v2366
        %v2368 = vand.u32 %v709, 4294901760
        %v2369 = vsub.f32 %v709, %v2368
        %v2370 = vand.u32 %v2369, 4294901760
        %2371 = vmatpush.msra.mxu0 %v2370
        %v2372 = vand.u32 %v705, 4294901760
        %v2373 = vsub.f32 %v705, %v2372
        %v2374 = vand.u32 %v2373, 4294901760
        %2375 = vmatpush.msra.mxu0 %v2374
        %v2376 = vand.u32 %v701, 4294901760
        %v2377 = vsub.f32 %v701, %v2376
        %v2378 = vand.u32 %v2377, 4294901760
        %2379 = vmatpush.msra.mxu0 %v2378
        %v2380 = vand.u32 %v697, 4294901760
        %v2381 = vsub.f32 %v697, %v2380
        %v2382 = vand.u32 %v2381, 4294901760
        %2383 = vmatpush.msra.mxu0 %v2382
        %v2384 = vand.u32 %v693, 4294901760
        %v2385 = vsub.f32 %v693, %v2384
        %v2386 = vand.u32 %v2385, 4294901760
        %2387 = vmatpush.msra.mxu0 %v2386
        %v2388 = vand.u32 %v689, 4294901760
        %v2389 = vsub.f32 %v689, %v2388
        %v2390 = vand.u32 %v2389, 4294901760
        %2391 = vmatpush.msra.mxu0 %v2390
        %v2392 = vand.u32 %v685, 4294901760
        %v2393 = vsub.f32 %v685, %v2392
        %v2394 = vand.u32 %v2393, 4294901760
        %2395 = vmatpush.msra.mxu0 %v2394
        %v2396 = vand.u32 %v681, 4294901760
        %v2397 = vsub.f32 %v681, %v2396
        %v2398 = vand.u32 %v2397, 4294901760
        %2399 = vmatpush.msra.mxu0 %v2398
        %v2400 = vand.u32 %v808, 4294901760
        %2401 = vmatmul.f32.gmra.mxu0 %v2400
        %v2402 = vpop.f32.mrf.mxu0
        %v2403 = vadd.f32 %v2292, %v2402
        %v2404 = vand.u32 %v810, 4294901760
        %2405 = vmatmul.f32.gmra.mxu0 %v2404
        %v2406 = vpop.f32.mrf.mxu0
        %v2407 = vadd.f32 %v2298, %v2406
        %v2408 = vand.u32 %v812, 4294901760
        %2409 = vmatmul.f32.gmra.mxu0 %v2408
        %v2410 = vpop.f32.mrf.mxu0
        %v2411 = vadd.f32 %v2304, %v2410
        %v2412 = vand.u32 %v814, 4294901760
        %2413 = vmatmul.f32.gmra.mxu0 %v2412
        %v2414 = vpop.f32.mrf.mxu0
        %v2415 = vadd.f32 %v2310, %v2414
        %v2416 = vand.u32 %v816, 4294901760
        %2417 = vmatmul.f32.gmra.mxu0 %v2416
        %v2418 = vpop.f32.mrf.mxu0
        %v2419 = vadd.f32 %v2316, %v2418
        %v2420 = vand.u32 %v818, 4294901760
        %2421 = vmatmul.f32.gmra.mxu0 %v2420
        %v2422 = vpop.f32.mrf.mxu0
        %v2423 = vadd.f32 %v2322, %v2422
        %v2424 = vand.u32 %v820, 4294901760
        %2425 = vmatmul.f32.gmra.mxu0 %v2424
        %v2426 = vpop.f32.mrf.mxu0
        %v2427 = vadd.f32 %v2328, %v2426
        %v2428 = vand.u32 %v822, 4294901760
        %2429 = vmatmul.f32.gmra.mxu0 %v2428
        %v2430 = vpop.f32.mrf.mxu0
        %v2431 = vadd.f32 %v2334, %v2430
        %2432 = vdwg.mxu0
        %v2433 = vand.u32 %v741, 4294901760
        %2434 = vmatpush.msra.mxu0 %v2433
        %v2435 = vand.u32 %v737, 4294901760
        %2436 = vmatpush.msra.mxu0 %v2435
        %v2437 = vand.u32 %v733, 4294901760
        %2438 = vmatpush.msra.mxu0 %v2437
        %v2439 = vand.u32 %v729, 4294901760
        %2440 = vmatpush.msra.mxu0 %v2439
        %v2441 = vand.u32 %v725, 4294901760
        %2442 = vmatpush.msra.mxu0 %v2441
        %v2443 = vand.u32 %v721, 4294901760
        %2444 = vmatpush.msra.mxu0 %v2443
        %v2445 = vand.u32 %v717, 4294901760
        %2446 = vmatpush.msra.mxu0 %v2445
        %v2447 = vand.u32 %v713, 4294901760
        %2448 = vmatpush.msra.mxu0 %v2447
        %v2449 = vand.u32 %v709, 4294901760
        %2450 = vmatpush.msra.mxu0 %v2449
        %v2451 = vand.u32 %v705, 4294901760
        %2452 = vmatpush.msra.mxu0 %v2451
        %v2453 = vand.u32 %v701, 4294901760
        %2454 = vmatpush.msra.mxu0 %v2453
        %v2455 = vand.u32 %v697, 4294901760
        %2456 = vmatpush.msra.mxu0 %v2455
        %v2457 = vand.u32 %v693, 4294901760
        %2458 = vmatpush.msra.mxu0 %v2457
        %v2459 = vand.u32 %v689, 4294901760
        %2460 = vmatpush.msra.mxu0 %v2459
        %v2461 = vand.u32 %v685, 4294901760
        %2462 = vmatpush.msra.mxu0 %v2461
        %v2463 = vand.u32 %v681, 4294901760
        %2464 = vmatpush.msra.mxu0 %v2463
        %v2465 = vand.u32 %v808, 4294901760
        %2466 = vmatmul.f32.gmra.mxu0 %v2465
        %v2467 = vpop.f32.mrf.mxu0
        %v2468 = vadd.f32 %v2403, %v2467
        %v2469 = vand.u32 %v810, 4294901760
        %2470 = vmatmul.f32.gmra.mxu0 %v2469
        %v2471 = vpop.f32.mrf.mxu0
        %v2472 = vadd.f32 %v2407, %v2471
        %v2473 = vand.u32 %v812, 4294901760
        %2474 = vmatmul.f32.gmra.mxu0 %v2473
        %v2475 = vpop.f32.mrf.mxu0
        %v2476 = vadd.f32 %v2411, %v2475
        %v2477 = vand.u32 %v814, 4294901760
        %2478 = vmatmul.f32.gmra.mxu0 %v2477
        %v2479 = vpop.f32.mrf.mxu0
        %v2480 = vadd.f32 %v2415, %v2479
        %v2481 = vand.u32 %v816, 4294901760
        %2482 = vmatmul.f32.gmra.mxu0 %v2481
        %v2483 = vpop.f32.mrf.mxu0
        %v2484 = vadd.f32 %v2419, %v2483
        %v2485 = vand.u32 %v818, 4294901760
        %2486 = vmatmul.f32.gmra.mxu0 %v2485
        %v2487 = vpop.f32.mrf.mxu0
        %v2488 = vadd.f32 %v2423, %v2487
        %v2489 = vand.u32 %v820, 4294901760
        %2490 = vmatmul.f32.gmra.mxu0 %v2489
        %v2491 = vpop.f32.mrf.mxu0
        %v2492 = vadd.f32 %v2427, %v2491
        %v2493 = vand.u32 %v822, 4294901760
        %2494 = vmatmul.f32.gmra.mxu0 %v2493
        %v2495 = vpop.f32.mrf.mxu0
        %v2496 = vadd.f32 %v2431, %v2495
        %2497 = vdwg.mxu0
        %v2498 = vand.u32 %v805, 4294901760
        %2499 = vmatpush.msra.mxu0 %v2498
        %v2500 = vand.u32 %v801, 4294901760
        %2501 = vmatpush.msra.mxu0 %v2500
        %v2502 = vand.u32 %v797, 4294901760
        %2503 = vmatpush.msra.mxu0 %v2502
        %v2504 = vand.u32 %v793, 4294901760
        %2505 = vmatpush.msra.mxu0 %v2504
        %v2506 = vand.u32 %v789, 4294901760
        %2507 = vmatpush.msra.mxu0 %v2506
        %v2508 = vand.u32 %v785, 4294901760
        %2509 = vmatpush.msra.mxu0 %v2508
        %v2510 = vand.u32 %v781, 4294901760
        %2511 = vmatpush.msra.mxu0 %v2510
        %v2512 = vand.u32 %v777, 4294901760
        %2513 = vmatpush.msra.mxu0 %v2512
        %v2514 = vand.u32 %v773, 4294901760
        %2515 = vmatpush.msra.mxu0 %v2514
        %v2516 = vand.u32 %v769, 4294901760
        %2517 = vmatpush.msra.mxu0 %v2516
        %v2518 = vand.u32 %v765, 4294901760
        %2519 = vmatpush.msra.mxu0 %v2518
        %v2520 = vand.u32 %v761, 4294901760
        %2521 = vmatpush.msra.mxu0 %v2520
        %v2522 = vand.u32 %v757, 4294901760
        %2523 = vmatpush.msra.mxu0 %v2522
        %v2524 = vand.u32 %v753, 4294901760
        %2525 = vmatpush.msra.mxu0 %v2524
        %v2526 = vand.u32 %v749, 4294901760
        %2527 = vmatpush.msra.mxu0 %v2526
        %v2528 = vand.u32 %v745, 4294901760
        %2529 = vmatpush.msra.mxu0 %v2528
        %v2530 = vand.u32 %v809, 4294901760
        %v2531 = vsub.f32 %v809, %v2530
        %v2532 = vand.u32 %v2531, 4294901760
        %v2533 = vsub.f32 %v2531, %v2532
        %v2534 = vand.u32 %v2533, 4294901760
        %2535 = vmatmul.f32.gmra.mxu0 %v2534
        %v2536 = vpop.f32.mrf.mxu0
        %v2537 = vadd.f32 %v2468, %v2536
        %v2538 = vand.u32 %v811, 4294901760
        %v2539 = vsub.f32 %v811, %v2538
        %v2540 = vand.u32 %v2539, 4294901760
        %v2541 = vsub.f32 %v2539, %v2540
        %v2542 = vand.u32 %v2541, 4294901760
        %2543 = vmatmul.f32.gmra.mxu0 %v2542
        %v2544 = vpop.f32.mrf.mxu0
        %v2545 = vadd.f32 %v2472, %v2544
        %v2546 = vand.u32 %v813, 4294901760
        %v2547 = vsub.f32 %v813, %v2546
        %v2548 = vand.u32 %v2547, 4294901760
        %v2549 = vsub.f32 %v2547, %v2548
        %v2550 = vand.u32 %v2549, 4294901760
        %2551 = vmatmul.f32.gmra.mxu0 %v2550
        %v2552 = vpop.f32.mrf.mxu0
        %v2553 = vadd.f32 %v2476, %v2552
        %v2554 = vand.u32 %v815, 4294901760
        %v2555 = vsub.f32 %v815, %v2554
        %v2556 = vand.u32 %v2555, 4294901760
        %v2557 = vsub.f32 %v2555, %v2556
        %v2558 = vand.u32 %v2557, 4294901760
        %2559 = vmatmul.f32.gmra.mxu0 %v2558
        %v2560 = vpop.f32.mrf.mxu0
        %v2561 = vadd.f32 %v2480, %v2560
        %v2562 = vand.u32 %v817, 4294901760
        %v2563 = vsub.f32 %v817, %v2562
        %v2564 = vand.u32 %v2563, 4294901760
        %v2565 = vsub.f32 %v2563, %v2564
        %v2566 = vand.u32 %v2565, 4294901760
        %2567 = vmatmul.f32.gmra.mxu0 %v2566
        %v2568 = vpop.f32.mrf.mxu0
        %v2569 = vadd.f32 %v2484, %v2568
        %v2570 = vand.u32 %v819, 4294901760
        %v2571 = vsub.f32 %v819, %v2570
        %v2572 = vand.u32 %v2571, 4294901760
        %v2573 = vsub.f32 %v2571, %v2572
        %v2574 = vand.u32 %v2573, 4294901760
        %2575 = vmatmul.f32.gmra.mxu0 %v2574
        %v2576 = vpop.f32.mrf.mxu0
        %v2577 = vadd.f32 %v2488, %v2576
        %v2578 = vand.u32 %v821, 4294901760
        %v2579 = vsub.f32 %v821, %v2578
        %v2580 = vand.u32 %v2579, 4294901760
        %v2581 = vsub.f32 %v2579, %v2580
        %v2582 = vand.u32 %v2581, 4294901760
        %2583 = vmatmul.f32.gmra.mxu0 %v2582
        %v2584 = vpop.f32.mrf.mxu0
        %v2585 = vadd.f32 %v2492, %v2584
        %v2586 = vand.u32 %v823, 4294901760
        %v2587 = vsub.f32 %v823, %v2586
        %v2588 = vand.u32 %v2587, 4294901760
        %v2589 = vsub.f32 %v2587, %v2588
        %v2590 = vand.u32 %v2589, 4294901760
        %2591 = vmatmul.f32.gmra.mxu0 %v2590
        %v2592 = vpop.f32.mrf.mxu0
        %v2593 = vadd.f32 %v2496, %v2592
        %2594 = vdwg.mxu0
        %v2595 = vand.u32 %v805, 4294901760
        %v2596 = vsub.f32 %v805, %v2595
        %v2597 = vand.u32 %v2596, 4294901760
        %v2598 = vsub.f32 %v2596, %v2597
        %v2599 = vand.u32 %v2598, 4294901760
        %2600 = vmatpush.msra.mxu0 %v2599
        %v2601 = vand.u32 %v801, 4294901760
        %v2602 = vsub.f32 %v801, %v2601
        %v2603 = vand.u32 %v2602, 4294901760
        %v2604 = vsub.f32 %v2602, %v2603
        %v2605 = vand.u32 %v2604, 4294901760
        %2606 = vmatpush.msra.mxu0 %v2605
        %v2607 = vand.u32 %v797, 4294901760
        %v2608 = vsub.f32 %v797, %v2607
        %v2609 = vand.u32 %v2608, 4294901760
        %v2610 = vsub.f32 %v2608, %v2609
        %v2611 = vand.u32 %v2610, 4294901760
        %2612 = vmatpush.msra.mxu0 %v2611
        %v2613 = vand.u32 %v793, 4294901760
        %v2614 = vsub.f32 %v793, %v2613
        %v2615 = vand.u32 %v2614, 4294901760
        %v2616 = vsub.f32 %v2614, %v2615
        %v2617 = vand.u32 %v2616, 4294901760
        %2618 = vmatpush.msra.mxu0 %v2617
        %v2619 = vand.u32 %v789, 4294901760
        %v2620 = vsub.f32 %v789, %v2619
        %v2621 = vand.u32 %v2620, 4294901760
        %v2622 = vsub.f32 %v2620, %v2621
        %v2623 = vand.u32 %v2622, 4294901760
        %2624 = vmatpush.msra.mxu0 %v2623
        %v2625 = vand.u32 %v785, 4294901760
        %v2626 = vsub.f32 %v785, %v2625
        %v2627 = vand.u32 %v2626, 4294901760
        %v2628 = vsub.f32 %v2626, %v2627
        %v2629 = vand.u32 %v2628, 4294901760
        %2630 = vmatpush.msra.mxu0 %v2629
        %v2631 = vand.u32 %v781, 4294901760
        %v2632 = vsub.f32 %v781, %v2631
        %v2633 = vand.u32 %v2632, 4294901760
        %v2634 = vsub.f32 %v2632, %v2633
        %v2635 = vand.u32 %v2634, 4294901760
        %2636 = vmatpush.msra.mxu0 %v2635
        %v2637 = vand.u32 %v777, 4294901760
        %v2638 = vsub.f32 %v777, %v2637
        %v2639 = vand.u32 %v2638, 4294901760
        %v2640 = vsub.f32 %v2638, %v2639
        %v2641 = vand.u32 %v2640, 4294901760
        %2642 = vmatpush.msra.mxu0 %v2641
        %v2643 = vand.u32 %v773, 4294901760
        %v2644 = vsub.f32 %v773, %v2643
        %v2645 = vand.u32 %v2644, 4294901760
        %v2646 = vsub.f32 %v2644, %v2645
        %v2647 = vand.u32 %v2646, 4294901760
        %2648 = vmatpush.msra.mxu0 %v2647
        %v2649 = vand.u32 %v769, 4294901760
        %v2650 = vsub.f32 %v769, %v2649
        %v2651 = vand.u32 %v2650, 4294901760
        %v2652 = vsub.f32 %v2650, %v2651
        %v2653 = vand.u32 %v2652, 4294901760
        %2654 = vmatpush.msra.mxu0 %v2653
        %v2655 = vand.u32 %v765, 4294901760
        %v2656 = vsub.f32 %v765, %v2655
        %v2657 = vand.u32 %v2656, 4294901760
        %v2658 = vsub.f32 %v2656, %v2657
        %v2659 = vand.u32 %v2658, 4294901760
        %2660 = vmatpush.msra.mxu0 %v2659
        %v2661 = vand.u32 %v761, 4294901760
        %v2662 = vsub.f32 %v761, %v2661
        %v2663 = vand.u32 %v2662, 4294901760
        %v2664 = vsub.f32 %v2662, %v2663
        %v2665 = vand.u32 %v2664, 4294901760
        %2666 = vmatpush.msra.mxu0 %v2665
        %v2667 = vand.u32 %v757, 4294901760
        %v2668 = vsub.f32 %v757, %v2667
        %v2669 = vand.u32 %v2668, 4294901760
        %v2670 = vsub.f32 %v2668, %v2669
        %v2671 = vand.u32 %v2670, 4294901760
        %2672 = vmatpush.msra.mxu0 %v2671
        %v2673 = vand.u32 %v753, 4294901760
        %v2674 = vsub.f32 %v753, %v2673
        %v2675 = vand.u32 %v2674, 4294901760
        %v2676 = vsub.f32 %v2674, %v2675
        %v2677 = vand.u32 %v2676, 4294901760
        %2678 = vmatpush.msra.mxu0 %v2677
        %v2679 = vand.u32 %v749, 4294901760
        %v2680 = vsub.f32 %v749, %v2679
        %v2681 = vand.u32 %v2680, 4294901760
        %v2682 = vsub.f32 %v2680, %v2681
        %v2683 = vand.u32 %v2682, 4294901760
        %2684 = vmatpush.msra.mxu0 %v2683
        %v2685 = vand.u32 %v745, 4294901760
        %v2686 = vsub.f32 %v745, %v2685
        %v2687 = vand.u32 %v2686, 4294901760
        %v2688 = vsub.f32 %v2686, %v2687
        %v2689 = vand.u32 %v2688, 4294901760
        %2690 = vmatpush.msra.mxu0 %v2689
        %v2691 = vand.u32 %v809, 4294901760
        %2692 = vmatmul.f32.gmra.mxu0 %v2691
        %v2693 = vpop.f32.mrf.mxu0
        %v2694 = vadd.f32 %v2537, %v2693
        %v2695 = vand.u32 %v811, 4294901760
        %2696 = vmatmul.f32.gmra.mxu0 %v2695
        %v2697 = vpop.f32.mrf.mxu0
        %v2698 = vadd.f32 %v2545, %v2697
        %v2699 = vand.u32 %v813, 4294901760
        %2700 = vmatmul.f32.gmra.mxu0 %v2699
        %v2701 = vpop.f32.mrf.mxu0
        %v2702 = vadd.f32 %v2553, %v2701
        %v2703 = vand.u32 %v815, 4294901760
        %2704 = vmatmul.f32.gmra.mxu0 %v2703
        %v2705 = vpop.f32.mrf.mxu0
        %v2706 = vadd.f32 %v2561, %v2705
        %v2707 = vand.u32 %v817, 4294901760
        %2708 = vmatmul.f32.gmra.mxu0 %v2707
        %v2709 = vpop.f32.mrf.mxu0
        %v2710 = vadd.f32 %v2569, %v2709
        %v2711 = vand.u32 %v819, 4294901760
        %2712 = vmatmul.f32.gmra.mxu0 %v2711
        %v2713 = vpop.f32.mrf.mxu0
        %v2714 = vadd.f32 %v2577, %v2713
        %v2715 = vand.u32 %v821, 4294901760
        %2716 = vmatmul.f32.gmra.mxu0 %v2715
        %v2717 = vpop.f32.mrf.mxu0
        %v2718 = vadd.f32 %v2585, %v2717
        %v2719 = vand.u32 %v823, 4294901760
        %2720 = vmatmul.f32.gmra.mxu0 %v2719
        %v2721 = vpop.f32.mrf.mxu0
        %v2722 = vadd.f32 %v2593, %v2721
        %2723 = vdwg.mxu0
        %v2724 = vand.u32 %v805, 4294901760
        %v2725 = vsub.f32 %v805, %v2724
        %2726 = vmatpush.msra.mxu0 %v2725
        %v2727 = vand.u32 %v801, 4294901760
        %v2728 = vsub.f32 %v801, %v2727
        %2729 = vmatpush.msra.mxu0 %v2728
        %v2730 = vand.u32 %v797, 4294901760
        %v2731 = vsub.f32 %v797, %v2730
        %2732 = vmatpush.msra.mxu0 %v2731
        %v2733 = vand.u32 %v793, 4294901760
        %v2734 = vsub.f32 %v793, %v2733
        %2735 = vmatpush.msra.mxu0 %v2734
        %v2736 = vand.u32 %v789, 4294901760
        %v2737 = vsub.f32 %v789, %v2736
        %2738 = vmatpush.msra.mxu0 %v2737
        %v2739 = vand.u32 %v785, 4294901760
        %v2740 = vsub.f32 %v785, %v2739
        %2741 = vmatpush.msra.mxu0 %v2740
        %v2742 = vand.u32 %v781, 4294901760
        %v2743 = vsub.f32 %v781, %v2742
        %2744 = vmatpush.msra.mxu0 %v2743
        %v2745 = vand.u32 %v777, 4294901760
        %v2746 = vsub.f32 %v777, %v2745
        %2747 = vmatpush.msra.mxu0 %v2746
        %v2748 = vand.u32 %v773, 4294901760
        %v2749 = vsub.f32 %v773, %v2748
        %2750 = vmatpush.msra.mxu0 %v2749
        %v2751 = vand.u32 %v769, 4294901760
        %v2752 = vsub.f32 %v769, %v2751
        %2753 = vmatpush.msra.mxu0 %v2752
        %v2754 = vand.u32 %v765, 4294901760
        %v2755 = vsub.f32 %v765, %v2754
        %2756 = vmatpush.msra.mxu0 %v2755
        %v2757 = vand.u32 %v761, 4294901760
        %v2758 = vsub.f32 %v761, %v2757
        %2759 = vmatpush.msra.mxu0 %v2758
        %v2760 = vand.u32 %v757, 4294901760
        %v2761 = vsub.f32 %v757, %v2760
        %2762 = vmatpush.msra.mxu0 %v2761
        %v2763 = vand.u32 %v753, 4294901760
        %v2764 = vsub.f32 %v753, %v2763
        %2765 = vmatpush.msra.mxu0 %v2764
        %v2766 = vand.u32 %v749, 4294901760
        %v2767 = vsub.f32 %v749, %v2766
        %2768 = vmatpush.msra.mxu0 %v2767
        %v2769 = vand.u32 %v745, 4294901760
        %v2770 = vsub.f32 %v745, %v2769
        %2771 = vmatpush.msra.mxu0 %v2770
        %v2772 = vand.u32 %v809, 4294901760
        %v2773 = vsub.f32 %v809, %v2772
        %2774 = vmatmul.f32.gmra.mxu0 %v2773
        %v2775 = vpop.f32.mrf.mxu0
        %v2776 = vadd.f32 %v2694, %v2775
        %v2777 = vand.u32 %v811, 4294901760
        %v2778 = vsub.f32 %v811, %v2777
        %2779 = vmatmul.f32.gmra.mxu0 %v2778
        %v2780 = vpop.f32.mrf.mxu0
        %v2781 = vadd.f32 %v2698, %v2780
        %v2782 = vand.u32 %v813, 4294901760
        %v2783 = vsub.f32 %v813, %v2782
        %2784 = vmatmul.f32.gmra.mxu0 %v2783
        %v2785 = vpop.f32.mrf.mxu0
        %v2786 = vadd.f32 %v2702, %v2785
        %v2787 = vand.u32 %v815, 4294901760
        %v2788 = vsub.f32 %v815, %v2787
        %2789 = vmatmul.f32.gmra.mxu0 %v2788
        %v2790 = vpop.f32.mrf.mxu0
        %v2791 = vadd.f32 %v2706, %v2790
        %v2792 = vand.u32 %v817, 4294901760
        %v2793 = vsub.f32 %v817, %v2792
        %2794 = vmatmul.f32.gmra.mxu0 %v2793
        %v2795 = vpop.f32.mrf.mxu0
        %v2796 = vadd.f32 %v2710, %v2795
        %v2797 = vand.u32 %v819, 4294901760
        %v2798 = vsub.f32 %v819, %v2797
        %2799 = vmatmul.f32.gmra.mxu0 %v2798
        %v2800 = vpop.f32.mrf.mxu0
        %v2801 = vadd.f32 %v2714, %v2800
        %v2802 = vand.u32 %v821, 4294901760
        %v2803 = vsub.f32 %v821, %v2802
        %2804 = vmatmul.f32.gmra.mxu0 %v2803
        %v2805 = vpop.f32.mrf.mxu0
        %v2806 = vadd.f32 %v2718, %v2805
        %v2807 = vand.u32 %v823, 4294901760
        %v2808 = vsub.f32 %v823, %v2807
        %2809 = vmatmul.f32.gmra.mxu0 %v2808
        %v2810 = vpop.f32.mrf.mxu0
        %v2811 = vadd.f32 %v2722, %v2810
        %2812 = vdwg.mxu0
        %v2813 = vand.u32 %v805, 4294901760
        %2814 = vmatpush.msra.mxu0 %v2813
        %v2815 = vand.u32 %v801, 4294901760
        %2816 = vmatpush.msra.mxu0 %v2815
        %v2817 = vand.u32 %v797, 4294901760
        %2818 = vmatpush.msra.mxu0 %v2817
        %v2819 = vand.u32 %v793, 4294901760
        %2820 = vmatpush.msra.mxu0 %v2819
        %v2821 = vand.u32 %v789, 4294901760
        %2822 = vmatpush.msra.mxu0 %v2821
        %v2823 = vand.u32 %v785, 4294901760
        %2824 = vmatpush.msra.mxu0 %v2823
        %v2825 = vand.u32 %v781, 4294901760
        %2826 = vmatpush.msra.mxu0 %v2825
        %v2827 = vand.u32 %v777, 4294901760
        %2828 = vmatpush.msra.mxu0 %v2827
        %v2829 = vand.u32 %v773, 4294901760
        %2830 = vmatpush.msra.mxu0 %v2829
        %v2831 = vand.u32 %v769, 4294901760
        %2832 = vmatpush.msra.mxu0 %v2831
        %v2833 = vand.u32 %v765, 4294901760
        %2834 = vmatpush.msra.mxu0 %v2833
        %v2835 = vand.u32 %v761, 4294901760
        %2836 = vmatpush.msra.mxu0 %v2835
        %v2837 = vand.u32 %v757, 4294901760
        %2838 = vmatpush.msra.mxu0 %v2837
        %v2839 = vand.u32 %v753, 4294901760
        %2840 = vmatpush.msra.mxu0 %v2839
        %v2841 = vand.u32 %v749, 4294901760
        %2842 = vmatpush.msra.mxu0 %v2841
        %v2843 = vand.u32 %v745, 4294901760
        %2844 = vmatpush.msra.mxu0 %v2843
        %v2845 = vand.u32 %v809, 4294901760
        %v2846 = vsub.f32 %v809, %v2845
        %v2847 = vand.u32 %v2846, 4294901760
        %2848 = vmatmul.f32.gmra.mxu0 %v2847
        %v2849 = vpop.f32.mrf.mxu0
        %v2850 = vadd.f32 %v2776, %v2849
        %v2851 = vand.u32 %v811, 4294901760
        %v2852 = vsub.f32 %v811, %v2851
        %v2853 = vand.u32 %v2852, 4294901760
        %2854 = vmatmul.f32.gmra.mxu0 %v2853
        %v2855 = vpop.f32.mrf.mxu0
        %v2856 = vadd.f32 %v2781, %v2855
        %v2857 = vand.u32 %v813, 4294901760
        %v2858 = vsub.f32 %v813, %v2857
        %v2859 = vand.u32 %v2858, 4294901760
        %2860 = vmatmul.f32.gmra.mxu0 %v2859
        %v2861 = vpop.f32.mrf.mxu0
        %v2862 = vadd.f32 %v2786, %v2861
        %v2863 = vand.u32 %v815, 4294901760
        %v2864 = vsub.f32 %v815, %v2863
        %v2865 = vand.u32 %v2864, 4294901760
        %2866 = vmatmul.f32.gmra.mxu0 %v2865
        %v2867 = vpop.f32.mrf.mxu0
        %v2868 = vadd.f32 %v2791, %v2867
        %v2869 = vand.u32 %v817, 4294901760
        %v2870 = vsub.f32 %v817, %v2869
        %v2871 = vand.u32 %v2870, 4294901760
        %2872 = vmatmul.f32.gmra.mxu0 %v2871
        %v2873 = vpop.f32.mrf.mxu0
        %v2874 = vadd.f32 %v2796, %v2873
        %v2875 = vand.u32 %v819, 4294901760
        %v2876 = vsub.f32 %v819, %v2875
        %v2877 = vand.u32 %v2876, 4294901760
        %2878 = vmatmul.f32.gmra.mxu0 %v2877
        %v2879 = vpop.f32.mrf.mxu0
        %v2880 = vadd.f32 %v2801, %v2879
        %v2881 = vand.u32 %v821, 4294901760
        %v2882 = vsub.f32 %v821, %v2881
        %v2883 = vand.u32 %v2882, 4294901760
        %2884 = vmatmul.f32.gmra.mxu0 %v2883
        %v2885 = vpop.f32.mrf.mxu0
        %v2886 = vadd.f32 %v2806, %v2885
        %v2887 = vand.u32 %v823, 4294901760
        %v2888 = vsub.f32 %v823, %v2887
        %v2889 = vand.u32 %v2888, 4294901760
        %2890 = vmatmul.f32.gmra.mxu0 %v2889
        %v2891 = vpop.f32.mrf.mxu0
        %v2892 = vadd.f32 %v2811, %v2891
        %2893 = vdwg.mxu0
        %v2894 = vand.u32 %v805, 4294901760
        %v2895 = vsub.f32 %v805, %v2894
        %v2896 = vand.u32 %v2895, 4294901760
        %2897 = vmatpush.msra.mxu0 %v2896
        %v2898 = vand.u32 %v801, 4294901760
        %v2899 = vsub.f32 %v801, %v2898
        %v2900 = vand.u32 %v2899, 4294901760
        %2901 = vmatpush.msra.mxu0 %v2900
        %v2902 = vand.u32 %v797, 4294901760
        %v2903 = vsub.f32 %v797, %v2902
        %v2904 = vand.u32 %v2903, 4294901760
        %2905 = vmatpush.msra.mxu0 %v2904
        %v2906 = vand.u32 %v793, 4294901760
        %v2907 = vsub.f32 %v793, %v2906
        %v2908 = vand.u32 %v2907, 4294901760
        %2909 = vmatpush.msra.mxu0 %v2908
        %v2910 = vand.u32 %v789, 4294901760
        %v2911 = vsub.f32 %v789, %v2910
        %v2912 = vand.u32 %v2911, 4294901760
        %2913 = vmatpush.msra.mxu0 %v2912
        %v2914 = vand.u32 %v785, 4294901760
        %v2915 = vsub.f32 %v785, %v2914
        %v2916 = vand.u32 %v2915, 4294901760
        %2917 = vmatpush.msra.mxu0 %v2916
        %v2918 = vand.u32 %v781, 4294901760
        %v2919 = vsub.f32 %v781, %v2918
        %v2920 = vand.u32 %v2919, 4294901760
        %2921 = vmatpush.msra.mxu0 %v2920
        %v2922 = vand.u32 %v777, 4294901760
        %v2923 = vsub.f32 %v777, %v2922
        %v2924 = vand.u32 %v2923, 4294901760
        %2925 = vmatpush.msra.mxu0 %v2924
        %v2926 = vand.u32 %v773, 4294901760
        %v2927 = vsub.f32 %v773, %v2926
        %v2928 = vand.u32 %v2927, 4294901760
        %2929 = vmatpush.msra.mxu0 %v2928
        %v2930 = vand.u32 %v769, 4294901760
        %v2931 = vsub.f32 %v769, %v2930
        %v2932 = vand.u32 %v2931, 4294901760
        %2933 = vmatpush.msra.mxu0 %v2932
        %v2934 = vand.u32 %v765, 4294901760
        %v2935 = vsub.f32 %v765, %v2934
        %v2936 = vand.u32 %v2935, 4294901760
        %2937 = vmatpush.msra.mxu0 %v2936
        %v2938 = vand.u32 %v761, 4294901760
        %v2939 = vsub.f32 %v761, %v2938
        %v2940 = vand.u32 %v2939, 4294901760
        %2941 = vmatpush.msra.mxu0 %v2940
        %v2942 = vand.u32 %v757, 4294901760
        %v2943 = vsub.f32 %v757, %v2942
        %v2944 = vand.u32 %v2943, 4294901760
        %2945 = vmatpush.msra.mxu0 %v2944
        %v2946 = vand.u32 %v753, 4294901760
        %v2947 = vsub.f32 %v753, %v2946
        %v2948 = vand.u32 %v2947, 4294901760
        %2949 = vmatpush.msra.mxu0 %v2948
        %v2950 = vand.u32 %v749, 4294901760
        %v2951 = vsub.f32 %v749, %v2950
        %v2952 = vand.u32 %v2951, 4294901760
        %2953 = vmatpush.msra.mxu0 %v2952
        %v2954 = vand.u32 %v745, 4294901760
        %v2955 = vsub.f32 %v745, %v2954
        %v2956 = vand.u32 %v2955, 4294901760
        %2957 = vmatpush.msra.mxu0 %v2956
        %v2958 = vand.u32 %v809, 4294901760
        %2959 = vmatmul.f32.gmra.mxu0 %v2958
        %v2960 = vpop.f32.mrf.mxu0
        %v2961 = vadd.f32 %v2850, %v2960
        %v2962 = vand.u32 %v811, 4294901760
        %2963 = vmatmul.f32.gmra.mxu0 %v2962
        %v2964 = vpop.f32.mrf.mxu0
        %v2965 = vadd.f32 %v2856, %v2964
        %v2966 = vand.u32 %v813, 4294901760
        %2967 = vmatmul.f32.gmra.mxu0 %v2966
        %v2968 = vpop.f32.mrf.mxu0
        %v2969 = vadd.f32 %v2862, %v2968
        %v2970 = vand.u32 %v815, 4294901760
        %2971 = vmatmul.f32.gmra.mxu0 %v2970
        %v2972 = vpop.f32.mrf.mxu0
        %v2973 = vadd.f32 %v2868, %v2972
        %v2974 = vand.u32 %v817, 4294901760
        %2975 = vmatmul.f32.gmra.mxu0 %v2974
        %v2976 = vpop.f32.mrf.mxu0
        %v2977 = vadd.f32 %v2874, %v2976
        %v2978 = vand.u32 %v819, 4294901760
        %2979 = vmatmul.f32.gmra.mxu0 %v2978
        %v2980 = vpop.f32.mrf.mxu0
        %v2981 = vadd.f32 %v2880, %v2980
        %v2982 = vand.u32 %v821, 4294901760
        %2983 = vmatmul.f32.gmra.mxu0 %v2982
        %v2984 = vpop.f32.mrf.mxu0
        %v2985 = vadd.f32 %v2886, %v2984
        %v2986 = vand.u32 %v823, 4294901760
        %2987 = vmatmul.f32.gmra.mxu0 %v2986
        %v2988 = vpop.f32.mrf.mxu0
        %v2989 = vadd.f32 %v2892, %v2988
        %2990 = vdwg.mxu0
        %v2991 = vand.u32 %v805, 4294901760
        %2992 = vmatpush.msra.mxu0 %v2991
        %v2993 = vand.u32 %v801, 4294901760
        %2994 = vmatpush.msra.mxu0 %v2993
        %v2995 = vand.u32 %v797, 4294901760
        %2996 = vmatpush.msra.mxu0 %v2995
        %v2997 = vand.u32 %v793, 4294901760
        %2998 = vmatpush.msra.mxu0 %v2997
        %v2999 = vand.u32 %v789, 4294901760
        %3000 = vmatpush.msra.mxu0 %v2999
        %v3001 = vand.u32 %v785, 4294901760
        %3002 = vmatpush.msra.mxu0 %v3001
        %v3003 = vand.u32 %v781, 4294901760
        %3004 = vmatpush.msra.mxu0 %v3003
        %v3005 = vand.u32 %v777, 4294901760
        %3006 = vmatpush.msra.mxu0 %v3005
        %v3007 = vand.u32 %v773, 4294901760
        %3008 = vmatpush.msra.mxu0 %v3007
        %v3009 = vand.u32 %v769, 4294901760
        %3010 = vmatpush.msra.mxu0 %v3009
        %v3011 = vand.u32 %v765, 4294901760
        %3012 = vmatpush.msra.mxu0 %v3011
        %v3013 = vand.u32 %v761, 4294901760
        %3014 = vmatpush.msra.mxu0 %v3013
        %v3015 = vand.u32 %v757, 4294901760
        %3016 = vmatpush.msra.mxu0 %v3015
        %v3017 = vand.u32 %v753, 4294901760
        %3018 = vmatpush.msra.mxu0 %v3017
        %v3019 = vand.u32 %v749, 4294901760
        %3020 = vmatpush.msra.mxu0 %v3019
        %v3021 = vand.u32 %v745, 4294901760
        %3022 = vmatpush.msra.mxu0 %v3021
        %v3023 = vand.u32 %v809, 4294901760
        %3024 = vmatmul.f32.gmra.mxu0 %v3023
        %v3025 = vpop.f32.mrf.mxu0
        %v3026 = vadd.f32 %v2961, %v3025
        %v3027 = vand.u32 %v811, 4294901760
        %3028 = vmatmul.f32.gmra.mxu0 %v3027
        %v3029 = vpop.f32.mrf.mxu0
        %v3030 = vadd.f32 %v2965, %v3029
        %v3031 = vand.u32 %v813, 4294901760
        %3032 = vmatmul.f32.gmra.mxu0 %v3031
        %v3033 = vpop.f32.mrf.mxu0
        %v3034 = vadd.f32 %v2969, %v3033
        %v3035 = vand.u32 %v815, 4294901760
        %3036 = vmatmul.f32.gmra.mxu0 %v3035
        %v3037 = vpop.f32.mrf.mxu0
        %v3038 = vadd.f32 %v2973, %v3037
        %v3039 = vand.u32 %v817, 4294901760
        %3040 = vmatmul.f32.gmra.mxu0 %v3039
        %v3041 = vpop.f32.mrf.mxu0
        %v3042 = vadd.f32 %v2977, %v3041
        %v3043 = vand.u32 %v819, 4294901760
        %3044 = vmatmul.f32.gmra.mxu0 %v3043
        %v3045 = vpop.f32.mrf.mxu0
        %v3046 = vadd.f32 %v2981, %v3045
        %v3047 = vand.u32 %v821, 4294901760
        %3048 = vmatmul.f32.gmra.mxu0 %v3047
        %v3049 = vpop.f32.mrf.mxu0
        %v3050 = vadd.f32 %v2985, %v3049
        %v3051 = vand.u32 %v823, 4294901760
        %3052 = vmatmul.f32.gmra.mxu0 %v3051
        %v3053 = vpop.f32.mrf.mxu0
        %v3054 = vadd.f32 %v2989, %v3053
        %3055 = vdwg.mxu0
        %v3056 = vand.u32 %v742, 4294901760
        %3057 = vmatpush.msra.mxu0 %v3056
        %v3058 = vand.u32 %v738, 4294901760
        %3059 = vmatpush.msra.mxu0 %v3058
        %v3060 = vand.u32 %v734, 4294901760
        %3061 = vmatpush.msra.mxu0 %v3060
        %v3062 = vand.u32 %v730, 4294901760
        %3063 = vmatpush.msra.mxu0 %v3062
        %v3064 = vand.u32 %v726, 4294901760
        %3065 = vmatpush.msra.mxu0 %v3064
        %v3066 = vand.u32 %v722, 4294901760
        %3067 = vmatpush.msra.mxu0 %v3066
        %v3068 = vand.u32 %v718, 4294901760
        %3069 = vmatpush.msra.mxu0 %v3068
        %v3070 = vand.u32 %v714, 4294901760
        %3071 = vmatpush.msra.mxu0 %v3070
        %v3072 = vand.u32 %v710, 4294901760
        %3073 = vmatpush.msra.mxu0 %v3072
        %v3074 = vand.u32 %v706, 4294901760
        %3075 = vmatpush.msra.mxu0 %v3074
        %v3076 = vand.u32 %v702, 4294901760
        %3077 = vmatpush.msra.mxu0 %v3076
        %v3078 = vand.u32 %v698, 4294901760
        %3079 = vmatpush.msra.mxu0 %v3078
        %v3080 = vand.u32 %v694, 4294901760
        %3081 = vmatpush.msra.mxu0 %v3080
        %v3082 = vand.u32 %v690, 4294901760
        %3083 = vmatpush.msra.mxu0 %v3082
        %v3084 = vand.u32 %v686, 4294901760
        %3085 = vmatpush.msra.mxu0 %v3084
        %v3086 = vand.u32 %v682, 4294901760
        %3087 = vmatpush.msra.mxu0 %v3086
        %v3088 = vand.u32 %v808, 4294901760
        %v3089 = vsub.f32 %v808, %v3088
        %v3090 = vand.u32 %v3089, 4294901760
        %v3091 = vsub.f32 %v3089, %v3090
        %v3092 = vand.u32 %v3091, 4294901760
        %3093 = vmatmul.f32.gmra.mxu0 %v3092
        %v3094 = vpop.f32.mrf.mxu0
        %v3095 = vadd.f32 0.0, %v3094
        %v3096 = vand.u32 %v810, 4294901760
        %v3097 = vsub.f32 %v810, %v3096
        %v3098 = vand.u32 %v3097, 4294901760
        %v3099 = vsub.f32 %v3097, %v3098
        %v3100 = vand.u32 %v3099, 4294901760
        %3101 = vmatmul.f32.gmra.mxu0 %v3100
        %v3102 = vpop.f32.mrf.mxu0
        %v3103 = vadd.f32 0.0, %v3102
        %v3104 = vand.u32 %v812, 4294901760
        %v3105 = vsub.f32 %v812, %v3104
        %v3106 = vand.u32 %v3105, 4294901760
        %v3107 = vsub.f32 %v3105, %v3106
        %v3108 = vand.u32 %v3107, 4294901760
        %3109 = vmatmul.f32.gmra.mxu0 %v3108
        %v3110 = vpop.f32.mrf.mxu0
        %v3111 = vadd.f32 0.0, %v3110
        %v3112 = vand.u32 %v814, 4294901760
        %v3113 = vsub.f32 %v814, %v3112
        %v3114 = vand.u32 %v3113, 4294901760
        %v3115 = vsub.f32 %v3113, %v3114
        %v3116 = vand.u32 %v3115, 4294901760
        %3117 = vmatmul.f32.gmra.mxu0 %v3116
        %v3118 = vpop.f32.mrf.mxu0
        %v3119 = vadd.f32 0.0, %v3118
        %v3120 = vand.u32 %v816, 4294901760
        %v3121 = vsub.f32 %v816, %v3120
        %v3122 = vand.u32 %v3121, 4294901760
        %v3123 = vsub.f32 %v3121, %v3122
        %v3124 = vand.u32 %v3123, 4294901760
        %3125 = vmatmul.f32.gmra.mxu0 %v3124
        %v3126 = vpop.f32.mrf.mxu0
        %v3127 = vadd.f32 0.0, %v3126
        %v3128 = vand.u32 %v818, 4294901760
        %v3129 = vsub.f32 %v818, %v3128
        %v3130 = vand.u32 %v3129, 4294901760
        %v3131 = vsub.f32 %v3129, %v3130
        %v3132 = vand.u32 %v3131, 4294901760
        %3133 = vmatmul.f32.gmra.mxu0 %v3132
        %v3134 = vpop.f32.mrf.mxu0
        %v3135 = vadd.f32 0.0, %v3134
        %v3136 = vand.u32 %v820, 4294901760
        %v3137 = vsub.f32 %v820, %v3136
        %v3138 = vand.u32 %v3137, 4294901760
        %v3139 = vsub.f32 %v3137, %v3138
        %v3140 = vand.u32 %v3139, 4294901760
        %3141 = vmatmul.f32.gmra.mxu0 %v3140
        %v3142 = vpop.f32.mrf.mxu0
        %v3143 = vadd.f32 0.0, %v3142
        %v3144 = vand.u32 %v822, 4294901760
        %v3145 = vsub.f32 %v822, %v3144
        %v3146 = vand.u32 %v3145, 4294901760
        %v3147 = vsub.f32 %v3145, %v3146
        %v3148 = vand.u32 %v3147, 4294901760
        %3149 = vmatmul.f32.gmra.mxu0 %v3148
        %v3150 = vpop.f32.mrf.mxu0
        %v3151 = vadd.f32 0.0, %v3150
        %3152 = vdwg.mxu0
        %v3153 = vand.u32 %v742, 4294901760
        %v3154 = vsub.f32 %v742, %v3153
        %v3155 = vand.u32 %v3154, 4294901760
        %v3156 = vsub.f32 %v3154, %v3155
        %v3157 = vand.u32 %v3156, 4294901760
        %3158 = vmatpush.msra.mxu0 %v3157
        %v3159 = vand.u32 %v738, 4294901760
        %v3160 = vsub.f32 %v738, %v3159
        %v3161 = vand.u32 %v3160, 4294901760
        %v3162 = vsub.f32 %v3160, %v3161
        %v3163 = vand.u32 %v3162, 4294901760
        %3164 = vmatpush.msra.mxu0 %v3163
        %v3165 = vand.u32 %v734, 4294901760
        %v3166 = vsub.f32 %v734, %v3165
        %v3167 = vand.u32 %v3166, 4294901760
        %v3168 = vsub.f32 %v3166, %v3167
        %v3169 = vand.u32 %v3168, 4294901760
        %3170 = vmatpush.msra.mxu0 %v3169
        %v3171 = vand.u32 %v730, 4294901760
        %v3172 = vsub.f32 %v730, %v3171
        %v3173 = vand.u32 %v3172, 4294901760
        %v3174 = vsub.f32 %v3172, %v3173
        %v3175 = vand.u32 %v3174, 4294901760
        %3176 = vmatpush.msra.mxu0 %v3175
        %v3177 = vand.u32 %v726, 4294901760
        %v3178 = vsub.f32 %v726, %v3177
        %v3179 = vand.u32 %v3178, 4294901760
        %v3180 = vsub.f32 %v3178, %v3179
        %v3181 = vand.u32 %v3180, 4294901760
        %3182 = vmatpush.msra.mxu0 %v3181
        %v3183 = vand.u32 %v722, 4294901760
        %v3184 = vsub.f32 %v722, %v3183
        %v3185 = vand.u32 %v3184, 4294901760
        %v3186 = vsub.f32 %v3184, %v3185
        %v3187 = vand.u32 %v3186, 4294901760
        %3188 = vmatpush.msra.mxu0 %v3187
        %v3189 = vand.u32 %v718, 4294901760
        %v3190 = vsub.f32 %v718, %v3189
        %v3191 = vand.u32 %v3190, 4294901760
        %v3192 = vsub.f32 %v3190, %v3191
        %v3193 = vand.u32 %v3192, 4294901760
        %3194 = vmatpush.msra.mxu0 %v3193
        %v3195 = vand.u32 %v714, 4294901760
        %v3196 = vsub.f32 %v714, %v3195
        %v3197 = vand.u32 %v3196, 4294901760
        %v3198 = vsub.f32 %v3196, %v3197
        %v3199 = vand.u32 %v3198, 4294901760
        %3200 = vmatpush.msra.mxu0 %v3199
        %v3201 = vand.u32 %v710, 4294901760
        %v3202 = vsub.f32 %v710, %v3201
        %v3203 = vand.u32 %v3202, 4294901760
        %v3204 = vsub.f32 %v3202, %v3203
        %v3205 = vand.u32 %v3204, 4294901760
        %3206 = vmatpush.msra.mxu0 %v3205
        %v3207 = vand.u32 %v706, 4294901760
        %v3208 = vsub.f32 %v706, %v3207
        %v3209 = vand.u32 %v3208, 4294901760
        %v3210 = vsub.f32 %v3208, %v3209
        %v3211 = vand.u32 %v3210, 4294901760
        %3212 = vmatpush.msra.mxu0 %v3211
        %v3213 = vand.u32 %v702, 4294901760
        %v3214 = vsub.f32 %v702, %v3213
        %v3215 = vand.u32 %v3214, 4294901760
        %v3216 = vsub.f32 %v3214, %v3215
        %v3217 = vand.u32 %v3216, 4294901760
        %3218 = vmatpush.msra.mxu0 %v3217
        %v3219 = vand.u32 %v698, 4294901760
        %v3220 = vsub.f32 %v698, %v3219
        %v3221 = vand.u32 %v3220, 4294901760
        %v3222 = vsub.f32 %v3220, %v3221
        %v3223 = vand.u32 %v3222, 4294901760
        %3224 = vmatpush.msra.mxu0 %v3223
        %v3225 = vand.u32 %v694, 4294901760
        %v3226 = vsub.f32 %v694, %v3225
        %v3227 = vand.u32 %v3226, 4294901760
        %v3228 = vsub.f32 %v3226, %v3227
        %v3229 = vand.u32 %v3228, 4294901760
        %3230 = vmatpush.msra.mxu0 %v3229
        %v3231 = vand.u32 %v690, 4294901760
        %v3232 = vsub.f32 %v690, %v3231
        %v3233 = vand.u32 %v3232, 4294901760
        %v3234 = vsub.f32 %v3232, %v3233
        %v3235 = vand.u32 %v3234, 4294901760
        %3236 = vmatpush.msra.mxu0 %v3235
        %v3237 = vand.u32 %v686, 4294901760
        %v3238 = vsub.f32 %v686, %v3237
        %v3239 = vand.u32 %v3238, 4294901760
        %v3240 = vsub.f32 %v3238, %v3239
        %v3241 = vand.u32 %v3240, 4294901760
        %3242 = vmatpush.msra.mxu0 %v3241
        %v3243 = vand.u32 %v682, 4294901760
        %v3244 = vsub.f32 %v682, %v3243
        %v3245 = vand.u32 %v3244, 4294901760
        %v3246 = vsub.f32 %v3244, %v3245
        %v3247 = vand.u32 %v3246, 4294901760
        %3248 = vmatpush.msra.mxu0 %v3247
        %v3249 = vand.u32 %v808, 4294901760
        %3250 = vmatmul.f32.gmra.mxu0 %v3249
        %v3251 = vpop.f32.mrf.mxu0
        %v3252 = vadd.f32 %v3095, %v3251
        %v3253 = vand.u32 %v810, 4294901760
        %3254 = vmatmul.f32.gmra.mxu0 %v3253
        %v3255 = vpop.f32.mrf.mxu0
        %v3256 = vadd.f32 %v3103, %v3255
        %v3257 = vand.u32 %v812, 4294901760
        %3258 = vmatmul.f32.gmra.mxu0 %v3257
        %v3259 = vpop.f32.mrf.mxu0
        %v3260 = vadd.f32 %v3111, %v3259
        %v3261 = vand.u32 %v814, 4294901760
        %3262 = vmatmul.f32.gmra.mxu0 %v3261
        %v3263 = vpop.f32.mrf.mxu0
        %v3264 = vadd.f32 %v3119, %v3263
        %v3265 = vand.u32 %v816, 4294901760
        %3266 = vmatmul.f32.gmra.mxu0 %v3265
        %v3267 = vpop.f32.mrf.mxu0
        %v3268 = vadd.f32 %v3127, %v3267
        %v3269 = vand.u32 %v818, 4294901760
        %3270 = vmatmul.f32.gmra.mxu0 %v3269
        %v3271 = vpop.f32.mrf.mxu0
        %v3272 = vadd.f32 %v3135, %v3271
        %v3273 = vand.u32 %v820, 4294901760
        %3274 = vmatmul.f32.gmra.mxu0 %v3273
        %v3275 = vpop.f32.mrf.mxu0
        %v3276 = vadd.f32 %v3143, %v3275
        %v3277 = vand.u32 %v822, 4294901760
        %3278 = vmatmul.f32.gmra.mxu0 %v3277
        %v3279 = vpop.f32.mrf.mxu0
        %v3280 = vadd.f32 %v3151, %v3279
        %3281 = vdwg.mxu0
        %v3282 = vand.u32 %v742, 4294901760
        %v3283 = vsub.f32 %v742, %v3282
        %3284 = vmatpush.msra.mxu0 %v3283
        %v3285 = vand.u32 %v738, 4294901760
        %v3286 = vsub.f32 %v738, %v3285
        %3287 = vmatpush.msra.mxu0 %v3286
        %v3288 = vand.u32 %v734, 4294901760
        %v3289 = vsub.f32 %v734, %v3288
        %3290 = vmatpush.msra.mxu0 %v3289
        %v3291 = vand.u32 %v730, 4294901760
        %v3292 = vsub.f32 %v730, %v3291
        %3293 = vmatpush.msra.mxu0 %v3292
        %v3294 = vand.u32 %v726, 4294901760
        %v3295 = vsub.f32 %v726, %v3294
        %3296 = vmatpush.msra.mxu0 %v3295
        %v3297 = vand.u32 %v722, 4294901760
        %v3298 = vsub.f32 %v722, %v3297
        %3299 = vmatpush.msra.mxu0 %v3298
        %v3300 = vand.u32 %v718, 4294901760
        %v3301 = vsub.f32 %v718, %v3300
        %3302 = vmatpush.msra.mxu0 %v3301
        %v3303 = vand.u32 %v714, 4294901760
        %v3304 = vsub.f32 %v714, %v3303
        %3305 = vmatpush.msra.mxu0 %v3304
        %v3306 = vand.u32 %v710, 4294901760
        %v3307 = vsub.f32 %v710, %v3306
        %3308 = vmatpush.msra.mxu0 %v3307
        %v3309 = vand.u32 %v706, 4294901760
        %v3310 = vsub.f32 %v706, %v3309
        %3311 = vmatpush.msra.mxu0 %v3310
        %v3312 = vand.u32 %v702, 4294901760
        %v3313 = vsub.f32 %v702, %v3312
        %3314 = vmatpush.msra.mxu0 %v3313
        %v3315 = vand.u32 %v698, 4294901760
        %v3316 = vsub.f32 %v698, %v3315
        %3317 = vmatpush.msra.mxu0 %v3316
        %v3318 = vand.u32 %v694, 4294901760
        %v3319 = vsub.f32 %v694, %v3318
        %3320 = vmatpush.msra.mxu0 %v3319
        %v3321 = vand.u32 %v690, 4294901760
        %v3322 = vsub.f32 %v690, %v3321
        %3323 = vmatpush.msra.mxu0 %v3322
        %v3324 = vand.u32 %v686, 4294901760
        %v3325 = vsub.f32 %v686, %v3324
        %3326 = vmatpush.msra.mxu0 %v3325
        %v3327 = vand.u32 %v682, 4294901760
        %v3328 = vsub.f32 %v682, %v3327
        %3329 = vmatpush.msra.mxu0 %v3328
        %v3330 = vand.u32 %v808, 4294901760
        %v3331 = vsub.f32 %v808, %v3330
        %3332 = vmatmul.f32.gmra.mxu0 %v3331
        %v3333 = vpop.f32.mrf.mxu0
        %v3334 = vadd.f32 %v3252, %v3333
        %v3335 = vand.u32 %v810, 4294901760
        %v3336 = vsub.f32 %v810, %v3335
        %3337 = vmatmul.f32.gmra.mxu0 %v3336
        %v3338 = vpop.f32.mrf.mxu0
        %v3339 = vadd.f32 %v3256, %v3338
        %v3340 = vand.u32 %v812, 4294901760
        %v3341 = vsub.f32 %v812, %v3340
        %3342 = vmatmul.f32.gmra.mxu0 %v3341
        %v3343 = vpop.f32.mrf.mxu0
        %v3344 = vadd.f32 %v3260, %v3343
        %v3345 = vand.u32 %v814, 4294901760
        %v3346 = vsub.f32 %v814, %v3345
        %3347 = vmatmul.f32.gmra.mxu0 %v3346
        %v3348 = vpop.f32.mrf.mxu0
        %v3349 = vadd.f32 %v3264, %v3348
        %v3350 = vand.u32 %v816, 4294901760
        %v3351 = vsub.f32 %v816, %v3350
        %3352 = vmatmul.f32.gmra.mxu0 %v3351
        %v3353 = vpop.f32.mrf.mxu0
        %v3354 = vadd.f32 %v3268, %v3353
        %v3355 = vand.u32 %v818, 4294901760
        %v3356 = vsub.f32 %v818, %v3355
        %3357 = vmatmul.f32.gmra.mxu0 %v3356
        %v3358 = vpop.f32.mrf.mxu0
        %v3359 = vadd.f32 %v3272, %v3358
        %v3360 = vand.u32 %v820, 4294901760
        %v3361 = vsub.f32 %v820, %v3360
        %3362 = vmatmul.f32.gmra.mxu0 %v3361
        %v3363 = vpop.f32.mrf.mxu0
        %v3364 = vadd.f32 %v3276, %v3363
        %v3365 = vand.u32 %v822, 4294901760
        %v3366 = vsub.f32 %v822, %v3365
        %3367 = vmatmul.f32.gmra.mxu0 %v3366
        %v3368 = vpop.f32.mrf.mxu0
        %v3369 = vadd.f32 %v3280, %v3368
        %3370 = vdwg.mxu0
        %v3371 = vand.u32 %v742, 4294901760
        %3372 = vmatpush.msra.mxu0 %v3371
        %v3373 = vand.u32 %v738, 4294901760
        %3374 = vmatpush.msra.mxu0 %v3373
        %v3375 = vand.u32 %v734, 4294901760
        %3376 = vmatpush.msra.mxu0 %v3375
        %v3377 = vand.u32 %v730, 4294901760
        %3378 = vmatpush.msra.mxu0 %v3377
        %v3379 = vand.u32 %v726, 4294901760
        %3380 = vmatpush.msra.mxu0 %v3379
        %v3381 = vand.u32 %v722, 4294901760
        %3382 = vmatpush.msra.mxu0 %v3381
        %v3383 = vand.u32 %v718, 4294901760
        %3384 = vmatpush.msra.mxu0 %v3383
        %v3385 = vand.u32 %v714, 4294901760
        %3386 = vmatpush.msra.mxu0 %v3385
        %v3387 = vand.u32 %v710, 4294901760
        %3388 = vmatpush.msra.mxu0 %v3387
        %v3389 = vand.u32 %v706, 4294901760
        %3390 = vmatpush.msra.mxu0 %v3389
        %v3391 = vand.u32 %v702, 4294901760
        %3392 = vmatpush.msra.mxu0 %v3391
        %v3393 = vand.u32 %v698, 4294901760
        %3394 = vmatpush.msra.mxu0 %v3393
        %v3395 = vand.u32 %v694, 4294901760
        %3396 = vmatpush.msra.mxu0 %v3395
        %v3397 = vand.u32 %v690, 4294901760
        %3398 = vmatpush.msra.mxu0 %v3397
        %v3399 = vand.u32 %v686, 4294901760
        %3400 = vmatpush.msra.mxu0 %v3399
        %v3401 = vand.u32 %v682, 4294901760
        %3402 = vmatpush.msra.mxu0 %v3401
        %v3403 = vand.u32 %v808, 4294901760
        %v3404 = vsub.f32 %v808, %v3403
        %v3405 = vand.u32 %v3404, 4294901760
        %3406 = vmatmul.f32.gmra.mxu0 %v3405
        %v3407 = vpop.f32.mrf.mxu0
        %v3408 = vadd.f32 %v3334, %v3407
        %v3409 = vand.u32 %v810, 4294901760
        %v3410 = vsub.f32 %v810, %v3409
        %v3411 = vand.u32 %v3410, 4294901760
        %3412 = vmatmul.f32.gmra.mxu0 %v3411
        %v3413 = vpop.f32.mrf.mxu0
        %v3414 = vadd.f32 %v3339, %v3413
        %v3415 = vand.u32 %v812, 4294901760
        %v3416 = vsub.f32 %v812, %v3415
        %v3417 = vand.u32 %v3416, 4294901760
        %3418 = vmatmul.f32.gmra.mxu0 %v3417
        %v3419 = vpop.f32.mrf.mxu0
        %v3420 = vadd.f32 %v3344, %v3419
        %v3421 = vand.u32 %v814, 4294901760
        %v3422 = vsub.f32 %v814, %v3421
        %v3423 = vand.u32 %v3422, 4294901760
        %3424 = vmatmul.f32.gmra.mxu0 %v3423
        %v3425 = vpop.f32.mrf.mxu0
        %v3426 = vadd.f32 %v3349, %v3425
        %v3427 = vand.u32 %v816, 4294901760
        %v3428 = vsub.f32 %v816, %v3427
        %v3429 = vand.u32 %v3428, 4294901760
        %3430 = vmatmul.f32.gmra.mxu0 %v3429
        %v3431 = vpop.f32.mrf.mxu0
        %v3432 = vadd.f32 %v3354, %v3431
        %v3433 = vand.u32 %v818, 4294901760
        %v3434 = vsub.f32 %v818, %v3433
        %v3435 = vand.u32 %v3434, 4294901760
        %3436 = vmatmul.f32.gmra.mxu0 %v3435
        %v3437 = vpop.f32.mrf.mxu0
        %v3438 = vadd.f32 %v3359, %v3437
        %v3439 = vand.u32 %v820, 4294901760
        %v3440 = vsub.f32 %v820, %v3439
        %v3441 = vand.u32 %v3440, 4294901760
        %3442 = vmatmul.f32.gmra.mxu0 %v3441
        %v3443 = vpop.f32.mrf.mxu0
        %v3444 = vadd.f32 %v3364, %v3443
        %v3445 = vand.u32 %v822, 4294901760
        %v3446 = vsub.f32 %v822, %v3445
        %v3447 = vand.u32 %v3446, 4294901760
        %3448 = vmatmul.f32.gmra.mxu0 %v3447
        %v3449 = vpop.f32.mrf.mxu0
        %v3450 = vadd.f32 %v3369, %v3449
        %3451 = vdwg.mxu0
        %v3452 = vand.u32 %v742, 4294901760
        %v3453 = vsub.f32 %v742, %v3452
        %v3454 = vand.u32 %v3453, 4294901760
        %3455 = vmatpush.msra.mxu0 %v3454
        %v3456 = vand.u32 %v738, 4294901760
        %v3457 = vsub.f32 %v738, %v3456
        %v3458 = vand.u32 %v3457, 4294901760
        %3459 = vmatpush.msra.mxu0 %v3458
        %v3460 = vand.u32 %v734, 4294901760
        %v3461 = vsub.f32 %v734, %v3460
        %v3462 = vand.u32 %v3461, 4294901760
        %3463 = vmatpush.msra.mxu0 %v3462
        %v3464 = vand.u32 %v730, 4294901760
        %v3465 = vsub.f32 %v730, %v3464
        %v3466 = vand.u32 %v3465, 4294901760
        %3467 = vmatpush.msra.mxu0 %v3466
        %v3468 = vand.u32 %v726, 4294901760
        %v3469 = vsub.f32 %v726, %v3468
        %v3470 = vand.u32 %v3469, 4294901760
        %3471 = vmatpush.msra.mxu0 %v3470
        %v3472 = vand.u32 %v722, 4294901760
        %v3473 = vsub.f32 %v722, %v3472
        %v3474 = vand.u32 %v3473, 4294901760
        %3475 = vmatpush.msra.mxu0 %v3474
        %v3476 = vand.u32 %v718, 4294901760
        %v3477 = vsub.f32 %v718, %v3476
        %v3478 = vand.u32 %v3477, 4294901760
        %3479 = vmatpush.msra.mxu0 %v3478
        %v3480 = vand.u32 %v714, 4294901760
        %v3481 = vsub.f32 %v714, %v3480
        %v3482 = vand.u32 %v3481, 4294901760
        %3483 = vmatpush.msra.mxu0 %v3482
        %v3484 = vand.u32 %v710, 4294901760
        %v3485 = vsub.f32 %v710, %v3484
        %v3486 = vand.u32 %v3485, 4294901760
        %3487 = vmatpush.msra.mxu0 %v3486
        %v3488 = vand.u32 %v706, 4294901760
        %v3489 = vsub.f32 %v706, %v3488
        %v3490 = vand.u32 %v3489, 4294901760
        %3491 = vmatpush.msra.mxu0 %v3490
        %v3492 = vand.u32 %v702, 4294901760
        %v3493 = vsub.f32 %v702, %v3492
        %v3494 = vand.u32 %v3493, 4294901760
        %3495 = vmatpush.msra.mxu0 %v3494
        %v3496 = vand.u32 %v698, 4294901760
        %v3497 = vsub.f32 %v698, %v3496
        %v3498 = vand.u32 %v3497, 4294901760
        %3499 = vmatpush.msra.mxu0 %v3498
        %v3500 = vand.u32 %v694, 4294901760
        %v3501 = vsub.f32 %v694, %v3500
        %v3502 = vand.u32 %v3501, 4294901760
        %3503 = vmatpush.msra.mxu0 %v3502
        %v3504 = vand.u32 %v690, 4294901760
        %v3505 = vsub.f32 %v690, %v3504
        %v3506 = vand.u32 %v3505, 4294901760
        %3507 = vmatpush.msra.mxu0 %v3506
        %v3508 = vand.u32 %v686, 4294901760
        %v3509 = vsub.f32 %v686, %v3508
        %v3510 = vand.u32 %v3509, 4294901760
        %3511 = vmatpush.msra.mxu0 %v3510
        %v3512 = vand.u32 %v682, 4294901760
        %v3513 = vsub.f32 %v682, %v3512
        %v3514 = vand.u32 %v3513, 4294901760
        %3515 = vmatpush.msra.mxu0 %v3514
        %v3516 = vand.u32 %v808, 4294901760
        %3517 = vmatmul.f32.gmra.mxu0 %v3516
        %v3518 = vpop.f32.mrf.mxu0
        %v3519 = vadd.f32 %v3408, %v3518
        %v3520 = vand.u32 %v810, 4294901760
        %3521 = vmatmul.f32.gmra.mxu0 %v3520
        %v3522 = vpop.f32.mrf.mxu0
        %v3523 = vadd.f32 %v3414, %v3522
        %v3524 = vand.u32 %v812, 4294901760
        %3525 = vmatmul.f32.gmra.mxu0 %v3524
        %v3526 = vpop.f32.mrf.mxu0
        %v3527 = vadd.f32 %v3420, %v3526
        %v3528 = vand.u32 %v814, 4294901760
        %3529 = vmatmul.f32.gmra.mxu0 %v3528
        %v3530 = vpop.f32.mrf.mxu0
        %v3531 = vadd.f32 %v3426, %v3530
        %v3532 = vand.u32 %v816, 4294901760
        %3533 = vmatmul.f32.gmra.mxu0 %v3532
        %v3534 = vpop.f32.mrf.mxu0
        %v3535 = vadd.f32 %v3432, %v3534
        %v3536 = vand.u32 %v818, 4294901760
        %3537 = vmatmul.f32.gmra.mxu0 %v3536
        %v3538 = vpop.f32.mrf.mxu0
        %v3539 = vadd.f32 %v3438, %v3538
        %v3540 = vand.u32 %v820, 4294901760
        %3541 = vmatmul.f32.gmra.mxu0 %v3540
        %v3542 = vpop.f32.mrf.mxu0
        %v3543 = vadd.f32 %v3444, %v3542
        %v3544 = vand.u32 %v822, 4294901760
        %3545 = vmatmul.f32.gmra.mxu0 %v3544
        %v3546 = vpop.f32.mrf.mxu0
        %v3547 = vadd.f32 %v3450, %v3546
        %3548 = vdwg.mxu0
        %v3549 = vand.u32 %v742, 4294901760
        %3550 = vmatpush.msra.mxu0 %v3549
        %v3551 = vand.u32 %v738, 4294901760
        %3552 = vmatpush.msra.mxu0 %v3551
        %v3553 = vand.u32 %v734, 4294901760
        %3554 = vmatpush.msra.mxu0 %v3553
        %v3555 = vand.u32 %v730, 4294901760
        %3556 = vmatpush.msra.mxu0 %v3555
        %v3557 = vand.u32 %v726, 4294901760
        %3558 = vmatpush.msra.mxu0 %v3557
        %v3559 = vand.u32 %v722, 4294901760
        %3560 = vmatpush.msra.mxu0 %v3559
        %v3561 = vand.u32 %v718, 4294901760
        %3562 = vmatpush.msra.mxu0 %v3561
        %v3563 = vand.u32 %v714, 4294901760
        %3564 = vmatpush.msra.mxu0 %v3563
        %v3565 = vand.u32 %v710, 4294901760
        %3566 = vmatpush.msra.mxu0 %v3565
        %v3567 = vand.u32 %v706, 4294901760
        %3568 = vmatpush.msra.mxu0 %v3567
        %v3569 = vand.u32 %v702, 4294901760
        %3570 = vmatpush.msra.mxu0 %v3569
        %v3571 = vand.u32 %v698, 4294901760
        %3572 = vmatpush.msra.mxu0 %v3571
        %v3573 = vand.u32 %v694, 4294901760
        %3574 = vmatpush.msra.mxu0 %v3573
        %v3575 = vand.u32 %v690, 4294901760
        %3576 = vmatpush.msra.mxu0 %v3575
        %v3577 = vand.u32 %v686, 4294901760
        %3578 = vmatpush.msra.mxu0 %v3577
        %v3579 = vand.u32 %v682, 4294901760
        %3580 = vmatpush.msra.mxu0 %v3579
        %v3581 = vand.u32 %v808, 4294901760
        %3582 = vmatmul.f32.gmra.mxu0 %v3581
        %v3583 = vpop.f32.mrf.mxu0
        %v3584 = vadd.f32 %v3519, %v3583
        %v3585 = vand.u32 %v810, 4294901760
        %3586 = vmatmul.f32.gmra.mxu0 %v3585
        %v3587 = vpop.f32.mrf.mxu0
        %v3588 = vadd.f32 %v3523, %v3587
        %v3589 = vand.u32 %v812, 4294901760
        %3590 = vmatmul.f32.gmra.mxu0 %v3589
        %v3591 = vpop.f32.mrf.mxu0
        %v3592 = vadd.f32 %v3527, %v3591
        %v3593 = vand.u32 %v814, 4294901760
        %3594 = vmatmul.f32.gmra.mxu0 %v3593
        %v3595 = vpop.f32.mrf.mxu0
        %v3596 = vadd.f32 %v3531, %v3595
        %v3597 = vand.u32 %v816, 4294901760
        %3598 = vmatmul.f32.gmra.mxu0 %v3597
        %v3599 = vpop.f32.mrf.mxu0
        %v3600 = vadd.f32 %v3535, %v3599
        %v3601 = vand.u32 %v818, 4294901760
        %3602 = vmatmul.f32.gmra.mxu0 %v3601
        %v3603 = vpop.f32.mrf.mxu0
        %v3604 = vadd.f32 %v3539, %v3603
        %v3605 = vand.u32 %v820, 4294901760
        %3606 = vmatmul.f32.gmra.mxu0 %v3605
        %v3607 = vpop.f32.mrf.mxu0
        %v3608 = vadd.f32 %v3543, %v3607
        %v3609 = vand.u32 %v822, 4294901760
        %3610 = vmatmul.f32.gmra.mxu0 %v3609
        %v3611 = vpop.f32.mrf.mxu0
        %v3612 = vadd.f32 %v3547, %v3611
        %3613 = vdwg.mxu0
        %v3614 = vand.u32 %v806, 4294901760
        %3615 = vmatpush.msra.mxu0 %v3614
        %v3616 = vand.u32 %v802, 4294901760
        %3617 = vmatpush.msra.mxu0 %v3616
        %v3618 = vand.u32 %v798, 4294901760
        %3619 = vmatpush.msra.mxu0 %v3618
        %v3620 = vand.u32 %v794, 4294901760
        %3621 = vmatpush.msra.mxu0 %v3620
        %v3622 = vand.u32 %v790, 4294901760
        %3623 = vmatpush.msra.mxu0 %v3622
        %v3624 = vand.u32 %v786, 4294901760
        %3625 = vmatpush.msra.mxu0 %v3624
        %v3626 = vand.u32 %v782, 4294901760
        %3627 = vmatpush.msra.mxu0 %v3626
        %v3628 = vand.u32 %v778, 4294901760
        %3629 = vmatpush.msra.mxu0 %v3628
        %v3630 = vand.u32 %v774, 4294901760
        %3631 = vmatpush.msra.mxu0 %v3630
        %v3632 = vand.u32 %v770, 4294901760
        %3633 = vmatpush.msra.mxu0 %v3632
        %v3634 = vand.u32 %v766, 4294901760
        %3635 = vmatpush.msra.mxu0 %v3634
        %v3636 = vand.u32 %v762, 4294901760
        %3637 = vmatpush.msra.mxu0 %v3636
        %v3638 = vand.u32 %v758, 4294901760
        %3639 = vmatpush.msra.mxu0 %v3638
        %v3640 = vand.u32 %v754, 4294901760
        %3641 = vmatpush.msra.mxu0 %v3640
        %v3642 = vand.u32 %v750, 4294901760
        %3643 = vmatpush.msra.mxu0 %v3642
        %v3644 = vand.u32 %v746, 4294901760
        %3645 = vmatpush.msra.mxu0 %v3644
        %v3646 = vand.u32 %v809, 4294901760
        %v3647 = vsub.f32 %v809, %v3646
        %v3648 = vand.u32 %v3647, 4294901760
        %v3649 = vsub.f32 %v3647, %v3648
        %v3650 = vand.u32 %v3649, 4294901760
        %3651 = vmatmul.f32.gmra.mxu0 %v3650
        %v3652 = vpop.f32.mrf.mxu0
        %v3653 = vadd.f32 %v3584, %v3652
        %v3654 = vand.u32 %v811, 4294901760
        %v3655 = vsub.f32 %v811, %v3654
        %v3656 = vand.u32 %v3655, 4294901760
        %v3657 = vsub.f32 %v3655, %v3656
        %v3658 = vand.u32 %v3657, 4294901760
        %3659 = vmatmul.f32.gmra.mxu0 %v3658
        %v3660 = vpop.f32.mrf.mxu0
        %v3661 = vadd.f32 %v3588, %v3660
        %v3662 = vand.u32 %v813, 4294901760
        %v3663 = vsub.f32 %v813, %v3662
        %v3664 = vand.u32 %v3663, 4294901760
        %v3665 = vsub.f32 %v3663, %v3664
        %v3666 = vand.u32 %v3665, 4294901760
        %3667 = vmatmul.f32.gmra.mxu0 %v3666
        %v3668 = vpop.f32.mrf.mxu0
        %v3669 = vadd.f32 %v3592, %v3668
        %v3670 = vand.u32 %v815, 4294901760
        %v3671 = vsub.f32 %v815, %v3670
        %v3672 = vand.u32 %v3671, 4294901760
        %v3673 = vsub.f32 %v3671, %v3672
        %v3674 = vand.u32 %v3673, 4294901760
        %3675 = vmatmul.f32.gmra.mxu0 %v3674
        %v3676 = vpop.f32.mrf.mxu0
        %v3677 = vadd.f32 %v3596, %v3676
        %v3678 = vand.u32 %v817, 4294901760
        %v3679 = vsub.f32 %v817, %v3678
        %v3680 = vand.u32 %v3679, 4294901760
        %v3681 = vsub.f32 %v3679, %v3680
        %v3682 = vand.u32 %v3681, 4294901760
        %3683 = vmatmul.f32.gmra.mxu0 %v3682
        %v3684 = vpop.f32.mrf.mxu0
        %v3685 = vadd.f32 %v3600, %v3684
        %v3686 = vand.u32 %v819, 4294901760
        %v3687 = vsub.f32 %v819, %v3686
        %v3688 = vand.u32 %v3687, 4294901760
        %v3689 = vsub.f32 %v3687, %v3688
        %v3690 = vand.u32 %v3689, 4294901760
        %3691 = vmatmul.f32.gmra.mxu0 %v3690
        %v3692 = vpop.f32.mrf.mxu0
        %v3693 = vadd.f32 %v3604, %v3692
        %v3694 = vand.u32 %v821, 4294901760
        %v3695 = vsub.f32 %v821, %v3694
        %v3696 = vand.u32 %v3695, 4294901760
        %v3697 = vsub.f32 %v3695, %v3696
        %v3698 = vand.u32 %v3697, 4294901760
        %3699 = vmatmul.f32.gmra.mxu0 %v3698
        %v3700 = vpop.f32.mrf.mxu0
        %v3701 = vadd.f32 %v3608, %v3700
        %v3702 = vand.u32 %v823, 4294901760
        %v3703 = vsub.f32 %v823, %v3702
        %v3704 = vand.u32 %v3703, 4294901760
        %v3705 = vsub.f32 %v3703, %v3704
        %v3706 = vand.u32 %v3705, 4294901760
        %3707 = vmatmul.f32.gmra.mxu0 %v3706
        %v3708 = vpop.f32.mrf.mxu0
        %v3709 = vadd.f32 %v3612, %v3708
        %3710 = vdwg.mxu0
        %v3711 = vand.u32 %v806, 4294901760
        %v3712 = vsub.f32 %v806, %v3711
        %v3713 = vand.u32 %v3712, 4294901760
        %v3714 = vsub.f32 %v3712, %v3713
        %v3715 = vand.u32 %v3714, 4294901760
        %3716 = vmatpush.msra.mxu0 %v3715
        %v3717 = vand.u32 %v802, 4294901760
        %v3718 = vsub.f32 %v802, %v3717
        %v3719 = vand.u32 %v3718, 4294901760
        %v3720 = vsub.f32 %v3718, %v3719
        %v3721 = vand.u32 %v3720, 4294901760
        %3722 = vmatpush.msra.mxu0 %v3721
        %v3723 = vand.u32 %v798, 4294901760
        %v3724 = vsub.f32 %v798, %v3723
        %v3725 = vand.u32 %v3724, 4294901760
        %v3726 = vsub.f32 %v3724, %v3725
        %v3727 = vand.u32 %v3726, 4294901760
        %3728 = vmatpush.msra.mxu0 %v3727
        %v3729 = vand.u32 %v794, 4294901760
        %v3730 = vsub.f32 %v794, %v3729
        %v3731 = vand.u32 %v3730, 4294901760
        %v3732 = vsub.f32 %v3730, %v3731
        %v3733 = vand.u32 %v3732, 4294901760
        %3734 = vmatpush.msra.mxu0 %v3733
        %v3735 = vand.u32 %v790, 4294901760
        %v3736 = vsub.f32 %v790, %v3735
        %v3737 = vand.u32 %v3736, 4294901760
        %v3738 = vsub.f32 %v3736, %v3737
        %v3739 = vand.u32 %v3738, 4294901760
        %3740 = vmatpush.msra.mxu0 %v3739
        %v3741 = vand.u32 %v786, 4294901760
        %v3742 = vsub.f32 %v786, %v3741
        %v3743 = vand.u32 %v3742, 4294901760
        %v3744 = vsub.f32 %v3742, %v3743
        %v3745 = vand.u32 %v3744, 4294901760
        %3746 = vmatpush.msra.mxu0 %v3745
        %v3747 = vand.u32 %v782, 4294901760
        %v3748 = vsub.f32 %v782, %v3747
        %v3749 = vand.u32 %v3748, 4294901760
        %v3750 = vsub.f32 %v3748, %v3749
        %v3751 = vand.u32 %v3750, 4294901760
        %3752 = vmatpush.msra.mxu0 %v3751
        %v3753 = vand.u32 %v778, 4294901760
        %v3754 = vsub.f32 %v778, %v3753
        %v3755 = vand.u32 %v3754, 4294901760
        %v3756 = vsub.f32 %v3754, %v3755
        %v3757 = vand.u32 %v3756, 4294901760
        %3758 = vmatpush.msra.mxu0 %v3757
        %v3759 = vand.u32 %v774, 4294901760
        %v3760 = vsub.f32 %v774, %v3759
        %v3761 = vand.u32 %v3760, 4294901760
        %v3762 = vsub.f32 %v3760, %v3761
        %v3763 = vand.u32 %v3762, 4294901760
        %3764 = vmatpush.msra.mxu0 %v3763
        %v3765 = vand.u32 %v770, 4294901760
        %v3766 = vsub.f32 %v770, %v3765
        %v3767 = vand.u32 %v3766, 4294901760
        %v3768 = vsub.f32 %v3766, %v3767
        %v3769 = vand.u32 %v3768, 4294901760
        %3770 = vmatpush.msra.mxu0 %v3769
        %v3771 = vand.u32 %v766, 4294901760
        %v3772 = vsub.f32 %v766, %v3771
        %v3773 = vand.u32 %v3772, 4294901760
        %v3774 = vsub.f32 %v3772, %v3773
        %v3775 = vand.u32 %v3774, 4294901760
        %3776 = vmatpush.msra.mxu0 %v3775
        %v3777 = vand.u32 %v762, 4294901760
        %v3778 = vsub.f32 %v762, %v3777
        %v3779 = vand.u32 %v3778, 4294901760
        %v3780 = vsub.f32 %v3778, %v3779
        %v3781 = vand.u32 %v3780, 4294901760
        %3782 = vmatpush.msra.mxu0 %v3781
        %v3783 = vand.u32 %v758, 4294901760
        %v3784 = vsub.f32 %v758, %v3783
        %v3785 = vand.u32 %v3784, 4294901760
        %v3786 = vsub.f32 %v3784, %v3785
        %v3787 = vand.u32 %v3786, 4294901760
        %3788 = vmatpush.msra.mxu0 %v3787
        %v3789 = vand.u32 %v754, 4294901760
        %v3790 = vsub.f32 %v754, %v3789
        %v3791 = vand.u32 %v3790, 4294901760
        %v3792 = vsub.f32 %v3790, %v3791
        %v3793 = vand.u32 %v3792, 4294901760
        %3794 = vmatpush.msra.mxu0 %v3793
        %v3795 = vand.u32 %v750, 4294901760
        %v3796 = vsub.f32 %v750, %v3795
        %v3797 = vand.u32 %v3796, 4294901760
        %v3798 = vsub.f32 %v3796, %v3797
        %v3799 = vand.u32 %v3798, 4294901760
        %3800 = vmatpush.msra.mxu0 %v3799
        %v3801 = vand.u32 %v746, 4294901760
        %v3802 = vsub.f32 %v746, %v3801
        %v3803 = vand.u32 %v3802, 4294901760
        %v3804 = vsub.f32 %v3802, %v3803
        %v3805 = vand.u32 %v3804, 4294901760
        %3806 = vmatpush.msra.mxu0 %v3805
        %v3807 = vand.u32 %v809, 4294901760
        %3808 = vmatmul.f32.gmra.mxu0 %v3807
        %v3809 = vpop.f32.mrf.mxu0
        %v3810 = vadd.f32 %v3653, %v3809
        %v3811 = vand.u32 %v811, 4294901760
        %3812 = vmatmul.f32.gmra.mxu0 %v3811
        %v3813 = vpop.f32.mrf.mxu0
        %v3814 = vadd.f32 %v3661, %v3813
        %v3815 = vand.u32 %v813, 4294901760
        %3816 = vmatmul.f32.gmra.mxu0 %v3815
        %v3817 = vpop.f32.mrf.mxu0
        %v3818 = vadd.f32 %v3669, %v3817
        %v3819 = vand.u32 %v815, 4294901760
        %3820 = vmatmul.f32.gmra.mxu0 %v3819
        %v3821 = vpop.f32.mrf.mxu0
        %v3822 = vadd.f32 %v3677, %v3821
        %v3823 = vand.u32 %v817, 4294901760
        %3824 = vmatmul.f32.gmra.mxu0 %v3823
        %v3825 = vpop.f32.mrf.mxu0
        %v3826 = vadd.f32 %v3685, %v3825
        %v3827 = vand.u32 %v819, 4294901760
        %3828 = vmatmul.f32.gmra.mxu0 %v3827
        %v3829 = vpop.f32.mrf.mxu0
        %v3830 = vadd.f32 %v3693, %v3829
        %v3831 = vand.u32 %v821, 4294901760
        %3832 = vmatmul.f32.gmra.mxu0 %v3831
        %v3833 = vpop.f32.mrf.mxu0
        %v3834 = vadd.f32 %v3701, %v3833
        %v3835 = vand.u32 %v823, 4294901760
        %3836 = vmatmul.f32.gmra.mxu0 %v3835
        %v3837 = vpop.f32.mrf.mxu0
        %v3838 = vadd.f32 %v3709, %v3837
        %3839 = vdwg.mxu0
        %v3840 = vand.u32 %v806, 4294901760
        %v3841 = vsub.f32 %v806, %v3840
        %3842 = vmatpush.msra.mxu0 %v3841
        %v3843 = vand.u32 %v802, 4294901760
        %v3844 = vsub.f32 %v802, %v3843
        %3845 = vmatpush.msra.mxu0 %v3844
        %v3846 = vand.u32 %v798, 4294901760
        %v3847 = vsub.f32 %v798, %v3846
        %3848 = vmatpush.msra.mxu0 %v3847
        %v3849 = vand.u32 %v794, 4294901760
        %v3850 = vsub.f32 %v794, %v3849
        %3851 = vmatpush.msra.mxu0 %v3850
        %v3852 = vand.u32 %v790, 4294901760
        %v3853 = vsub.f32 %v790, %v3852
        %3854 = vmatpush.msra.mxu0 %v3853
        %v3855 = vand.u32 %v786, 4294901760
        %v3856 = vsub.f32 %v786, %v3855
        %3857 = vmatpush.msra.mxu0 %v3856
        %v3858 = vand.u32 %v782, 4294901760
        %v3859 = vsub.f32 %v782, %v3858
        %3860 = vmatpush.msra.mxu0 %v3859
        %v3861 = vand.u32 %v778, 4294901760
        %v3862 = vsub.f32 %v778, %v3861
        %3863 = vmatpush.msra.mxu0 %v3862
        %v3864 = vand.u32 %v774, 4294901760
        %v3865 = vsub.f32 %v774, %v3864
        %3866 = vmatpush.msra.mxu0 %v3865
        %v3867 = vand.u32 %v770, 4294901760
        %v3868 = vsub.f32 %v770, %v3867
        %3869 = vmatpush.msra.mxu0 %v3868
        %v3870 = vand.u32 %v766, 4294901760
        %v3871 = vsub.f32 %v766, %v3870
        %3872 = vmatpush.msra.mxu0 %v3871
        %v3873 = vand.u32 %v762, 4294901760
        %v3874 = vsub.f32 %v762, %v3873
        %3875 = vmatpush.msra.mxu0 %v3874
        %v3876 = vand.u32 %v758, 4294901760
        %v3877 = vsub.f32 %v758, %v3876
        %3878 = vmatpush.msra.mxu0 %v3877
        %v3879 = vand.u32 %v754, 4294901760
        %v3880 = vsub.f32 %v754, %v3879
        %3881 = vmatpush.msra.mxu0 %v3880
        %v3882 = vand.u32 %v750, 4294901760
        %v3883 = vsub.f32 %v750, %v3882
        %3884 = vmatpush.msra.mxu0 %v3883
        %v3885 = vand.u32 %v746, 4294901760
        %v3886 = vsub.f32 %v746, %v3885
        %3887 = vmatpush.msra.mxu0 %v3886
        %v3888 = vand.u32 %v809, 4294901760
        %v3889 = vsub.f32 %v809, %v3888
        %3890 = vmatmul.f32.gmra.mxu0 %v3889
        %v3891 = vpop.f32.mrf.mxu0
        %v3892 = vadd.f32 %v3810, %v3891
        %v3893 = vand.u32 %v811, 4294901760
        %v3894 = vsub.f32 %v811, %v3893
        %3895 = vmatmul.f32.gmra.mxu0 %v3894
        %v3896 = vpop.f32.mrf.mxu0
        %v3897 = vadd.f32 %v3814, %v3896
        %v3898 = vand.u32 %v813, 4294901760
        %v3899 = vsub.f32 %v813, %v3898
        %3900 = vmatmul.f32.gmra.mxu0 %v3899
        %v3901 = vpop.f32.mrf.mxu0
        %v3902 = vadd.f32 %v3818, %v3901
        %v3903 = vand.u32 %v815, 4294901760
        %v3904 = vsub.f32 %v815, %v3903
        %3905 = vmatmul.f32.gmra.mxu0 %v3904
        %v3906 = vpop.f32.mrf.mxu0
        %v3907 = vadd.f32 %v3822, %v3906
        %v3908 = vand.u32 %v817, 4294901760
        %v3909 = vsub.f32 %v817, %v3908
        %3910 = vmatmul.f32.gmra.mxu0 %v3909
        %v3911 = vpop.f32.mrf.mxu0
        %v3912 = vadd.f32 %v3826, %v3911
        %v3913 = vand.u32 %v819, 4294901760
        %v3914 = vsub.f32 %v819, %v3913
        %3915 = vmatmul.f32.gmra.mxu0 %v3914
        %v3916 = vpop.f32.mrf.mxu0
        %v3917 = vadd.f32 %v3830, %v3916
        %v3918 = vand.u32 %v821, 4294901760
        %v3919 = vsub.f32 %v821, %v3918
        %3920 = vmatmul.f32.gmra.mxu0 %v3919
        %v3921 = vpop.f32.mrf.mxu0
        %v3922 = vadd.f32 %v3834, %v3921
        %v3923 = vand.u32 %v823, 4294901760
        %v3924 = vsub.f32 %v823, %v3923
        %3925 = vmatmul.f32.gmra.mxu0 %v3924
        %v3926 = vpop.f32.mrf.mxu0
        %v3927 = vadd.f32 %v3838, %v3926
        %3928 = vdwg.mxu0
        %v3929 = vand.u32 %v806, 4294901760
        %3930 = vmatpush.msra.mxu0 %v3929
        %v3931 = vand.u32 %v802, 4294901760
        %3932 = vmatpush.msra.mxu0 %v3931
        %v3933 = vand.u32 %v798, 4294901760
        %3934 = vmatpush.msra.mxu0 %v3933
        %v3935 = vand.u32 %v794, 4294901760
        %3936 = vmatpush.msra.mxu0 %v3935
        %v3937 = vand.u32 %v790, 4294901760
        %3938 = vmatpush.msra.mxu0 %v3937
        %v3939 = vand.u32 %v786, 4294901760
        %3940 = vmatpush.msra.mxu0 %v3939
        %v3941 = vand.u32 %v782, 4294901760
        %3942 = vmatpush.msra.mxu0 %v3941
        %v3943 = vand.u32 %v778, 4294901760
        %3944 = vmatpush.msra.mxu0 %v3943
        %v3945 = vand.u32 %v774, 4294901760
        %3946 = vmatpush.msra.mxu0 %v3945
        %v3947 = vand.u32 %v770, 4294901760
        %3948 = vmatpush.msra.mxu0 %v3947
        %v3949 = vand.u32 %v766, 4294901760
        %3950 = vmatpush.msra.mxu0 %v3949
        %v3951 = vand.u32 %v762, 4294901760
        %3952 = vmatpush.msra.mxu0 %v3951
        %v3953 = vand.u32 %v758, 4294901760
        %3954 = vmatpush.msra.mxu0 %v3953
        %v3955 = vand.u32 %v754, 4294901760
        %3956 = vmatpush.msra.mxu0 %v3955
        %v3957 = vand.u32 %v750, 4294901760
        %3958 = vmatpush.msra.mxu0 %v3957
        %v3959 = vand.u32 %v746, 4294901760
        %3960 = vmatpush.msra.mxu0 %v3959
        %v3961 = vand.u32 %v809, 4294901760
        %v3962 = vsub.f32 %v809, %v3961
        %v3963 = vand.u32 %v3962, 4294901760
        %3964 = vmatmul.f32.gmra.mxu0 %v3963
        %v3965 = vpop.f32.mrf.mxu0
        %v3966 = vadd.f32 %v3892, %v3965
        %v3967 = vand.u32 %v811, 4294901760
        %v3968 = vsub.f32 %v811, %v3967
        %v3969 = vand.u32 %v3968, 4294901760
        %3970 = vmatmul.f32.gmra.mxu0 %v3969
        %v3971 = vpop.f32.mrf.mxu0
        %v3972 = vadd.f32 %v3897, %v3971
        %v3973 = vand.u32 %v813, 4294901760
        %v3974 = vsub.f32 %v813, %v3973
        %v3975 = vand.u32 %v3974, 4294901760
        %3976 = vmatmul.f32.gmra.mxu0 %v3975
        %v3977 = vpop.f32.mrf.mxu0
        %v3978 = vadd.f32 %v3902, %v3977
        %v3979 = vand.u32 %v815, 4294901760
        %v3980 = vsub.f32 %v815, %v3979
        %v3981 = vand.u32 %v3980, 4294901760
        %3982 = vmatmul.f32.gmra.mxu0 %v3981
        %v3983 = vpop.f32.mrf.mxu0
        %v3984 = vadd.f32 %v3907, %v3983
        %v3985 = vand.u32 %v817, 4294901760
        %v3986 = vsub.f32 %v817, %v3985
        %v3987 = vand.u32 %v3986, 4294901760
        %3988 = vmatmul.f32.gmra.mxu0 %v3987
        %v3989 = vpop.f32.mrf.mxu0
        %v3990 = vadd.f32 %v3912, %v3989
        %v3991 = vand.u32 %v819, 4294901760
        %v3992 = vsub.f32 %v819, %v3991
        %v3993 = vand.u32 %v3992, 4294901760
        %3994 = vmatmul.f32.gmra.mxu0 %v3993
        %v3995 = vpop.f32.mrf.mxu0
        %v3996 = vadd.f32 %v3917, %v3995
        %v3997 = vand.u32 %v821, 4294901760
        %v3998 = vsub.f32 %v821, %v3997
        %v3999 = vand.u32 %v3998, 4294901760
        %4000 = vmatmul.f32.gmra.mxu0 %v3999
        %v4001 = vpop.f32.mrf.mxu0
        %v4002 = vadd.f32 %v3922, %v4001
        %v4003 = vand.u32 %v823, 4294901760
        %v4004 = vsub.f32 %v823, %v4003
        %v4005 = vand.u32 %v4004, 4294901760
        %4006 = vmatmul.f32.gmra.mxu0 %v4005
        %v4007 = vpop.f32.mrf.mxu0
        %v4008 = vadd.f32 %v3927, %v4007
        %4009 = vdwg.mxu0
        %v4010 = vand.u32 %v806, 4294901760
        %v4011 = vsub.f32 %v806, %v4010
        %v4012 = vand.u32 %v4011, 4294901760
        %4013 = vmatpush.msra.mxu0 %v4012
        %v4014 = vand.u32 %v802, 4294901760
        %v4015 = vsub.f32 %v802, %v4014
        %v4016 = vand.u32 %v4015, 4294901760
        %4017 = vmatpush.msra.mxu0 %v4016
        %v4018 = vand.u32 %v798, 4294901760
        %v4019 = vsub.f32 %v798, %v4018
        %v4020 = vand.u32 %v4019, 4294901760
        %4021 = vmatpush.msra.mxu0 %v4020
        %v4022 = vand.u32 %v794, 4294901760
        %v4023 = vsub.f32 %v794, %v4022
        %v4024 = vand.u32 %v4023, 4294901760
        %4025 = vmatpush.msra.mxu0 %v4024
        %v4026 = vand.u32 %v790, 4294901760
        %v4027 = vsub.f32 %v790, %v4026
        %v4028 = vand.u32 %v4027, 4294901760
        %4029 = vmatpush.msra.mxu0 %v4028
        %v4030 = vand.u32 %v786, 4294901760
        %v4031 = vsub.f32 %v786, %v4030
        %v4032 = vand.u32 %v4031, 4294901760
        %4033 = vmatpush.msra.mxu0 %v4032
        %v4034 = vand.u32 %v782, 4294901760
        %v4035 = vsub.f32 %v782, %v4034
        %v4036 = vand.u32 %v4035, 4294901760
        %4037 = vmatpush.msra.mxu0 %v4036
        %v4038 = vand.u32 %v778, 4294901760
        %v4039 = vsub.f32 %v778, %v4038
        %v4040 = vand.u32 %v4039, 4294901760
        %4041 = vmatpush.msra.mxu0 %v4040
        %v4042 = vand.u32 %v774, 4294901760
        %v4043 = vsub.f32 %v774, %v4042
        %v4044 = vand.u32 %v4043, 4294901760
        %4045 = vmatpush.msra.mxu0 %v4044
        %v4046 = vand.u32 %v770, 4294901760
        %v4047 = vsub.f32 %v770, %v4046
        %v4048 = vand.u32 %v4047, 4294901760
        %4049 = vmatpush.msra.mxu0 %v4048
        %v4050 = vand.u32 %v766, 4294901760
        %v4051 = vsub.f32 %v766, %v4050
        %v4052 = vand.u32 %v4051, 4294901760
        %4053 = vmatpush.msra.mxu0 %v4052
        %v4054 = vand.u32 %v762, 4294901760
        %v4055 = vsub.f32 %v762, %v4054
        %v4056 = vand.u32 %v4055, 4294901760
        %4057 = vmatpush.msra.mxu0 %v4056
        %v4058 = vand.u32 %v758, 4294901760
        %v4059 = vsub.f32 %v758, %v4058
        %v4060 = vand.u32 %v4059, 4294901760
        %4061 = vmatpush.msra.mxu0 %v4060
        %v4062 = vand.u32 %v754, 4294901760
        %v4063 = vsub.f32 %v754, %v4062
        %v4064 = vand.u32 %v4063, 4294901760
        %4065 = vmatpush.msra.mxu0 %v4064
        %v4066 = vand.u32 %v750, 4294901760
        %v4067 = vsub.f32 %v750, %v4066
        %v4068 = vand.u32 %v4067, 4294901760
        %4069 = vmatpush.msra.mxu0 %v4068
        %v4070 = vand.u32 %v746, 4294901760
        %v4071 = vsub.f32 %v746, %v4070
        %v4072 = vand.u32 %v4071, 4294901760
        %4073 = vmatpush.msra.mxu0 %v4072
        %v4074 = vand.u32 %v809, 4294901760
        %4075 = vmatmul.f32.gmra.mxu0 %v4074
        %v4076 = vpop.f32.mrf.mxu0
        %v4077 = vadd.f32 %v3966, %v4076
        %v4078 = vand.u32 %v811, 4294901760
        %4079 = vmatmul.f32.gmra.mxu0 %v4078
        %v4080 = vpop.f32.mrf.mxu0
        %v4081 = vadd.f32 %v3972, %v4080
        %v4082 = vand.u32 %v813, 4294901760
        %4083 = vmatmul.f32.gmra.mxu0 %v4082
        %v4084 = vpop.f32.mrf.mxu0
        %v4085 = vadd.f32 %v3978, %v4084
        %v4086 = vand.u32 %v815, 4294901760
        %4087 = vmatmul.f32.gmra.mxu0 %v4086
        %v4088 = vpop.f32.mrf.mxu0
        %v4089 = vadd.f32 %v3984, %v4088
        %v4090 = vand.u32 %v817, 4294901760
        %4091 = vmatmul.f32.gmra.mxu0 %v4090
        %v4092 = vpop.f32.mrf.mxu0
        %v4093 = vadd.f32 %v3990, %v4092
        %v4094 = vand.u32 %v819, 4294901760
        %4095 = vmatmul.f32.gmra.mxu0 %v4094
        %v4096 = vpop.f32.mrf.mxu0
        %v4097 = vadd.f32 %v3996, %v4096
        %v4098 = vand.u32 %v821, 4294901760
        %4099 = vmatmul.f32.gmra.mxu0 %v4098
        %v4100 = vpop.f32.mrf.mxu0
        %v4101 = vadd.f32 %v4002, %v4100
        %v4102 = vand.u32 %v823, 4294901760
        %4103 = vmatmul.f32.gmra.mxu0 %v4102
        %v4104 = vpop.f32.mrf.mxu0
        %v4105 = vadd.f32 %v4008, %v4104
        %4106 = vdwg.mxu0
        %v4107 = vand.u32 %v806, 4294901760
        %4108 = vmatpush.msra.mxu0 %v4107
        %v4109 = vand.u32 %v802, 4294901760
        %4110 = vmatpush.msra.mxu0 %v4109
        %v4111 = vand.u32 %v798, 4294901760
        %4112 = vmatpush.msra.mxu0 %v4111
        %v4113 = vand.u32 %v794, 4294901760
        %4114 = vmatpush.msra.mxu0 %v4113
        %v4115 = vand.u32 %v790, 4294901760
        %4116 = vmatpush.msra.mxu0 %v4115
        %v4117 = vand.u32 %v786, 4294901760
        %4118 = vmatpush.msra.mxu0 %v4117
        %v4119 = vand.u32 %v782, 4294901760
        %4120 = vmatpush.msra.mxu0 %v4119
        %v4121 = vand.u32 %v778, 4294901760
        %4122 = vmatpush.msra.mxu0 %v4121
        %v4123 = vand.u32 %v774, 4294901760
        %4124 = vmatpush.msra.mxu0 %v4123
        %v4125 = vand.u32 %v770, 4294901760
        %4126 = vmatpush.msra.mxu0 %v4125
        %v4127 = vand.u32 %v766, 4294901760
        %4128 = vmatpush.msra.mxu0 %v4127
        %v4129 = vand.u32 %v762, 4294901760
        %4130 = vmatpush.msra.mxu0 %v4129
        %v4131 = vand.u32 %v758, 4294901760
        %4132 = vmatpush.msra.mxu0 %v4131
        %v4133 = vand.u32 %v754, 4294901760
        %4134 = vmatpush.msra.mxu0 %v4133
        %v4135 = vand.u32 %v750, 4294901760
        %4136 = vmatpush.msra.mxu0 %v4135
        %v4137 = vand.u32 %v746, 4294901760
        %4138 = vmatpush.msra.mxu0 %v4137
        %v4139 = vand.u32 %v809, 4294901760
        %4140 = vmatmul.f32.gmra.mxu0 %v4139
        %v4141 = vpop.f32.mrf.mxu0
        %v4142 = vadd.f32 %v4077, %v4141
        %v4143 = vand.u32 %v811, 4294901760
        %4144 = vmatmul.f32.gmra.mxu0 %v4143
        %v4145 = vpop.f32.mrf.mxu0
        %v4146 = vadd.f32 %v4081, %v4145
        %v4147 = vand.u32 %v813, 4294901760
        %4148 = vmatmul.f32.gmra.mxu0 %v4147
        %v4149 = vpop.f32.mrf.mxu0
        %v4150 = vadd.f32 %v4085, %v4149
        %v4151 = vand.u32 %v815, 4294901760
        %4152 = vmatmul.f32.gmra.mxu0 %v4151
        %v4153 = vpop.f32.mrf.mxu0
        %v4154 = vadd.f32 %v4089, %v4153
        %v4155 = vand.u32 %v817, 4294901760
        %4156 = vmatmul.f32.gmra.mxu0 %v4155
        %v4157 = vpop.f32.mrf.mxu0
        %v4158 = vadd.f32 %v4093, %v4157
        %v4159 = vand.u32 %v819, 4294901760
        %4160 = vmatmul.f32.gmra.mxu0 %v4159
        %v4161 = vpop.f32.mrf.mxu0
        %v4162 = vadd.f32 %v4097, %v4161
        %v4163 = vand.u32 %v821, 4294901760
        %4164 = vmatmul.f32.gmra.mxu0 %v4163
        %v4165 = vpop.f32.mrf.mxu0
        %v4166 = vadd.f32 %v4101, %v4165
        %v4167 = vand.u32 %v823, 4294901760
        %4168 = vmatmul.f32.gmra.mxu0 %v4167
        %v4169 = vpop.f32.mrf.mxu0
        %v4170 = vadd.f32 %v4105, %v4169
        %4171 = vdwg.mxu0
        %v4172 = vand.u32 %v743, 4294901760
        %4173 = vmatpush.msra.mxu0 %v4172
        %v4174 = vand.u32 %v739, 4294901760
        %4175 = vmatpush.msra.mxu0 %v4174
        %v4176 = vand.u32 %v735, 4294901760
        %4177 = vmatpush.msra.mxu0 %v4176
        %v4178 = vand.u32 %v731, 4294901760
        %4179 = vmatpush.msra.mxu0 %v4178
        %v4180 = vand.u32 %v727, 4294901760
        %4181 = vmatpush.msra.mxu0 %v4180
        %v4182 = vand.u32 %v723, 4294901760
        %4183 = vmatpush.msra.mxu0 %v4182
        %v4184 = vand.u32 %v719, 4294901760
        %4185 = vmatpush.msra.mxu0 %v4184
        %v4186 = vand.u32 %v715, 4294901760
        %4187 = vmatpush.msra.mxu0 %v4186
        %v4188 = vand.u32 %v711, 4294901760
        %4189 = vmatpush.msra.mxu0 %v4188
        %v4190 = vand.u32 %v707, 4294901760
        %4191 = vmatpush.msra.mxu0 %v4190
        %v4192 = vand.u32 %v703, 4294901760
        %4193 = vmatpush.msra.mxu0 %v4192
        %v4194 = vand.u32 %v699, 4294901760
        %4195 = vmatpush.msra.mxu0 %v4194
        %v4196 = vand.u32 %v695, 4294901760
        %4197 = vmatpush.msra.mxu0 %v4196
        %v4198 = vand.u32 %v691, 4294901760
        %4199 = vmatpush.msra.mxu0 %v4198
        %v4200 = vand.u32 %v687, 4294901760
        %4201 = vmatpush.msra.mxu0 %v4200
        %v4202 = vand.u32 %v683, 4294901760
        %4203 = vmatpush.msra.mxu0 %v4202
        %v4204 = vand.u32 %v808, 4294901760
        %v4205 = vsub.f32 %v808, %v4204
        %v4206 = vand.u32 %v4205, 4294901760
        %v4207 = vsub.f32 %v4205, %v4206
        %v4208 = vand.u32 %v4207, 4294901760
        %4209 = vmatmul.f32.gmra.mxu0 %v4208
        %v4210 = vpop.f32.mrf.mxu0
        %v4211 = vadd.f32 0.0, %v4210
        %v4212 = vand.u32 %v810, 4294901760
        %v4213 = vsub.f32 %v810, %v4212
        %v4214 = vand.u32 %v4213, 4294901760
        %v4215 = vsub.f32 %v4213, %v4214
        %v4216 = vand.u32 %v4215, 4294901760
        %4217 = vmatmul.f32.gmra.mxu0 %v4216
        %v4218 = vpop.f32.mrf.mxu0
        %v4219 = vadd.f32 0.0, %v4218
        %v4220 = vand.u32 %v812, 4294901760
        %v4221 = vsub.f32 %v812, %v4220
        %v4222 = vand.u32 %v4221, 4294901760
        %v4223 = vsub.f32 %v4221, %v4222
        %v4224 = vand.u32 %v4223, 4294901760
        %4225 = vmatmul.f32.gmra.mxu0 %v4224
        %v4226 = vpop.f32.mrf.mxu0
        %v4227 = vadd.f32 0.0, %v4226
        %v4228 = vand.u32 %v814, 4294901760
        %v4229 = vsub.f32 %v814, %v4228
        %v4230 = vand.u32 %v4229, 4294901760
        %v4231 = vsub.f32 %v4229, %v4230
        %v4232 = vand.u32 %v4231, 4294901760
        %4233 = vmatmul.f32.gmra.mxu0 %v4232
        %v4234 = vpop.f32.mrf.mxu0
        %v4235 = vadd.f32 0.0, %v4234
        %v4236 = vand.u32 %v816, 4294901760
        %v4237 = vsub.f32 %v816, %v4236
        %v4238 = vand.u32 %v4237, 4294901760
        %v4239 = vsub.f32 %v4237, %v4238
        %v4240 = vand.u32 %v4239, 4294901760
        %4241 = vmatmul.f32.gmra.mxu0 %v4240
        %v4242 = vpop.f32.mrf.mxu0
        %v4243 = vadd.f32 0.0, %v4242
        %v4244 = vand.u32 %v818, 4294901760
        %v4245 = vsub.f32 %v818, %v4244
        %v4246 = vand.u32 %v4245, 4294901760
        %v4247 = vsub.f32 %v4245, %v4246
        %v4248 = vand.u32 %v4247, 4294901760
        %4249 = vmatmul.f32.gmra.mxu0 %v4248
        %v4250 = vpop.f32.mrf.mxu0
        %v4251 = vadd.f32 0.0, %v4250
        %v4252 = vand.u32 %v820, 4294901760
        %v4253 = vsub.f32 %v820, %v4252
        %v4254 = vand.u32 %v4253, 4294901760
        %v4255 = vsub.f32 %v4253, %v4254
        %v4256 = vand.u32 %v4255, 4294901760
        %4257 = vmatmul.f32.gmra.mxu0 %v4256
        %v4258 = vpop.f32.mrf.mxu0
        %v4259 = vadd.f32 0.0, %v4258
        %v4260 = vand.u32 %v822, 4294901760
        %v4261 = vsub.f32 %v822, %v4260
        %v4262 = vand.u32 %v4261, 4294901760
        %v4263 = vsub.f32 %v4261, %v4262
        %v4264 = vand.u32 %v4263, 4294901760
        %4265 = vmatmul.f32.gmra.mxu0 %v4264
        %v4266 = vpop.f32.mrf.mxu0
        %v4267 = vadd.f32 0.0, %v4266
        %4268 = vdwg.mxu0
        %v4269 = vand.u32 %v743, 4294901760
        %v4270 = vsub.f32 %v743, %v4269
        %v4271 = vand.u32 %v4270, 4294901760
        %v4272 = vsub.f32 %v4270, %v4271
        %v4273 = vand.u32 %v4272, 4294901760
        %4274 = vmatpush.msra.mxu0 %v4273
        %v4275 = vand.u32 %v739, 4294901760
        %v4276 = vsub.f32 %v739, %v4275
        %v4277 = vand.u32 %v4276, 4294901760
        %v4278 = vsub.f32 %v4276, %v4277
        %v4279 = vand.u32 %v4278, 4294901760
        %4280 = vmatpush.msra.mxu0 %v4279
        %v4281 = vand.u32 %v735, 4294901760
        %v4282 = vsub.f32 %v735, %v4281
        %v4283 = vand.u32 %v4282, 4294901760
        %v4284 = vsub.f32 %v4282, %v4283
        %v4285 = vand.u32 %v4284, 4294901760
        %4286 = vmatpush.msra.mxu0 %v4285
        %v4287 = vand.u32 %v731, 4294901760
        %v4288 = vsub.f32 %v731, %v4287
        %v4289 = vand.u32 %v4288, 4294901760
        %v4290 = vsub.f32 %v4288, %v4289
        %v4291 = vand.u32 %v4290, 4294901760
        %4292 = vmatpush.msra.mxu0 %v4291
        %v4293 = vand.u32 %v727, 4294901760
        %v4294 = vsub.f32 %v727, %v4293
        %v4295 = vand.u32 %v4294, 4294901760
        %v4296 = vsub.f32 %v4294, %v4295
        %v4297 = vand.u32 %v4296, 4294901760
        %4298 = vmatpush.msra.mxu0 %v4297
        %v4299 = vand.u32 %v723, 4294901760
        %v4300 = vsub.f32 %v723, %v4299
        %v4301 = vand.u32 %v4300, 4294901760
        %v4302 = vsub.f32 %v4300, %v4301
        %v4303 = vand.u32 %v4302, 4294901760
        %4304 = vmatpush.msra.mxu0 %v4303
        %v4305 = vand.u32 %v719, 4294901760
        %v4306 = vsub.f32 %v719, %v4305
        %v4307 = vand.u32 %v4306, 4294901760
        %v4308 = vsub.f32 %v4306, %v4307
        %v4309 = vand.u32 %v4308, 4294901760
        %4310 = vmatpush.msra.mxu0 %v4309
        %v4311 = vand.u32 %v715, 4294901760
        %v4312 = vsub.f32 %v715, %v4311
        %v4313 = vand.u32 %v4312, 4294901760
        %v4314 = vsub.f32 %v4312, %v4313
        %v4315 = vand.u32 %v4314, 4294901760
        %4316 = vmatpush.msra.mxu0 %v4315
        %v4317 = vand.u32 %v711, 4294901760
        %v4318 = vsub.f32 %v711, %v4317
        %v4319 = vand.u32 %v4318, 4294901760
        %v4320 = vsub.f32 %v4318, %v4319
        %v4321 = vand.u32 %v4320, 4294901760
        %4322 = vmatpush.msra.mxu0 %v4321
        %v4323 = vand.u32 %v707, 4294901760
        %v4324 = vsub.f32 %v707, %v4323
        %v4325 = vand.u32 %v4324, 4294901760
        %v4326 = vsub.f32 %v4324, %v4325
        %v4327 = vand.u32 %v4326, 4294901760
        %4328 = vmatpush.msra.mxu0 %v4327
        %v4329 = vand.u32 %v703, 4294901760
        %v4330 = vsub.f32 %v703, %v4329
        %v4331 = vand.u32 %v4330, 4294901760
        %v4332 = vsub.f32 %v4330, %v4331
        %v4333 = vand.u32 %v4332, 4294901760
        %4334 = vmatpush.msra.mxu0 %v4333
        %v4335 = vand.u32 %v699, 4294901760
        %v4336 = vsub.f32 %v699, %v4335
        %v4337 = vand.u32 %v4336, 4294901760
        %v4338 = vsub.f32 %v4336, %v4337
        %v4339 = vand.u32 %v4338, 4294901760
        %4340 = vmatpush.msra.mxu0 %v4339
        %v4341 = vand.u32 %v695, 4294901760
        %v4342 = vsub.f32 %v695, %v4341
        %v4343 = vand.u32 %v4342, 4294901760
        %v4344 = vsub.f32 %v4342, %v4343
        %v4345 = vand.u32 %v4344, 4294901760
        %4346 = vmatpush.msra.mxu0 %v4345
        %v4347 = vand.u32 %v691, 4294901760
        %v4348 = vsub.f32 %v691, %v4347
        %v4349 = vand.u32 %v4348, 4294901760
        %v4350 = vsub.f32 %v4348, %v4349
        %v4351 = vand.u32 %v4350, 4294901760
        %4352 = vmatpush.msra.mxu0 %v4351
        %v4353 = vand.u32 %v687, 4294901760
        %v4354 = vsub.f32 %v687, %v4353
        %v4355 = vand.u32 %v4354, 4294901760
        %v4356 = vsub.f32 %v4354, %v4355
        %v4357 = vand.u32 %v4356, 4294901760
        %4358 = vmatpush.msra.mxu0 %v4357
        %v4359 = vand.u32 %v683, 4294901760
        %v4360 = vsub.f32 %v683, %v4359
        %v4361 = vand.u32 %v4360, 4294901760
        %v4362 = vsub.f32 %v4360, %v4361
        %v4363 = vand.u32 %v4362, 4294901760
        %4364 = vmatpush.msra.mxu0 %v4363
        %v4365 = vand.u32 %v808, 4294901760
        %4366 = vmatmul.f32.gmra.mxu0 %v4365
        %v4367 = vpop.f32.mrf.mxu0
        %v4368 = vadd.f32 %v4211, %v4367
        %v4369 = vand.u32 %v810, 4294901760
        %4370 = vmatmul.f32.gmra.mxu0 %v4369
        %v4371 = vpop.f32.mrf.mxu0
        %v4372 = vadd.f32 %v4219, %v4371
        %v4373 = vand.u32 %v812, 4294901760
        %4374 = vmatmul.f32.gmra.mxu0 %v4373
        %v4375 = vpop.f32.mrf.mxu0
        %v4376 = vadd.f32 %v4227, %v4375
        %v4377 = vand.u32 %v814, 4294901760
        %4378 = vmatmul.f32.gmra.mxu0 %v4377
        %v4379 = vpop.f32.mrf.mxu0
        %v4380 = vadd.f32 %v4235, %v4379
        %v4381 = vand.u32 %v816, 4294901760
        %4382 = vmatmul.f32.gmra.mxu0 %v4381
        %v4383 = vpop.f32.mrf.mxu0
        %v4384 = vadd.f32 %v4243, %v4383
        %v4385 = vand.u32 %v818, 4294901760
        %4386 = vmatmul.f32.gmra.mxu0 %v4385
        %v4387 = vpop.f32.mrf.mxu0
        %v4388 = vadd.f32 %v4251, %v4387
        %v4389 = vand.u32 %v820, 4294901760
        %4390 = vmatmul.f32.gmra.mxu0 %v4389
        %v4391 = vpop.f32.mrf.mxu0
        %v4392 = vadd.f32 %v4259, %v4391
        %v4393 = vand.u32 %v822, 4294901760
        %4394 = vmatmul.f32.gmra.mxu0 %v4393
        %v4395 = vpop.f32.mrf.mxu0
        %v4396 = vadd.f32 %v4267, %v4395
        %4397 = vdwg.mxu0
        %v4398 = vand.u32 %v743, 4294901760
        %v4399 = vsub.f32 %v743, %v4398
        %4400 = vmatpush.msra.mxu0 %v4399
        %v4401 = vand.u32 %v739, 4294901760
        %v4402 = vsub.f32 %v739, %v4401
        %4403 = vmatpush.msra.mxu0 %v4402
        %v4404 = vand.u32 %v735, 4294901760
        %v4405 = vsub.f32 %v735, %v4404
        %4406 = vmatpush.msra.mxu0 %v4405
        %v4407 = vand.u32 %v731, 4294901760
        %v4408 = vsub.f32 %v731, %v4407
        %4409 = vmatpush.msra.mxu0 %v4408
        %v4410 = vand.u32 %v727, 4294901760
        %v4411 = vsub.f32 %v727, %v4410
        %4412 = vmatpush.msra.mxu0 %v4411
        %v4413 = vand.u32 %v723, 4294901760
        %v4414 = vsub.f32 %v723, %v4413
        %4415 = vmatpush.msra.mxu0 %v4414
        %v4416 = vand.u32 %v719, 4294901760
        %v4417 = vsub.f32 %v719, %v4416
        %4418 = vmatpush.msra.mxu0 %v4417
        %v4419 = vand.u32 %v715, 4294901760
        %v4420 = vsub.f32 %v715, %v4419
        %4421 = vmatpush.msra.mxu0 %v4420
        %v4422 = vand.u32 %v711, 4294901760
        %v4423 = vsub.f32 %v711, %v4422
        %4424 = vmatpush.msra.mxu0 %v4423
        %v4425 = vand.u32 %v707, 4294901760
        %v4426 = vsub.f32 %v707, %v4425
        %4427 = vmatpush.msra.mxu0 %v4426
        %v4428 = vand.u32 %v703, 4294901760
        %v4429 = vsub.f32 %v703, %v4428
        %4430 = vmatpush.msra.mxu0 %v4429
        %v4431 = vand.u32 %v699, 4294901760
        %v4432 = vsub.f32 %v699, %v4431
        %4433 = vmatpush.msra.mxu0 %v4432
        %v4434 = vand.u32 %v695, 4294901760
        %v4435 = vsub.f32 %v695, %v4434
        %4436 = vmatpush.msra.mxu0 %v4435
        %v4437 = vand.u32 %v691, 4294901760
        %v4438 = vsub.f32 %v691, %v4437
        %4439 = vmatpush.msra.mxu0 %v4438
        %v4440 = vand.u32 %v687, 4294901760
        %v4441 = vsub.f32 %v687, %v4440
        %4442 = vmatpush.msra.mxu0 %v4441
        %v4443 = vand.u32 %v683, 4294901760
        %v4444 = vsub.f32 %v683, %v4443
        %4445 = vmatpush.msra.mxu0 %v4444
        %v4446 = vand.u32 %v808, 4294901760
        %v4447 = vsub.f32 %v808, %v4446
        %4448 = vmatmul.f32.gmra.mxu0 %v4447
        %v4449 = vpop.f32.mrf.mxu0
        %v4450 = vadd.f32 %v4368, %v4449
        %v4451 = vand.u32 %v810, 4294901760
        %v4452 = vsub.f32 %v810, %v4451
        %4453 = vmatmul.f32.gmra.mxu0 %v4452
        %v4454 = vpop.f32.mrf.mxu0
        %v4455 = vadd.f32 %v4372, %v4454
        %v4456 = vand.u32 %v812, 4294901760
        %v4457 = vsub.f32 %v812, %v4456
        %4458 = vmatmul.f32.gmra.mxu0 %v4457
        %v4459 = vpop.f32.mrf.mxu0
        %v4460 = vadd.f32 %v4376, %v4459
        %v4461 = vand.u32 %v814, 4294901760
        %v4462 = vsub.f32 %v814, %v4461
        %4463 = vmatmul.f32.gmra.mxu0 %v4462
        %v4464 = vpop.f32.mrf.mxu0
        %v4465 = vadd.f32 %v4380, %v4464
        %v4466 = vand.u32 %v816, 4294901760
        %v4467 = vsub.f32 %v816, %v4466
        %4468 = vmatmul.f32.gmra.mxu0 %v4467
        %v4469 = vpop.f32.mrf.mxu0
        %v4470 = vadd.f32 %v4384, %v4469
        %v4471 = vand.u32 %v818, 4294901760
        %v4472 = vsub.f32 %v818, %v4471
        %4473 = vmatmul.f32.gmra.mxu0 %v4472
        %v4474 = vpop.f32.mrf.mxu0
        %v4475 = vadd.f32 %v4388, %v4474
        %v4476 = vand.u32 %v820, 4294901760
        %v4477 = vsub.f32 %v820, %v4476
        %4478 = vmatmul.f32.gmra.mxu0 %v4477
        %v4479 = vpop.f32.mrf.mxu0
        %v4480 = vadd.f32 %v4392, %v4479
        %v4481 = vand.u32 %v822, 4294901760
        %v4482 = vsub.f32 %v822, %v4481
        %4483 = vmatmul.f32.gmra.mxu0 %v4482
        %v4484 = vpop.f32.mrf.mxu0
        %v4485 = vadd.f32 %v4396, %v4484
        %4486 = vdwg.mxu0
        %v4487 = vand.u32 %v743, 4294901760
        %4488 = vmatpush.msra.mxu0 %v4487
        %v4489 = vand.u32 %v739, 4294901760
        %4490 = vmatpush.msra.mxu0 %v4489
        %v4491 = vand.u32 %v735, 4294901760
        %4492 = vmatpush.msra.mxu0 %v4491
        %v4493 = vand.u32 %v731, 4294901760
        %4494 = vmatpush.msra.mxu0 %v4493
        %v4495 = vand.u32 %v727, 4294901760
        %4496 = vmatpush.msra.mxu0 %v4495
        %v4497 = vand.u32 %v723, 4294901760
        %4498 = vmatpush.msra.mxu0 %v4497
        %v4499 = vand.u32 %v719, 4294901760
        %4500 = vmatpush.msra.mxu0 %v4499
        %v4501 = vand.u32 %v715, 4294901760
        %4502 = vmatpush.msra.mxu0 %v4501
        %v4503 = vand.u32 %v711, 4294901760
        %4504 = vmatpush.msra.mxu0 %v4503
        %v4505 = vand.u32 %v707, 4294901760
        %4506 = vmatpush.msra.mxu0 %v4505
        %v4507 = vand.u32 %v703, 4294901760
        %4508 = vmatpush.msra.mxu0 %v4507
        %v4509 = vand.u32 %v699, 4294901760
        %4510 = vmatpush.msra.mxu0 %v4509
        %v4511 = vand.u32 %v695, 4294901760
        %4512 = vmatpush.msra.mxu0 %v4511
        %v4513 = vand.u32 %v691, 4294901760
        %4514 = vmatpush.msra.mxu0 %v4513
        %v4515 = vand.u32 %v687, 4294901760
        %4516 = vmatpush.msra.mxu0 %v4515
        %v4517 = vand.u32 %v683, 4294901760
        %4518 = vmatpush.msra.mxu0 %v4517
        %v4519 = vand.u32 %v808, 4294901760
        %v4520 = vsub.f32 %v808, %v4519
        %v4521 = vand.u32 %v4520, 4294901760
        %4522 = vmatmul.f32.gmra.mxu0 %v4521
        %v4523 = vpop.f32.mrf.mxu0
        %v4524 = vadd.f32 %v4450, %v4523
        %v4525 = vand.u32 %v810, 4294901760
        %v4526 = vsub.f32 %v810, %v4525
        %v4527 = vand.u32 %v4526, 4294901760
        %4528 = vmatmul.f32.gmra.mxu0 %v4527
        %v4529 = vpop.f32.mrf.mxu0
        %v4530 = vadd.f32 %v4455, %v4529
        %v4531 = vand.u32 %v812, 4294901760
        %v4532 = vsub.f32 %v812, %v4531
        %v4533 = vand.u32 %v4532, 4294901760
        %4534 = vmatmul.f32.gmra.mxu0 %v4533
        %v4535 = vpop.f32.mrf.mxu0
        %v4536 = vadd.f32 %v4460, %v4535
        %v4537 = vand.u32 %v814, 4294901760
        %v4538 = vsub.f32 %v814, %v4537
        %v4539 = vand.u32 %v4538, 4294901760
        %4540 = vmatmul.f32.gmra.mxu0 %v4539
        %v4541 = vpop.f32.mrf.mxu0
        %v4542 = vadd.f32 %v4465, %v4541
        %v4543 = vand.u32 %v816, 4294901760
        %v4544 = vsub.f32 %v816, %v4543
        %v4545 = vand.u32 %v4544, 4294901760
        %4546 = vmatmul.f32.gmra.mxu0 %v4545
        %v4547 = vpop.f32.mrf.mxu0
        %v4548 = vadd.f32 %v4470, %v4547
        %v4549 = vand.u32 %v818, 4294901760
        %v4550 = vsub.f32 %v818, %v4549
        %v4551 = vand.u32 %v4550, 4294901760
        %4552 = vmatmul.f32.gmra.mxu0 %v4551
        %v4553 = vpop.f32.mrf.mxu0
        %v4554 = vadd.f32 %v4475, %v4553
        %v4555 = vand.u32 %v820, 4294901760
        %v4556 = vsub.f32 %v820, %v4555
        %v4557 = vand.u32 %v4556, 4294901760
        %4558 = vmatmul.f32.gmra.mxu0 %v4557
        %v4559 = vpop.f32.mrf.mxu0
        %v4560 = vadd.f32 %v4480, %v4559
        %v4561 = vand.u32 %v822, 4294901760
        %v4562 = vsub.f32 %v822, %v4561
        %v4563 = vand.u32 %v4562, 4294901760
        %4564 = vmatmul.f32.gmra.mxu0 %v4563
        %v4565 = vpop.f32.mrf.mxu0
        %v4566 = vadd.f32 %v4485, %v4565
        %4567 = vdwg.mxu0
        %v4568 = vand.u32 %v743, 4294901760
        %v4569 = vsub.f32 %v743, %v4568
        %v4570 = vand.u32 %v4569, 4294901760
        %4571 = vmatpush.msra.mxu0 %v4570
        %v4572 = vand.u32 %v739, 4294901760
        %v4573 = vsub.f32 %v739, %v4572
        %v4574 = vand.u32 %v4573, 4294901760
        %4575 = vmatpush.msra.mxu0 %v4574
        %v4576 = vand.u32 %v735, 4294901760
        %v4577 = vsub.f32 %v735, %v4576
        %v4578 = vand.u32 %v4577, 4294901760
        %4579 = vmatpush.msra.mxu0 %v4578
        %v4580 = vand.u32 %v731, 4294901760
        %v4581 = vsub.f32 %v731, %v4580
        %v4582 = vand.u32 %v4581, 4294901760
        %4583 = vmatpush.msra.mxu0 %v4582
        %v4584 = vand.u32 %v727, 4294901760
        %v4585 = vsub.f32 %v727, %v4584
        %v4586 = vand.u32 %v4585, 4294901760
        %4587 = vmatpush.msra.mxu0 %v4586
        %v4588 = vand.u32 %v723, 4294901760
        %v4589 = vsub.f32 %v723, %v4588
        %v4590 = vand.u32 %v4589, 4294901760
        %4591 = vmatpush.msra.mxu0 %v4590
        %v4592 = vand.u32 %v719, 4294901760
        %v4593 = vsub.f32 %v719, %v4592
        %v4594 = vand.u32 %v4593, 4294901760
        %4595 = vmatpush.msra.mxu0 %v4594
        %v4596 = vand.u32 %v715, 4294901760
        %v4597 = vsub.f32 %v715, %v4596
        %v4598 = vand.u32 %v4597, 4294901760
        %4599 = vmatpush.msra.mxu0 %v4598
        %v4600 = vand.u32 %v711, 4294901760
        %v4601 = vsub.f32 %v711, %v4600
        %v4602 = vand.u32 %v4601, 4294901760
        %4603 = vmatpush.msra.mxu0 %v4602
        %v4604 = vand.u32 %v707, 4294901760
        %v4605 = vsub.f32 %v707, %v4604
        %v4606 = vand.u32 %v4605, 4294901760
        %4607 = vmatpush.msra.mxu0 %v4606
        %v4608 = vand.u32 %v703, 4294901760
        %v4609 = vsub.f32 %v703, %v4608
        %v4610 = vand.u32 %v4609, 4294901760
        %4611 = vmatpush.msra.mxu0 %v4610
        %v4612 = vand.u32 %v699, 4294901760
        %v4613 = vsub.f32 %v699, %v4612
        %v4614 = vand.u32 %v4613, 4294901760
        %4615 = vmatpush.msra.mxu0 %v4614
        %v4616 = vand.u32 %v695, 4294901760
        %v4617 = vsub.f32 %v695, %v4616
        %v4618 = vand.u32 %v4617, 4294901760
        %4619 = vmatpush.msra.mxu0 %v4618
        %v4620 = vand.u32 %v691, 4294901760
        %v4621 = vsub.f32 %v691, %v4620
        %v4622 = vand.u32 %v4621, 4294901760
        %4623 = vmatpush.msra.mxu0 %v4622
        %v4624 = vand.u32 %v687, 4294901760
        %v4625 = vsub.f32 %v687, %v4624
        %v4626 = vand.u32 %v4625, 4294901760
        %4627 = vmatpush.msra.mxu0 %v4626
        %v4628 = vand.u32 %v683, 4294901760
        %v4629 = vsub.f32 %v683, %v4628
        %v4630 = vand.u32 %v4629, 4294901760
        %4631 = vmatpush.msra.mxu0 %v4630
        %v4632 = vand.u32 %v808, 4294901760
        %4633 = vmatmul.f32.gmra.mxu0 %v4632
        %v4634 = vpop.f32.mrf.mxu0
        %v4635 = vadd.f32 %v4524, %v4634
        %v4636 = vand.u32 %v810, 4294901760
        %4637 = vmatmul.f32.gmra.mxu0 %v4636
        %v4638 = vpop.f32.mrf.mxu0
        %v4639 = vadd.f32 %v4530, %v4638
        %v4640 = vand.u32 %v812, 4294901760
        %4641 = vmatmul.f32.gmra.mxu0 %v4640
        %v4642 = vpop.f32.mrf.mxu0
        %v4643 = vadd.f32 %v4536, %v4642
        %v4644 = vand.u32 %v814, 4294901760
        %4645 = vmatmul.f32.gmra.mxu0 %v4644
        %v4646 = vpop.f32.mrf.mxu0
        %v4647 = vadd.f32 %v4542, %v4646
        %v4648 = vand.u32 %v816, 4294901760
        %4649 = vmatmul.f32.gmra.mxu0 %v4648
        %v4650 = vpop.f32.mrf.mxu0
        %v4651 = vadd.f32 %v4548, %v4650
        %v4652 = vand.u32 %v818, 4294901760
        %4653 = vmatmul.f32.gmra.mxu0 %v4652
        %v4654 = vpop.f32.mrf.mxu0
        %v4655 = vadd.f32 %v4554, %v4654
        %v4656 = vand.u32 %v820, 4294901760
        %4657 = vmatmul.f32.gmra.mxu0 %v4656
        %v4658 = vpop.f32.mrf.mxu0
        %v4659 = vadd.f32 %v4560, %v4658
        %v4660 = vand.u32 %v822, 4294901760
        %4661 = vmatmul.f32.gmra.mxu0 %v4660
        %v4662 = vpop.f32.mrf.mxu0
        %v4663 = vadd.f32 %v4566, %v4662
        %4664 = vdwg.mxu0
        %v4665 = vand.u32 %v743, 4294901760
        %4666 = vmatpush.msra.mxu0 %v4665
        %v4667 = vand.u32 %v739, 4294901760
        %4668 = vmatpush.msra.mxu0 %v4667
        %v4669 = vand.u32 %v735, 4294901760
        %4670 = vmatpush.msra.mxu0 %v4669
        %v4671 = vand.u32 %v731, 4294901760
        %4672 = vmatpush.msra.mxu0 %v4671
        %v4673 = vand.u32 %v727, 4294901760
        %4674 = vmatpush.msra.mxu0 %v4673
        %v4675 = vand.u32 %v723, 4294901760
        %4676 = vmatpush.msra.mxu0 %v4675
        %v4677 = vand.u32 %v719, 4294901760
        %4678 = vmatpush.msra.mxu0 %v4677
        %v4679 = vand.u32 %v715, 4294901760
        %4680 = vmatpush.msra.mxu0 %v4679
        %v4681 = vand.u32 %v711, 4294901760
        %4682 = vmatpush.msra.mxu0 %v4681
        %v4683 = vand.u32 %v707, 4294901760
        %4684 = vmatpush.msra.mxu0 %v4683
        %v4685 = vand.u32 %v703, 4294901760
        %4686 = vmatpush.msra.mxu0 %v4685
        %v4687 = vand.u32 %v699, 4294901760
        %4688 = vmatpush.msra.mxu0 %v4687
        %v4689 = vand.u32 %v695, 4294901760
        %4690 = vmatpush.msra.mxu0 %v4689
        %v4691 = vand.u32 %v691, 4294901760
        %4692 = vmatpush.msra.mxu0 %v4691
        %v4693 = vand.u32 %v687, 4294901760
        %4694 = vmatpush.msra.mxu0 %v4693
        %v4695 = vand.u32 %v683, 4294901760
        %4696 = vmatpush.msra.mxu0 %v4695
        %v4697 = vand.u32 %v808, 4294901760
        %4698 = vmatmul.f32.gmra.mxu0 %v4697
        %v4699 = vpop.f32.mrf.mxu0
        %v4700 = vadd.f32 %v4635, %v4699
        %v4701 = vand.u32 %v810, 4294901760
        %4702 = vmatmul.f32.gmra.mxu0 %v4701
        %v4703 = vpop.f32.mrf.mxu0
        %v4704 = vadd.f32 %v4639, %v4703
        %v4705 = vand.u32 %v812, 4294901760
        %4706 = vmatmul.f32.gmra.mxu0 %v4705
        %v4707 = vpop.f32.mrf.mxu0
        %v4708 = vadd.f32 %v4643, %v4707
        %v4709 = vand.u32 %v814, 4294901760
        %4710 = vmatmul.f32.gmra.mxu0 %v4709
        %v4711 = vpop.f32.mrf.mxu0
        %v4712 = vadd.f32 %v4647, %v4711
        %v4713 = vand.u32 %v816, 4294901760
        %4714 = vmatmul.f32.gmra.mxu0 %v4713
        %v4715 = vpop.f32.mrf.mxu0
        %v4716 = vadd.f32 %v4651, %v4715
        %v4717 = vand.u32 %v818, 4294901760
        %4718 = vmatmul.f32.gmra.mxu0 %v4717
        %v4719 = vpop.f32.mrf.mxu0
        %v4720 = vadd.f32 %v4655, %v4719
        %v4721 = vand.u32 %v820, 4294901760
        %4722 = vmatmul.f32.gmra.mxu0 %v4721
        %v4723 = vpop.f32.mrf.mxu0
        %v4724 = vadd.f32 %v4659, %v4723
        %v4725 = vand.u32 %v822, 4294901760
        %4726 = vmatmul.f32.gmra.mxu0 %v4725
        %v4727 = vpop.f32.mrf.mxu0
        %v4728 = vadd.f32 %v4663, %v4727
        %4729 = vdwg.mxu0
        %v4730 = vand.u32 %v807, 4294901760
        %4731 = vmatpush.msra.mxu0 %v4730
        %v4732 = vand.u32 %v803, 4294901760
        %4733 = vmatpush.msra.mxu0 %v4732
        %v4734 = vand.u32 %v799, 4294901760
        %4735 = vmatpush.msra.mxu0 %v4734
        %v4736 = vand.u32 %v795, 4294901760
        %4737 = vmatpush.msra.mxu0 %v4736
        %v4738 = vand.u32 %v791, 4294901760
        %4739 = vmatpush.msra.mxu0 %v4738
        %v4740 = vand.u32 %v787, 4294901760
        %4741 = vmatpush.msra.mxu0 %v4740
        %v4742 = vand.u32 %v783, 4294901760
        %4743 = vmatpush.msra.mxu0 %v4742
        %v4744 = vand.u32 %v779, 4294901760
        %4745 = vmatpush.msra.mxu0 %v4744
        %v4746 = vand.u32 %v775, 4294901760
        %4747 = vmatpush.msra.mxu0 %v4746
        %v4748 = vand.u32 %v771, 4294901760
        %4749 = vmatpush.msra.mxu0 %v4748
        %v4750 = vand.u32 %v767, 4294901760
        %4751 = vmatpush.msra.mxu0 %v4750
        %v4752 = vand.u32 %v763, 4294901760
        %4753 = vmatpush.msra.mxu0 %v4752
        %v4754 = vand.u32 %v759, 4294901760
        %4755 = vmatpush.msra.mxu0 %v4754
        %v4756 = vand.u32 %v755, 4294901760
        %4757 = vmatpush.msra.mxu0 %v4756
        %v4758 = vand.u32 %v751, 4294901760
        %4759 = vmatpush.msra.mxu0 %v4758
        %v4760 = vand.u32 %v747, 4294901760
        %4761 = vmatpush.msra.mxu0 %v4760
        %v4762 = vand.u32 %v809, 4294901760
        %v4763 = vsub.f32 %v809, %v4762
        %v4764 = vand.u32 %v4763, 4294901760
        %v4765 = vsub.f32 %v4763, %v4764
        %v4766 = vand.u32 %v4765, 4294901760
        %4767 = vmatmul.f32.gmra.mxu0 %v4766
        %v4768 = vpop.f32.mrf.mxu0
        %v4769 = vadd.f32 %v4700, %v4768
        %v4770 = vand.u32 %v811, 4294901760
        %v4771 = vsub.f32 %v811, %v4770
        %v4772 = vand.u32 %v4771, 4294901760
        %v4773 = vsub.f32 %v4771, %v4772
        %v4774 = vand.u32 %v4773, 4294901760
        %4775 = vmatmul.f32.gmra.mxu0 %v4774
        %v4776 = vpop.f32.mrf.mxu0
        %v4777 = vadd.f32 %v4704, %v4776
        %v4778 = vand.u32 %v813, 4294901760
        %v4779 = vsub.f32 %v813, %v4778
        %v4780 = vand.u32 %v4779, 4294901760
        %v4781 = vsub.f32 %v4779, %v4780
        %v4782 = vand.u32 %v4781, 4294901760
        %4783 = vmatmul.f32.gmra.mxu0 %v4782
        %v4784 = vpop.f32.mrf.mxu0
        %v4785 = vadd.f32 %v4708, %v4784
        %v4786 = vand.u32 %v815, 4294901760
        %v4787 = vsub.f32 %v815, %v4786
        %v4788 = vand.u32 %v4787, 4294901760
        %v4789 = vsub.f32 %v4787, %v4788
        %v4790 = vand.u32 %v4789, 4294901760
        %4791 = vmatmul.f32.gmra.mxu0 %v4790
        %v4792 = vpop.f32.mrf.mxu0
        %v4793 = vadd.f32 %v4712, %v4792
        %v4794 = vand.u32 %v817, 4294901760
        %v4795 = vsub.f32 %v817, %v4794
        %v4796 = vand.u32 %v4795, 4294901760
        %v4797 = vsub.f32 %v4795, %v4796
        %v4798 = vand.u32 %v4797, 4294901760
        %4799 = vmatmul.f32.gmra.mxu0 %v4798
        %v4800 = vpop.f32.mrf.mxu0
        %v4801 = vadd.f32 %v4716, %v4800
        %v4802 = vand.u32 %v819, 4294901760
        %v4803 = vsub.f32 %v819, %v4802
        %v4804 = vand.u32 %v4803, 4294901760
        %v4805 = vsub.f32 %v4803, %v4804
        %v4806 = vand.u32 %v4805, 4294901760
        %4807 = vmatmul.f32.gmra.mxu0 %v4806
        %v4808 = vpop.f32.mrf.mxu0
        %v4809 = vadd.f32 %v4720, %v4808
        %v4810 = vand.u32 %v821, 4294901760
        %v4811 = vsub.f32 %v821, %v4810
        %v4812 = vand.u32 %v4811, 4294901760
        %v4813 = vsub.f32 %v4811, %v4812
        %v4814 = vand.u32 %v4813, 4294901760
        %4815 = vmatmul.f32.gmra.mxu0 %v4814
        %v4816 = vpop.f32.mrf.mxu0
        %v4817 = vadd.f32 %v4724, %v4816
        %v4818 = vand.u32 %v823, 4294901760
        %v4819 = vsub.f32 %v823, %v4818
        %v4820 = vand.u32 %v4819, 4294901760
        %v4821 = vsub.f32 %v4819, %v4820
        %v4822 = vand.u32 %v4821, 4294901760
        %4823 = vmatmul.f32.gmra.mxu0 %v4822
        %v4824 = vpop.f32.mrf.mxu0
        %v4825 = vadd.f32 %v4728, %v4824
        %4826 = vdwg.mxu0
        %v4827 = vand.u32 %v807, 4294901760
        %v4828 = vsub.f32 %v807, %v4827
        %v4829 = vand.u32 %v4828, 4294901760
        %v4830 = vsub.f32 %v4828, %v4829
        %v4831 = vand.u32 %v4830, 4294901760
        %4832 = vmatpush.msra.mxu0 %v4831
        %v4833 = vand.u32 %v803, 4294901760
        %v4834 = vsub.f32 %v803, %v4833
        %v4835 = vand.u32 %v4834, 4294901760
        %v4836 = vsub.f32 %v4834, %v4835
        %v4837 = vand.u32 %v4836, 4294901760
        %4838 = vmatpush.msra.mxu0 %v4837
        %v4839 = vand.u32 %v799, 4294901760
        %v4840 = vsub.f32 %v799, %v4839
        %v4841 = vand.u32 %v4840, 4294901760
        %v4842 = vsub.f32 %v4840, %v4841
        %v4843 = vand.u32 %v4842, 4294901760
        %4844 = vmatpush.msra.mxu0 %v4843
        %v4845 = vand.u32 %v795, 4294901760
        %v4846 = vsub.f32 %v795, %v4845
        %v4847 = vand.u32 %v4846, 4294901760
        %v4848 = vsub.f32 %v4846, %v4847
        %v4849 = vand.u32 %v4848, 4294901760
        %4850 = vmatpush.msra.mxu0 %v4849
        %v4851 = vand.u32 %v791, 4294901760
        %v4852 = vsub.f32 %v791, %v4851
        %v4853 = vand.u32 %v4852, 4294901760
        %v4854 = vsub.f32 %v4852, %v4853
        %v4855 = vand.u32 %v4854, 4294901760
        %4856 = vmatpush.msra.mxu0 %v4855
        %v4857 = vand.u32 %v787, 4294901760
        %v4858 = vsub.f32 %v787, %v4857
        %v4859 = vand.u32 %v4858, 4294901760
        %v4860 = vsub.f32 %v4858, %v4859
        %v4861 = vand.u32 %v4860, 4294901760
        %4862 = vmatpush.msra.mxu0 %v4861
        %v4863 = vand.u32 %v783, 4294901760
        %v4864 = vsub.f32 %v783, %v4863
        %v4865 = vand.u32 %v4864, 4294901760
        %v4866 = vsub.f32 %v4864, %v4865
        %v4867 = vand.u32 %v4866, 4294901760
        %4868 = vmatpush.msra.mxu0 %v4867
        %v4869 = vand.u32 %v779, 4294901760
        %v4870 = vsub.f32 %v779, %v4869
        %v4871 = vand.u32 %v4870, 4294901760
        %v4872 = vsub.f32 %v4870, %v4871
        %v4873 = vand.u32 %v4872, 4294901760
        %4874 = vmatpush.msra.mxu0 %v4873
        %v4875 = vand.u32 %v775, 4294901760
        %v4876 = vsub.f32 %v775, %v4875
        %v4877 = vand.u32 %v4876, 4294901760
        %v4878 = vsub.f32 %v4876, %v4877
        %v4879 = vand.u32 %v4878, 4294901760
        %4880 = vmatpush.msra.mxu0 %v4879
        %v4881 = vand.u32 %v771, 4294901760
        %v4882 = vsub.f32 %v771, %v4881
        %v4883 = vand.u32 %v4882, 4294901760
        %v4884 = vsub.f32 %v4882, %v4883
        %v4885 = vand.u32 %v4884, 4294901760
        %4886 = vmatpush.msra.mxu0 %v4885
        %v4887 = vand.u32 %v767, 4294901760
        %v4888 = vsub.f32 %v767, %v4887
        %v4889 = vand.u32 %v4888, 4294901760
        %v4890 = vsub.f32 %v4888, %v4889
        %v4891 = vand.u32 %v4890, 4294901760
        %4892 = vmatpush.msra.mxu0 %v4891
        %v4893 = vand.u32 %v763, 4294901760
        %v4894 = vsub.f32 %v763, %v4893
        %v4895 = vand.u32 %v4894, 4294901760
        %v4896 = vsub.f32 %v4894, %v4895
        %v4897 = vand.u32 %v4896, 4294901760
        %4898 = vmatpush.msra.mxu0 %v4897
        %v4899 = vand.u32 %v759, 4294901760
        %v4900 = vsub.f32 %v759, %v4899
        %v4901 = vand.u32 %v4900, 4294901760
        %v4902 = vsub.f32 %v4900, %v4901
        %v4903 = vand.u32 %v4902, 4294901760
        %4904 = vmatpush.msra.mxu0 %v4903
        %v4905 = vand.u32 %v755, 4294901760
        %v4906 = vsub.f32 %v755, %v4905
        %v4907 = vand.u32 %v4906, 4294901760
        %v4908 = vsub.f32 %v4906, %v4907
        %v4909 = vand.u32 %v4908, 4294901760
        %4910 = vmatpush.msra.mxu0 %v4909
        %v4911 = vand.u32 %v751, 4294901760
        %v4912 = vsub.f32 %v751, %v4911
        %v4913 = vand.u32 %v4912, 4294901760
        %v4914 = vsub.f32 %v4912, %v4913
        %v4915 = vand.u32 %v4914, 4294901760
        %4916 = vmatpush.msra.mxu0 %v4915
        %v4917 = vand.u32 %v747, 4294901760
        %v4918 = vsub.f32 %v747, %v4917
        %v4919 = vand.u32 %v4918, 4294901760
        %v4920 = vsub.f32 %v4918, %v4919
        %v4921 = vand.u32 %v4920, 4294901760
        %4922 = vmatpush.msra.mxu0 %v4921
        %v4923 = vand.u32 %v809, 4294901760
        %4924 = vmatmul.f32.gmra.mxu0 %v4923
        %v4925 = vpop.f32.mrf.mxu0
        %v4926 = vadd.f32 %v4769, %v4925
        %v4927 = vand.u32 %v811, 4294901760
        %4928 = vmatmul.f32.gmra.mxu0 %v4927
        %v4929 = vpop.f32.mrf.mxu0
        %v4930 = vadd.f32 %v4777, %v4929
        %v4931 = vand.u32 %v813, 4294901760
        %4932 = vmatmul.f32.gmra.mxu0 %v4931
        %v4933 = vpop.f32.mrf.mxu0
        %v4934 = vadd.f32 %v4785, %v4933
        %v4935 = vand.u32 %v815, 4294901760
        %4936 = vmatmul.f32.gmra.mxu0 %v4935
        %v4937 = vpop.f32.mrf.mxu0
        %v4938 = vadd.f32 %v4793, %v4937
        %v4939 = vand.u32 %v817, 4294901760
        %4940 = vmatmul.f32.gmra.mxu0 %v4939
        %v4941 = vpop.f32.mrf.mxu0
        %v4942 = vadd.f32 %v4801, %v4941
        %v4943 = vand.u32 %v819, 4294901760
        %4944 = vmatmul.f32.gmra.mxu0 %v4943
        %v4945 = vpop.f32.mrf.mxu0
        %v4946 = vadd.f32 %v4809, %v4945
        %v4947 = vand.u32 %v821, 4294901760
        %4948 = vmatmul.f32.gmra.mxu0 %v4947
        %v4949 = vpop.f32.mrf.mxu0
        %v4950 = vadd.f32 %v4817, %v4949
        %v4951 = vand.u32 %v823, 4294901760
        %4952 = vmatmul.f32.gmra.mxu0 %v4951
        %v4953 = vpop.f32.mrf.mxu0
        %v4954 = vadd.f32 %v4825, %v4953
        %4955 = vdwg.mxu0
        %v4956 = vand.u32 %v807, 4294901760
        %v4957 = vsub.f32 %v807, %v4956
        %4958 = vmatpush.msra.mxu0 %v4957
        %v4959 = vand.u32 %v803, 4294901760
        %v4960 = vsub.f32 %v803, %v4959
        %4961 = vmatpush.msra.mxu0 %v4960
        %v4962 = vand.u32 %v799, 4294901760
        %v4963 = vsub.f32 %v799, %v4962
        %4964 = vmatpush.msra.mxu0 %v4963
        %v4965 = vand.u32 %v795, 4294901760
        %v4966 = vsub.f32 %v795, %v4965
        %4967 = vmatpush.msra.mxu0 %v4966
        %v4968 = vand.u32 %v791, 4294901760
        %v4969 = vsub.f32 %v791, %v4968
        %4970 = vmatpush.msra.mxu0 %v4969
        %v4971 = vand.u32 %v787, 4294901760
        %v4972 = vsub.f32 %v787, %v4971
        %4973 = vmatpush.msra.mxu0 %v4972
        %v4974 = vand.u32 %v783, 4294901760
        %v4975 = vsub.f32 %v783, %v4974
        %4976 = vmatpush.msra.mxu0 %v4975
        %v4977 = vand.u32 %v779, 4294901760
        %v4978 = vsub.f32 %v779, %v4977
        %4979 = vmatpush.msra.mxu0 %v4978
        %v4980 = vand.u32 %v775, 4294901760
        %v4981 = vsub.f32 %v775, %v4980
        %4982 = vmatpush.msra.mxu0 %v4981
        %v4983 = vand.u32 %v771, 4294901760
        %v4984 = vsub.f32 %v771, %v4983
        %4985 = vmatpush.msra.mxu0 %v4984
        %v4986 = vand.u32 %v767, 4294901760
        %v4987 = vsub.f32 %v767, %v4986
        %4988 = vmatpush.msra.mxu0 %v4987
        %v4989 = vand.u32 %v763, 4294901760
        %v4990 = vsub.f32 %v763, %v4989
        %4991 = vmatpush.msra.mxu0 %v4990
        %v4992 = vand.u32 %v759, 4294901760
        %v4993 = vsub.f32 %v759, %v4992
        %4994 = vmatpush.msra.mxu0 %v4993
        %v4995 = vand.u32 %v755, 4294901760
        %v4996 = vsub.f32 %v755, %v4995
        %4997 = vmatpush.msra.mxu0 %v4996
        %v4998 = vand.u32 %v751, 4294901760
        %v4999 = vsub.f32 %v751, %v4998
        %5000 = vmatpush.msra.mxu0 %v4999
        %v5001 = vand.u32 %v747, 4294901760
        %v5002 = vsub.f32 %v747, %v5001
        %5003 = vmatpush.msra.mxu0 %v5002
        %v5004 = vand.u32 %v809, 4294901760
        %v5005 = vsub.f32 %v809, %v5004
        %5006 = vmatmul.f32.gmra.mxu0 %v5005
        %v5007 = vpop.f32.mrf.mxu0
        %v5008 = vadd.f32 %v4926, %v5007
        %v5009 = vand.u32 %v811, 4294901760
        %v5010 = vsub.f32 %v811, %v5009
        %5011 = vmatmul.f32.gmra.mxu0 %v5010
        %v5012 = vpop.f32.mrf.mxu0
        %v5013 = vadd.f32 %v4930, %v5012
        %v5014 = vand.u32 %v813, 4294901760
        %v5015 = vsub.f32 %v813, %v5014
        %5016 = vmatmul.f32.gmra.mxu0 %v5015
        %v5017 = vpop.f32.mrf.mxu0
        %v5018 = vadd.f32 %v4934, %v5017
        %v5019 = vand.u32 %v815, 4294901760
        %v5020 = vsub.f32 %v815, %v5019
        %5021 = vmatmul.f32.gmra.mxu0 %v5020
        %v5022 = vpop.f32.mrf.mxu0
        %v5023 = vadd.f32 %v4938, %v5022
        %v5024 = vand.u32 %v817, 4294901760
        %v5025 = vsub.f32 %v817, %v5024
        %5026 = vmatmul.f32.gmra.mxu0 %v5025
        %v5027 = vpop.f32.mrf.mxu0
        %v5028 = vadd.f32 %v4942, %v5027
        %v5029 = vand.u32 %v819, 4294901760
        %v5030 = vsub.f32 %v819, %v5029
        %5031 = vmatmul.f32.gmra.mxu0 %v5030
        %v5032 = vpop.f32.mrf.mxu0
        %v5033 = vadd.f32 %v4946, %v5032
        %v5034 = vand.u32 %v821, 4294901760
        %v5035 = vsub.f32 %v821, %v5034
        %5036 = vmatmul.f32.gmra.mxu0 %v5035
        %v5037 = vpop.f32.mrf.mxu0
        %v5038 = vadd.f32 %v4950, %v5037
        %v5039 = vand.u32 %v823, 4294901760
        %v5040 = vsub.f32 %v823, %v5039
        %5041 = vmatmul.f32.gmra.mxu0 %v5040
        %v5042 = vpop.f32.mrf.mxu0
        %v5043 = vadd.f32 %v4954, %v5042
        %5044 = vdwg.mxu0
        %v5045 = vand.u32 %v807, 4294901760
        %5046 = vmatpush.msra.mxu0 %v5045
        %v5047 = vand.u32 %v803, 4294901760
        %5048 = vmatpush.msra.mxu0 %v5047
        %v5049 = vand.u32 %v799, 4294901760
        %5050 = vmatpush.msra.mxu0 %v5049
        %v5051 = vand.u32 %v795, 4294901760
        %5052 = vmatpush.msra.mxu0 %v5051
        %v5053 = vand.u32 %v791, 4294901760
        %5054 = vmatpush.msra.mxu0 %v5053
        %v5055 = vand.u32 %v787, 4294901760
        %5056 = vmatpush.msra.mxu0 %v5055
        %v5057 = vand.u32 %v783, 4294901760
        %5058 = vmatpush.msra.mxu0 %v5057
        %v5059 = vand.u32 %v779, 4294901760
        %5060 = vmatpush.msra.mxu0 %v5059
        %v5061 = vand.u32 %v775, 4294901760
        %5062 = vmatpush.msra.mxu0 %v5061
        %v5063 = vand.u32 %v771, 4294901760
        %5064 = vmatpush.msra.mxu0 %v5063
        %v5065 = vand.u32 %v767, 4294901760
        %5066 = vmatpush.msra.mxu0 %v5065
        %v5067 = vand.u32 %v763, 4294901760
        %5068 = vmatpush.msra.mxu0 %v5067
        %v5069 = vand.u32 %v759, 4294901760
        %5070 = vmatpush.msra.mxu0 %v5069
        %v5071 = vand.u32 %v755, 4294901760
        %5072 = vmatpush.msra.mxu0 %v5071
        %v5073 = vand.u32 %v751, 4294901760
        %5074 = vmatpush.msra.mxu0 %v5073
        %v5075 = vand.u32 %v747, 4294901760
        %5076 = vmatpush.msra.mxu0 %v5075
        %v5077 = vand.u32 %v809, 4294901760
        %v5078 = vsub.f32 %v809, %v5077
        %v5079 = vand.u32 %v5078, 4294901760
        %5080 = vmatmul.f32.gmra.mxu0 %v5079
        %v5081 = vpop.f32.mrf.mxu0
        %v5082 = vadd.f32 %v5008, %v5081
        %v5083 = vand.u32 %v811, 4294901760
        %v5084 = vsub.f32 %v811, %v5083
        %v5085 = vand.u32 %v5084, 4294901760
        %5086 = vmatmul.f32.gmra.mxu0 %v5085
        %v5087 = vpop.f32.mrf.mxu0
        %v5088 = vadd.f32 %v5013, %v5087
        %v5089 = vand.u32 %v813, 4294901760
        %v5090 = vsub.f32 %v813, %v5089
        %v5091 = vand.u32 %v5090, 4294901760
        %5092 = vmatmul.f32.gmra.mxu0 %v5091
        %v5093 = vpop.f32.mrf.mxu0
        %v5094 = vadd.f32 %v5018, %v5093
        %v5095 = vand.u32 %v815, 4294901760
        %v5096 = vsub.f32 %v815, %v5095
        %v5097 = vand.u32 %v5096, 4294901760
        %5098 = vmatmul.f32.gmra.mxu0 %v5097
        %v5099 = vpop.f32.mrf.mxu0
        %v5100 = vadd.f32 %v5023, %v5099
        %v5101 = vand.u32 %v817, 4294901760
        %v5102 = vsub.f32 %v817, %v5101
        %v5103 = vand.u32 %v5102, 4294901760
        %5104 = vmatmul.f32.gmra.mxu0 %v5103
        %v5105 = vpop.f32.mrf.mxu0
        %v5106 = vadd.f32 %v5028, %v5105
        %v5107 = vand.u32 %v819, 4294901760
        %v5108 = vsub.f32 %v819, %v5107
        %v5109 = vand.u32 %v5108, 4294901760
        %5110 = vmatmul.f32.gmra.mxu0 %v5109
        %v5111 = vpop.f32.mrf.mxu0
        %v5112 = vadd.f32 %v5033, %v5111
        %v5113 = vand.u32 %v821, 4294901760
        %v5114 = vsub.f32 %v821, %v5113
        %v5115 = vand.u32 %v5114, 4294901760
        %5116 = vmatmul.f32.gmra.mxu0 %v5115
        %v5117 = vpop.f32.mrf.mxu0
        %v5118 = vadd.f32 %v5038, %v5117
        %v5119 = vand.u32 %v823, 4294901760
        %v5120 = vsub.f32 %v823, %v5119
        %v5121 = vand.u32 %v5120, 4294901760
        %5122 = vmatmul.f32.gmra.mxu0 %v5121
        %v5123 = vpop.f32.mrf.mxu0
        %v5124 = vadd.f32 %v5043, %v5123
        %5125 = vdwg.mxu0
        %v5126 = vand.u32 %v807, 4294901760
        %v5127 = vsub.f32 %v807, %v5126
        %v5128 = vand.u32 %v5127, 4294901760
        %5129 = vmatpush.msra.mxu0 %v5128
        %v5130 = vand.u32 %v803, 4294901760
        %v5131 = vsub.f32 %v803, %v5130
        %v5132 = vand.u32 %v5131, 4294901760
        %5133 = vmatpush.msra.mxu0 %v5132
        %v5134 = vand.u32 %v799, 4294901760
        %v5135 = vsub.f32 %v799, %v5134
        %v5136 = vand.u32 %v5135, 4294901760
        %5137 = vmatpush.msra.mxu0 %v5136
        %v5138 = vand.u32 %v795, 4294901760
        %v5139 = vsub.f32 %v795, %v5138
        %v5140 = vand.u32 %v5139, 4294901760
        %5141 = vmatpush.msra.mxu0 %v5140
        %v5142 = vand.u32 %v791, 4294901760
        %v5143 = vsub.f32 %v791, %v5142
        %v5144 = vand.u32 %v5143, 4294901760
        %5145 = vmatpush.msra.mxu0 %v5144
        %v5146 = vand.u32 %v787, 4294901760
        %v5147 = vsub.f32 %v787, %v5146
        %v5148 = vand.u32 %v5147, 4294901760
        %5149 = vmatpush.msra.mxu0 %v5148
        %v5150 = vand.u32 %v783, 4294901760
        %v5151 = vsub.f32 %v783, %v5150
        %v5152 = vand.u32 %v5151, 4294901760
        %5153 = vmatpush.msra.mxu0 %v5152
        %v5154 = vand.u32 %v779, 4294901760
        %v5155 = vsub.f32 %v779, %v5154
        %v5156 = vand.u32 %v5155, 4294901760
        %5157 = vmatpush.msra.mxu0 %v5156
        %v5158 = vand.u32 %v775, 4294901760
        %v5159 = vsub.f32 %v775, %v5158
        %v5160 = vand.u32 %v5159, 4294901760
        %5161 = vmatpush.msra.mxu0 %v5160
        %v5162 = vand.u32 %v771, 4294901760
        %v5163 = vsub.f32 %v771, %v5162
        %v5164 = vand.u32 %v5163, 4294901760
        %5165 = vmatpush.msra.mxu0 %v5164
        %v5166 = vand.u32 %v767, 4294901760
        %v5167 = vsub.f32 %v767, %v5166
        %v5168 = vand.u32 %v5167, 4294901760
        %5169 = vmatpush.msra.mxu0 %v5168
        %v5170 = vand.u32 %v763, 4294901760
        %v5171 = vsub.f32 %v763, %v5170
        %v5172 = vand.u32 %v5171, 4294901760
        %5173 = vmatpush.msra.mxu0 %v5172
        %v5174 = vand.u32 %v759, 4294901760
        %v5175 = vsub.f32 %v759, %v5174
        %v5176 = vand.u32 %v5175, 4294901760
        %5177 = vmatpush.msra.mxu0 %v5176
        %v5178 = vand.u32 %v755, 4294901760
        %v5179 = vsub.f32 %v755, %v5178
        %v5180 = vand.u32 %v5179, 4294901760
        %5181 = vmatpush.msra.mxu0 %v5180
        %v5182 = vand.u32 %v751, 4294901760
        %v5183 = vsub.f32 %v751, %v5182
        %v5184 = vand.u32 %v5183, 4294901760
        %5185 = vmatpush.msra.mxu0 %v5184
        %v5186 = vand.u32 %v747, 4294901760
        %v5187 = vsub.f32 %v747, %v5186
        %v5188 = vand.u32 %v5187, 4294901760
        %5189 = vmatpush.msra.mxu0 %v5188
        %v5190 = vand.u32 %v809, 4294901760
        %5191 = vmatmul.f32.gmra.mxu0 %v5190
        %v5192 = vpop.f32.mrf.mxu0
        %v5193 = vadd.f32 %v5082, %v5192
        %v5194 = vand.u32 %v811, 4294901760
        %5195 = vmatmul.f32.gmra.mxu0 %v5194
        %v5196 = vpop.f32.mrf.mxu0
        %v5197 = vadd.f32 %v5088, %v5196
        %v5198 = vand.u32 %v813, 4294901760
        %5199 = vmatmul.f32.gmra.mxu0 %v5198
        %v5200 = vpop.f32.mrf.mxu0
        %v5201 = vadd.f32 %v5094, %v5200
        %v5202 = vand.u32 %v815, 4294901760
        %5203 = vmatmul.f32.gmra.mxu0 %v5202
        %v5204 = vpop.f32.mrf.mxu0
        %v5205 = vadd.f32 %v5100, %v5204
        %v5206 = vand.u32 %v817, 4294901760
        %5207 = vmatmul.f32.gmra.mxu0 %v5206
        %v5208 = vpop.f32.mrf.mxu0
        %v5209 = vadd.f32 %v5106, %v5208
        %v5210 = vand.u32 %v819, 4294901760
        %5211 = vmatmul.f32.gmra.mxu0 %v5210
        %v5212 = vpop.f32.mrf.mxu0
        %v5213 = vadd.f32 %v5112, %v5212
        %v5214 = vand.u32 %v821, 4294901760
        %5215 = vmatmul.f32.gmra.mxu0 %v5214
        %v5216 = vpop.f32.mrf.mxu0
        %v5217 = vadd.f32 %v5118, %v5216
        %v5218 = vand.u32 %v823, 4294901760
        %5219 = vmatmul.f32.gmra.mxu0 %v5218
        %v5220 = vpop.f32.mrf.mxu0
        %v5221 = vadd.f32 %v5124, %v5220
        %5222 = vdwg.mxu0
        %v5223 = vand.u32 %v807, 4294901760
        %5224 = vmatpush.msra.mxu0 %v5223
        %v5225 = vand.u32 %v803, 4294901760
        %5226 = vmatpush.msra.mxu0 %v5225
        %v5227 = vand.u32 %v799, 4294901760
        %5228 = vmatpush.msra.mxu0 %v5227
        %v5229 = vand.u32 %v795, 4294901760
        %5230 = vmatpush.msra.mxu0 %v5229
        %v5231 = vand.u32 %v791, 4294901760
        %5232 = vmatpush.msra.mxu0 %v5231
        %v5233 = vand.u32 %v787, 4294901760
        %5234 = vmatpush.msra.mxu0 %v5233
        %v5235 = vand.u32 %v783, 4294901760
        %5236 = vmatpush.msra.mxu0 %v5235
        %v5237 = vand.u32 %v779, 4294901760
        %5238 = vmatpush.msra.mxu0 %v5237
        %v5239 = vand.u32 %v775, 4294901760
        %5240 = vmatpush.msra.mxu0 %v5239
        %v5241 = vand.u32 %v771, 4294901760
        %5242 = vmatpush.msra.mxu0 %v5241
        %v5243 = vand.u32 %v767, 4294901760
        %5244 = vmatpush.msra.mxu0 %v5243
        %v5245 = vand.u32 %v763, 4294901760
        %5246 = vmatpush.msra.mxu0 %v5245
        %v5247 = vand.u32 %v759, 4294901760
        %5248 = vmatpush.msra.mxu0 %v5247
        %v5249 = vand.u32 %v755, 4294901760
        %5250 = vmatpush.msra.mxu0 %v5249
        %v5251 = vand.u32 %v751, 4294901760
        %5252 = vmatpush.msra.mxu0 %v5251
        %v5253 = vand.u32 %v747, 4294901760
        %5254 = vmatpush.msra.mxu0 %v5253
        %v5255 = vand.u32 %v809, 4294901760
        %5256 = vmatmul.f32.gmra.mxu0 %v5255
        %v5257 = vpop.f32.mrf.mxu0
        %v5258 = vadd.f32 %v5193, %v5257
        %v5259 = vand.u32 %v811, 4294901760
        %5260 = vmatmul.f32.gmra.mxu0 %v5259
        %v5261 = vpop.f32.mrf.mxu0
        %v5262 = vadd.f32 %v5197, %v5261
        %v5263 = vand.u32 %v813, 4294901760
        %5264 = vmatmul.f32.gmra.mxu0 %v5263
        %v5265 = vpop.f32.mrf.mxu0
        %v5266 = vadd.f32 %v5201, %v5265
        %v5267 = vand.u32 %v815, 4294901760
        %5268 = vmatmul.f32.gmra.mxu0 %v5267
        %v5269 = vpop.f32.mrf.mxu0
        %v5270 = vadd.f32 %v5205, %v5269
        %v5271 = vand.u32 %v817, 4294901760
        %5272 = vmatmul.f32.gmra.mxu0 %v5271
        %v5273 = vpop.f32.mrf.mxu0
        %v5274 = vadd.f32 %v5209, %v5273
        %v5275 = vand.u32 %v819, 4294901760
        %5276 = vmatmul.f32.gmra.mxu0 %v5275
        %v5277 = vpop.f32.mrf.mxu0
        %v5278 = vadd.f32 %v5213, %v5277
        %v5279 = vand.u32 %v821, 4294901760
        %5280 = vmatmul.f32.gmra.mxu0 %v5279
        %v5281 = vpop.f32.mrf.mxu0
        %v5282 = vadd.f32 %v5217, %v5281
        %v5283 = vand.u32 %v823, 4294901760
        %5284 = vmatmul.f32.gmra.mxu0 %v5283
        %v5285 = vpop.f32.mrf.mxu0
        %v5286 = vadd.f32 %v5221, %v5285
        %5287 = vdwg.mxu0
        %v5288 = vmul.f32 %v1910, %v452
        %v5289 = vmul.f32 %v3026, %v453
        %v5290 = vmul.f32 %v4142, %v454
        %v5291 = vmul.f32 %v5258, %v455
        %v5292 = vmul.f32 %v1914, %v456
        %v5293 = vmul.f32 %v3030, %v457
        %v5294 = vmul.f32 %v4146, %v458
        %v5295 = vmul.f32 %v5262, %v459
        %v5296 = vmul.f32 %v1918, %v452
        %v5297 = vmul.f32 %v3034, %v453
        %v5298 = vmul.f32 %v4150, %v454
        %v5299 = vmul.f32 %v5266, %v455
        %v5300 = vmul.f32 %v1922, %v456
        %v5301 = vmul.f32 %v3038, %v457
        %v5302 = vmul.f32 %v4154, %v458
        %v5303 = vmul.f32 %v5270, %v459
        %v5304 = vmul.f32 %v1926, %v452
        %v5305 = vmul.f32 %v3042, %v453
        %v5306 = vmul.f32 %v4158, %v454
        %v5307 = vmul.f32 %v5274, %v455
        %v5308 = vmul.f32 %v1930, %v456
        %v5309 = vmul.f32 %v3046, %v457
        %v5310 = vmul.f32 %v4162, %v458
        %v5311 = vmul.f32 %v5278, %v459
        %v5312 = vmul.f32 %v1934, %v452
        %v5313 = vmul.f32 %v3050, %v453
        %v5314 = vmul.f32 %v4166, %v454
        %v5315 = vmul.f32 %v5282, %v455
        %v5316 = vmul.f32 %v1938, %v456
        %v5317 = vmul.f32 %v3054, %v457
        %v5318 = vmul.f32 %v4170, %v458
        %v5319 = vmul.f32 %v5286, %v459
        %v5320 = vadd.f32 %v5288, %v5292
        %v5321 = vrot.slane %v5320, 4
        %v5322 = vadd.f32 %v5320, %v5321
        %v5323 = vrot.slane %v5322, 2
        %v5324 = vadd.f32 %v5322, %v5323
        %v5325 = vrot.slane %v5324, 1
        %v5326 = vadd.f32 %v5324, %v5325
        %v5327 = vadd.f32 %v5289, %v5293
        %v5328 = vrot.slane %v5327, 4
        %v5329 = vadd.f32 %v5327, %v5328
        %v5330 = vrot.slane %v5329, 2
        %v5331 = vadd.f32 %v5329, %v5330
        %v5332 = vrot.slane %v5331, 1
        %v5333 = vadd.f32 %v5331, %v5332
        %v5334 = vadd.f32 %v5290, %v5294
        %v5335 = vrot.slane %v5334, 4
        %v5336 = vadd.f32 %v5334, %v5335
        %v5337 = vrot.slane %v5336, 2
        %v5338 = vadd.f32 %v5336, %v5337
        %v5339 = vrot.slane %v5338, 1
        %v5340 = vadd.f32 %v5338, %v5339
        %v5341 = vadd.f32 %v5291, %v5295
        %v5342 = vrot.slane %v5341, 4
        %v5343 = vadd.f32 %v5341, %v5342
        %v5344 = vrot.slane %v5343, 2
        %v5345 = vadd.f32 %v5343, %v5344
        %v5346 = vrot.slane %v5345, 1
        %v5347 = vadd.f32 %v5345, %v5346
        %v5348 = vadd.f32 %v5296, %v5300
        %v5349 = vrot.slane %v5348, 4
        %v5350 = vadd.f32 %v5348, %v5349
        %v5351 = vrot.slane %v5350, 2
        %v5352 = vadd.f32 %v5350, %v5351
        %v5353 = vrot.slane %v5352, 1
        %v5354 = vadd.f32 %v5352, %v5353
        %v5355 = vadd.f32 %v5297, %v5301
        %v5356 = vrot.slane %v5355, 4
        %v5357 = vadd.f32 %v5355, %v5356
        %v5358 = vrot.slane %v5357, 2
        %v5359 = vadd.f32 %v5357, %v5358
        %v5360 = vrot.slane %v5359, 1
        %v5361 = vadd.f32 %v5359, %v5360
        %v5362 = vadd.f32 %v5298, %v5302
        %v5363 = vrot.slane %v5362, 4
        %v5364 = vadd.f32 %v5362, %v5363
        %v5365 = vrot.slane %v5364, 2
        %v5366 = vadd.f32 %v5364, %v5365
        %v5367 = vrot.slane %v5366, 1
        %v5368 = vadd.f32 %v5366, %v5367
        %v5369 = vadd.f32 %v5299, %v5303
        %v5370 = vrot.slane %v5369, 4
        %v5371 = vadd.f32 %v5369, %v5370
        %v5372 = vrot.slane %v5371, 2
        %v5373 = vadd.f32 %v5371, %v5372
        %v5374 = vrot.slane %v5373, 1
        %v5375 = vadd.f32 %v5373, %v5374
        %v5376 = vadd.f32 %v5304, %v5308
        %v5377 = vrot.slane %v5376, 4
        %v5378 = vadd.f32 %v5376, %v5377
        %v5379 = vrot.slane %v5378, 2
        %v5380 = vadd.f32 %v5378, %v5379
        %v5381 = vrot.slane %v5380, 1
        %v5382 = vadd.f32 %v5380, %v5381
        %v5383 = vadd.f32 %v5305, %v5309
        %v5384 = vrot.slane %v5383, 4
        %v5385 = vadd.f32 %v5383, %v5384
        %v5386 = vrot.slane %v5385, 2
        %v5387 = vadd.f32 %v5385, %v5386
        %v5388 = vrot.slane %v5387, 1
        %v5389 = vadd.f32 %v5387, %v5388
        %v5390 = vadd.f32 %v5306, %v5310
        %v5391 = vrot.slane %v5390, 4
        %v5392 = vadd.f32 %v5390, %v5391
        %v5393 = vrot.slane %v5392, 2
        %v5394 = vadd.f32 %v5392, %v5393
        %v5395 = vrot.slane %v5394, 1
        %v5396 = vadd.f32 %v5394, %v5395
        %v5397 = vadd.f32 %v5307, %v5311
        %v5398 = vrot.slane %v5397, 4
        %v5399 = vadd.f32 %v5397, %v5398
        %v5400 = vrot.slane %v5399, 2
        %v5401 = vadd.f32 %v5399, %v5400
        %v5402 = vrot.slane %v5401, 1
        %v5403 = vadd.f32 %v5401, %v5402
        %v5404 = vadd.f32 %v5312, %v5316
        %v5405 = vrot.slane %v5404, 4
        %v5406 = vadd.f32 %v5404, %v5405
        %v5407 = vrot.slane %v5406, 2
        %v5408 = vadd.f32 %v5406, %v5407
        %v5409 = vrot.slane %v5408, 1
        %v5410 = vadd.f32 %v5408, %v5409
        %v5411 = vadd.f32 %v5313, %v5317
        %v5412 = vrot.slane %v5411, 4
        %v5413 = vadd.f32 %v5411, %v5412
        %v5414 = vrot.slane %v5413, 2
        %v5415 = vadd.f32 %v5413, %v5414
        %v5416 = vrot.slane %v5415, 1
        %v5417 = vadd.f32 %v5415, %v5416
        %v5418 = vadd.f32 %v5314, %v5318
        %v5419 = vrot.slane %v5418, 4
        %v5420 = vadd.f32 %v5418, %v5419
        %v5421 = vrot.slane %v5420, 2
        %v5422 = vadd.f32 %v5420, %v5421
        %v5423 = vrot.slane %v5422, 1
        %v5424 = vadd.f32 %v5422, %v5423
        %v5425 = vadd.f32 %v5315, %v5319
        %v5426 = vrot.slane %v5425, 4
        %v5427 = vadd.f32 %v5425, %v5426
        %v5428 = vrot.slane %v5427, 2
        %v5429 = vadd.f32 %v5427, %v5428
        %v5430 = vrot.slane %v5429, 1
        %v5431 = vadd.f32 %v5429, %v5430
        %v5448 = vrot.slane %v5333, 4
        %v5449 = vrot.slane %v5347, 4
        %v5450 = vrot.slane %v5361, 4
        %v5451 = vrot.slane %v5375, 4
        %v5452 = vrot.slane %v5389, 4
        %v5453 = vrot.slane %v5403, 4
        %v5454 = vrot.slane %v5417, 4
        %v5455 = vrot.slane %v5431, 4
        %vm5456 = vcmask 1043456
        %v5457 = vsel %vm5456, %v5326, %v5448
        %v5458 = vsel %vm5456, %v5340, %v5449
        %v5459 = vsel %vm5456, %v5354, %v5450
        %v5460 = vsel %vm5456, %v5368, %v5451
        %v5461 = vsel %vm5456, %v5382, %v5452
        %v5462 = vsel %vm5456, %v5396, %v5453
        %v5463 = vsel %vm5456, %v5410, %v5454
        %v5464 = vsel %vm5456, %v5424, %v5455
        %v5465 = vrot.slane %v5459, 7
        %v5466 = vsel %vm480, %v5465, %v5457
        %v5467 = vsel %vm494, %v5465, %v5466
        %v5468 = vrot.slane %v5461, 6
        %v5469 = vsel %vm476, %v5468, %v5467
        %v5470 = vsel %vm500, %v5468, %v5469
        %v5471 = vrot.slane %v5463, 5
        %v5472 = vsel %vm482, %v5471, %v5470
        %vm5473 = vcmask 1047559
        %v5474 = vsel %vm5473, %v5471, %v5472
        %v5475 = vrot.slane %v5460, 7
        %v5476 = vsel %vm480, %v5475, %v5458
        %v5477 = vsel %vm494, %v5475, %v5476
        %v5478 = vrot.slane %v5462, 6
        %v5479 = vsel %vm476, %v5478, %v5477
        %v5480 = vsel %vm500, %v5478, %v5479
        %v5481 = vrot.slane %v5464, 5
        %v5482 = vsel %vm482, %v5481, %v5480
        %v5483 = vsel %vm5473, %v5481, %v5482
        %5486 = vst [vmem:[%s203] sm:$0xff] %v5474
        %5487 = vst [vmem:[%s203 + $0x8] sm:$0xff] %v5483
        %s5488 = sand.u32 %s95, 1
        %s5489 = scalar_lea.sflag [#allocation4], %s5488
        %s5490 = sand.u32 %s95, 1
        %s5491 = smul.addr %s5490, 16
        %s5492 = scalar_lea.vmem [#allocation5], %s5491
        // Predicated region
        $region33: #{tpu_custom_call.1} parent=27 // pred_check
          %p5493 = pneg %p105
        $region34: #{tpu_custom_call.1} parent=27 // pred_check_branch
          %5495 = sbr.rel (%p5493) target = $region36
        $region35: #{tpu_custom_call.1} parent=27 // pred_region
          %s5496 = smul.u32 4, %s24
          %5498 = vsyncadd %s5489, 0
          %s5499 = smul.addr %s23, 4
          %s5500 = sadd.s32 %s5496, %s5499
          %s5501 = smul.addr %s5500, 4
          %s5502 = scalar_lea.hbm %s2, %s5501
          %s5504 = sshll.u32 %s5492, 4
          %s5505 = int_to_ptr.vmem [resolvable:$true] %s5504
          %s5506 = sshll.u32 %s5502, 4
          %s5507 = int_to_ptr.hbm [resolvable:$true] %s5506
          %5509 = dma.vmem_to_hbm [thread:$0]  %s5505, 256, %s5507, %s5489
        $region36: #{tpu_custom_call.1} parent=27 // pred_fallthru
          _
      $region28: #{tpu_custom_call.1} parent=5 // pred_fallthru
        _
      %p5510 = scmp.le.s32.totalorder 2, %s14
      // Predicated region
      $region37: #{tpu_custom_call.1} parent=5 // pred_check
        %p5511 = pneg %p5510
      $region38: #{tpu_custom_call.1} parent=5 // pred_check_branch
        %5513 = sbr.rel (%p5511) target = $region40
      $region39: #{tpu_custom_call.1} parent=5 // pred_region
        %s5514 = ssub.s32 %s14, 2
        // Predicated region
        $region41: #{tpu_custom_call.1} parent=39 // pred_check
          %p5515 = pneg %p111
        $region42: #{tpu_custom_call.1} parent=39 // pred_check_branch
          %5517 = sbr.rel (%p5515) target = $region44
        $region43: #{tpu_custom_call.1} parent=39 // pred_region
          %s5518 = sand.u32 %s96, 1
          %s5519 = scalar_lea.sflag [#allocation4], %s5518
          %s5520 = sand.u32 %s96, 1
          %s5521 = smul.addr %s5520, 16
          %s5522 = scalar_lea.vmem [#allocation5], %s5521
          %5524 = dma.done %s5519, 256
        $region44: #{tpu_custom_call.1} parent=39 // pred_fallthru
          _
      $region40: #{tpu_custom_call.1} parent=5 // pred_fallthru
        _
    $region6: #{tpu_custom_call.1} parent=1 // loop_footer
      %s18 = sadd.s32 1, %s14
    $region7: #{tpu_custom_call.1} parent=1 // loop_footer_branch
      %13 = sbr.rel target = $region3
    $region8: #{tpu_custom_call.1} parent=1 // loop_exit
      _
    %5525 = vsyncpa [#allocation3], 1
    %s5526 = scalar_lea.sflag [#allocation3], 1
    %5527 = vsyncpa %s5526, 1
    %5528 = vsyncpa [#allocation4], 1
    %s5529 = scalar_lea.sflag [#allocation4], 1
    %5530 = vsyncpa %s5529, 1

</llo_original>
